<compile_context>
chip_gen: v6e
topology: v6e:2x2x1
jax: 0.10.0
libtpu: 0.0.40
codegen_flags: <defaults>
</compile_context>

<pallas_src>
import functools

import jax
import jax.numpy as jnp
from jax import lax
from jax.experimental import pallas as pl
from jax.experimental.pallas import tpu as pltpu


_GELU_C = 0.7978845608028654  # sqrt(2/pi)


def _gelu(x):
    # tanh-form GELU (== torch.nn.GELU(approximate='tanh')); tanh runs on EUP.
    return 0.5 * x * (1.0 + jnp.tanh(_GELU_C * (x + 0.044715 * x * x * x)))


def _layer_norm(x, g, b, eps=1e-5):
    mu = jnp.mean(x, axis=-1, keepdims=True)
    var = jnp.mean(jnp.square(x - mu), axis=-1, keepdims=True)
    return (x - mu) * lax.rsqrt(var + eps) * g + b


# ----------------------------------------------------------------------------
# The single fused kernel
# ----------------------------------------------------------------------------
def _cross_stage_kernel(
    # data
    img_ref, ld_ref, pe_ref, mask_ref,
    # Patch_Embedding (block-diag conv) + Patch_Linear
    pec_w_ref, pec_b_ref, pl1_w_ref, pl1_b_ref, pl2_w_ref, pl2_b_ref,
    # Lidar_Embedding
    lid_w_ref, lid_b_ref,
    # TransformerEncoderLayer (post-norm, relu FF, eval dropout)
    inp_w_ref, inp_b_ref, outp_w_ref, outp_b_ref,
    n1_g_ref, n1_b_ref, ff1_w_ref, ff1_b_ref, ff2_w_ref, ff2_b_ref,
    n2_g_ref, n2_b_ref,
    # Width_Linear + out_Conv (block-diag, BN folded)
    wl_w_ref, wl_b_ref, cblk_w_ref, cblk_b_ref,
    # bin_out head
    b1_w_ref, b1_b_ref, bln_g_ref, bln_b_ref, b2_w_ref,
    # outputs
    o_img_ref, o_bin_ref,
    # scratch
    x0_ref,
    *, B, H, num_head, head_dim):
    f32 = jnp.float32
    D = num_head * head_dim
    BH = B * H

    # --- Patch_Embedding: 1x1 conv over ALL pixel columns as one block-diag
    #     matmul, GELU, then Patch_Linear as two plain matmuls. ---------------
    cw = _gelu(jnp.dot(img_ref[...], pec_w_ref[...],
                       preferred_element_type=f32) + pec_b_ref[...])  # (BH, W*C//2)
    x = _gelu(jnp.dot(cw, pl1_w_ref[...], preferred_element_type=f32)
              + pl1_b_ref[...])                                       # (BH, 2D)
    x = _gelu(jnp.dot(x, pl2_w_ref[...], preferred_element_type=f32)
              + pl2_b_ref[...])                                       # (BH, D)

    # --- Lidar_Embedding -----------------------------------------------------
    lid = _gelu(jnp.dot(ld_ref[...], lid_w_ref[...],
                        preferred_element_type=f32) + lid_b_ref[...])  # (B, D)

    # --- concat + positional embedding (row order: patch rows, lidar rows) --
    x0_ref[0:BH, :] = x
    x0_ref[BH:BH + B, :] = lid
    seq = x0_ref[...] + pe_ref[...]                                   # (R, D)

    # --- TransformerEncoderLayer (post-norm, ReLU FF, eval dropout) ---------
    qkv = (jnp.dot(seq, inp_w_ref[...], preferred_element_type=f32)
           + inp_b_ref[...])                                          # (R, 3D)
    scale = head_dim ** -0.5
    mask = mask_ref[...]
    w_out = outp_w_ref[...]
    attn = jnp.zeros_like(seq)
    for h in range(num_head):
        lo = h * head_dim
        qh = qkv[:, lo:lo + head_dim] * scale
        kh = qkv[:, D + lo:D + lo + head_dim]
        vh = qkv[:, 2 * D + lo:2 * D + lo + head_dim]
        # q @ k^T without an explicit transpose (contract the last dims).
        s = lax.dot_general(qh, kh, (((1,), (1,)), ((), ())),
                            preferred_element_type=f32) + mask        # (R, R)
        s = s - jnp.max(s, axis=-1, keepdims=True)
        p = jnp.exp(s)
        p = p * pl.reciprocal(jnp.sum(p, axis=-1, keepdims=True), approx=True)
        oh = jnp.dot(p, vh, preferred_element_type=f32)               # (R, hd)
        # Fold the out-projection into the head loop:
        #   concat_h(oh) @ Wout == sum_h oh @ Wout[h*hd:(h+1)*hd, :]
        attn = attn + jnp.dot(oh, w_out[lo:lo + head_dim, :],
                              preferred_element_type=f32)
    attn = attn + outp_b_ref[...]

    x1 = _layer_norm(seq + attn, n1_g_ref[...], n1_b_ref[...])
    ff = jnp.maximum(jnp.dot(x1, ff1_w_ref[...], preferred_element_type=f32)
                     + ff1_b_ref[...], 0.0)
    ff = jnp.dot(ff, ff2_w_ref[...], preferred_element_type=f32) + ff2_b_ref[...]
    x2 = _layer_norm(x1 + ff, n2_g_ref[...], n2_b_ref[...])          # (R, D)

    # --- bin_out head (the B lidar rows; Dropout = identity in eval) --------
    xb = x2[BH:BH + B, :]                                            # (B, D)
    bh1 = jnp.dot(xb, b1_w_ref[...], preferred_element_type=f32) + b1_b_ref[...]
    bh1 = _layer_norm(bh1, bln_g_ref[...], bln_b_ref[...])
    bh1 = jnp.where(bh1 >= 0.0, bh1, 0.01 * bh1)                     # LeakyReLU
    o_bin_ref[...] = jnp.maximum(
        jnp.dot(bh1, b2_w_ref[...], preferred_element_type=f32), 0.0)

    # --- Width_Linear + out_Conv (block-diag conv, BN scale/shift folded) ---
    xm = x2[0:BH, :]                                                 # (BH, D)
    g = _gelu(jnp.dot(xm, wl_w_ref[...], preferred_element_type=f32)
              + wl_b_ref[...])                                       # (BH, W*D//2)
    o_img_ref[...] = (jnp.dot(g, cblk_w_ref[...], preferred_element_type=f32)
                      + cblk_b_ref[...])                             # (BH, W*C//4)


# ----------------------------------------------------------------------------
# Parameters (deterministic synthetic init; weights stored as (in, out))
# ----------------------------------------------------------------------------
def init_params(key, C, H, W, D, dim_ff, bin_size, lidar_dim):
    ks = iter(jax.random.split(key, 40))

    def rnd(shape, s=0.05):
        return jax.random.normal(next(ks), shape, jnp.float32) * s

    return dict(
        # Patch_Embedding: Conv2d(C, C//2, 1) + GELU
        pe_conv_w=rnd((C, C // 2)), pe_conv_b=rnd((C // 2,)),
        # Patch_Linear
        pl1_w=rnd((C // 2 * W, 2 * D)), pl1_b=rnd((2 * D,)),
        pl2_w=rnd((2 * D, D)), pl2_b=rnd((D,)),
        # Lidar_Embedding: Linear(lidar_dim, D) + GELU
        lid_w=rnd((lidar_dim, D)), lid_b=rnd((D,)),
        # Positional embedding (1, H + 1, 1)
        PE=jax.random.uniform(next(ks), (1, H + 1, 1), jnp.float32),
        # TransformerEncoderLayer (1 layer, post-norm, relu FF)
        in_proj_w=rnd((D, 3 * D)), in_proj_b=rnd((3 * D,)),
        out_proj_w=rnd((D, D)), out_proj_b=rnd((D,)),
        n1_g=1.0 + rnd((D,)), n1_b=rnd((D,)),
        ff1_w=rnd((D, dim_ff)), ff1_b=rnd((dim_ff,)),
        ff2_w=rnd((dim_ff, D)), ff2_b=rnd((D,)),
        n2_g=1.0 + rnd((D,)), n2_b=rnd((D,)),
        # Width_Linear
        width_w=rnd((D, W * D // 2)), width_b=rnd((W * D // 2,)),
        # out_Conv: Conv2d(D//2, C//4, 1, bias=False) + BatchNorm2d (eval)
        conv_out_w=rnd((D // 2, C // 4)),
        bn_g=1.0 + rnd((C // 4,)), bn_b=rnd((C // 4,)),
        bn_mean=rnd((C // 4,)), bn_var=jnp.abs(rnd((C // 4,))) + 1.0,
        # bin_out head
        bin1_w=rnd((D, D)), bin1_b=rnd((D,)),
        bin_ln_g=1.0 + rnd((D,)), bin_ln_b=rnd((D,)),
        bin2_w=rnd((D, bin_size)),
    )


# ----------------------------------------------------------------------------
# Forward pass: wrapper-side layout plumbing + one pallas_call
# ----------------------------------------------------------------------------
def cross_stage_forward(params, img, ld, *, num_head):
    B, C, H, W = img.shape
    D = params["in_proj_w"].shape[0]
    head_dim = D // num_head
    Cc, C4, Dh = C // 2, C // 4, D // 2
    dim_ff = params["ff1_w"].shape[1]
    bin_size = params["bin2_w"].shape[1]
    BH = B * H
    R = BH + B                                      # patch rows + lidar rows
    f32 = jnp.float32

    # -------- wrapper-side layout plumbing (tiny one-shot XLA ops) ----------
    # NCHW image -> (B*H, W*C): one row per patch, pixel columns (w, c) along
    # the lane dim so the whole 1x1 conv is a single block-diagonal matmul.
    img2 = jnp.transpose(img, (0, 2, 3, 1)).reshape(BH, W * C)
    ld2 = ld.reshape(B, -1)

    # Positional embedding replicated to the kernel's row order
    # [patch b=0 h=0..H-1, patch b=1 h=0..H-1, ..., lidar b=0..B-1].
    pe = params["PE"][0, :, 0]                                        # (H+1,)
    pe_rows = jnp.concatenate([jnp.tile(pe[:H], B), jnp.tile(pe[H:], B)])
    pe_full = jnp.broadcast_to(pe_rows[:, None], (R, D)).astype(f32)

    # Block-diagonal additive attention mask: rows of different batches must
    # not attend to each other (keeps the whole batch in one score matrix).
    batch_ids = jnp.concatenate([jnp.repeat(jnp.arange(B), H), jnp.arange(B)])
    mask = jnp.where(batch_ids[:, None] == batch_ids[None, :],
                     0.0, -1e9).astype(f32)

    eye_w = jnp.eye(W, dtype=f32)
    # Patch_Embedding conv as a block-diagonal weight over the W pixel columns.
    pec_w_blk = jnp.kron(eye_w, params["pe_conv_w"])                  # (W*C, W*Cc)
    pec_b_blk = jnp.tile(params["pe_conv_b"], W).reshape(1, W * Cc)
    # Patch_Linear[0] rows permuted from (c, w) feature order to (w, c).
    pl1_w_p = (params["pl1_w"].reshape(Cc, W, 2 * D)
               .transpose(1, 0, 2).reshape(W * Cc, 2 * D))
    # Width_Linear columns permuted from (c, w) feature order to (w, c).
    wl_w_p = (params["width_w"].reshape(D, Dh, W)
              .transpose(0, 2, 1).reshape(D, W * Dh))
    wl_b_p = params["width_b"].reshape(Dh, W).T.reshape(1, W * Dh)
    # out_Conv + eval-BatchNorm folded into one block-diagonal weight + bias.
    inv = lax.rsqrt(params["bn_var"] + 1e-5)
    bn_s = params["bn_g"] * inv
    bn_sh = params["bn_b"] - params["bn_mean"] * bn_s
    cblk_w = jnp.kron(eye_w, params["conv_out_w"] * bn_s[None, :])    # (W*Dh, W*C4)
    cblk_b = jnp.tile(bn_sh, W).reshape(1, W * C4)

    kernel = functools.partial(_cross_stage_kernel, B=B, H=H,
                               num_head=num_head, head_dim=head_dim)
    out2d, bins = pl.pallas_call(
        kernel,
        out_shape=(jax.ShapeDtypeStruct((BH, W * C4), f32),
                   jax.ShapeDtypeStruct((B, bin_size), f32)),
        scratch_shapes=[pltpu.VMEM((R, D), f32)],
    )(img2, ld2, pe_full, mask,
      pec_w_blk, pec_b_blk,
      pl1_w_p, params["pl1_b"].reshape(1, 2 * D),
      params["pl2_w"], params["pl2_b"].reshape(1, D),
      params["lid_w"], params["lid_b"].reshape(1, D),
      params["in_proj_w"], params["in_proj_b"].reshape(1, 3 * D),
      params["out_proj_w"], params["out_proj_b"].reshape(1, D),
      params["n1_g"].reshape(1, D), params["n1_b"].reshape(1, D),
      params["ff1_w"], params["ff1_b"].reshape(1, dim_ff),
      params["ff2_w"], params["ff2_b"].reshape(1, D),
      params["n2_g"].reshape(1, D), params["n2_b"].reshape(1, D),
      wl_w_p, wl_b_p, cblk_w, cblk_b,
      params["bin1_w"], params["bin1_b"].reshape(1, D),
      params["bin_ln_g"].reshape(1, D), params["bin_ln_b"].reshape(1, D),
      params["bin2_w"])

    # (B*H, W*C//4) with cols (w, c4) -> NCHW; wrapper-side transpose of 4 KiB.
    x_out = out2d.reshape(B, H, W, C4).transpose(0, 3, 1, 2)
    return x_out, bins


# ----------------------------------------------------------------------------
if __name__ == "__main__":
    # Small config consistent with the module: f_size=[C, H, W], d_model=D.
    C, H, W = 32, 8, 8
    D, NUM_HEAD, BIN_SIZE, LIDAR_DIM, DIM_FF = 64, 8, 32, 384, 512
    B = 2

    key = jax.random.PRNGKey(0)
    kp, ki, kl = jax.random.split(key, 3)
    params = init_params(kp, C, H, W, D, DIM_FF, BIN_SIZE, LIDAR_DIM)
    img = jax.random.normal(ki, (B, C, H, W), jnp.float32)
    ld = jax.random.normal(kl, (B, 1, LIDAR_DIM), jnp.float32)

    fwd = jax.jit(functools.partial(cross_stage_forward, num_head=NUM_HEAD))
    x_out, bins = fwd(params, img, ld)
    jax.block_until_ready((x_out, bins))

    assert x_out.shape == (B, C // 4, H, W), x_out.shape
    assert bins.shape == (B, BIN_SIZE), bins.shape
    assert bool(jnp.isfinite(x_out).all()) and bool(jnp.isfinite(bins).all())
    print("KERNEL_OK")
</pallas_src>

<mosaic_0001>
module attributes {stable_mosaic.version = 11 : i64} {
  func.func @_cross_stage_kernel(%arg0: memref<16x256xf32, #tpu.memory_space<vmem>>, %arg1: memref<2x384xf32, #tpu.memory_space<vmem>>, %arg2: memref<18x64xf32, #tpu.memory_space<vmem>>, %arg3: memref<18x18xf32, #tpu.memory_space<vmem>>, %arg4: memref<256x128xf32, #tpu.memory_space<vmem>>, %arg5: memref<1x128xf32, #tpu.memory_space<vmem>>, %arg6: memref<128x128xf32, #tpu.memory_space<vmem>>, %arg7: memref<1x128xf32, #tpu.memory_space<vmem>>, %arg8: memref<128x64xf32, #tpu.memory_space<vmem>>, %arg9: memref<1x64xf32, #tpu.memory_space<vmem>>, %arg10: memref<384x64xf32, #tpu.memory_space<vmem>>, %arg11: memref<1x64xf32, #tpu.memory_space<vmem>>, %arg12: memref<64x192xf32, #tpu.memory_space<vmem>>, %arg13: memref<1x192xf32, #tpu.memory_space<vmem>>, %arg14: memref<64x64xf32, #tpu.memory_space<vmem>>, %arg15: memref<1x64xf32, #tpu.memory_space<vmem>>, %arg16: memref<1x64xf32, #tpu.memory_space<vmem>>, %arg17: memref<1x64xf32, #tpu.memory_space<vmem>>, %arg18: memref<64x512xf32, #tpu.memory_space<vmem>>, %arg19: memref<1x512xf32, #tpu.memory_space<vmem>>, %arg20: memref<512x64xf32, #tpu.memory_space<vmem>>, %arg21: memref<1x64xf32, #tpu.memory_space<vmem>>, %arg22: memref<1x64xf32, #tpu.memory_space<vmem>>, %arg23: memref<1x64xf32, #tpu.memory_space<vmem>>, %arg24: memref<64x256xf32, #tpu.memory_space<vmem>>, %arg25: memref<1x256xf32, #tpu.memory_space<vmem>>, %arg26: memref<256x64xf32, #tpu.memory_space<vmem>>, %arg27: memref<1x64xf32, #tpu.memory_space<vmem>>, %arg28: memref<64x64xf32, #tpu.memory_space<vmem>>, %arg29: memref<1x64xf32, #tpu.memory_space<vmem>>, %arg30: memref<1x64xf32, #tpu.memory_space<vmem>>, %arg31: memref<1x64xf32, #tpu.memory_space<vmem>>, %arg32: memref<64x32xf32, #tpu.memory_space<vmem>>, %arg33: memref<16x64xf32, #tpu.memory_space<vmem>>, %arg34: memref<2x32xf32, #tpu.memory_space<vmem>>, %arg35: memref<18x64xf32, #tpu.memory_space<vmem>>) attributes {dimension_semantics = [], scalar_prefetch = 0 : i64, scratch_operands = 1 : i64, tpu.core_type = #tpu.core_type<tc>} {
    %c0 = arith.constant 0 : index
    %c0_0 = arith.constant 0 : index
    %0 = vector.load %arg0[%c0, %c0_0] : memref<16x256xf32, #tpu.memory_space<vmem>>, vector<16x256xf32>
    %c0_1 = arith.constant 0 : index
    %c0_2 = arith.constant 0 : index
    %1 = vector.load %arg4[%c0_1, %c0_2] : memref<256x128xf32, #tpu.memory_space<vmem>>, vector<256x128xf32>
    %cst = arith.constant dense<0.000000e+00> : vector<16x128xf32>
    %2 = tpu.matmul %0, %1, %cst {dimension_numbers = #tpu.dot_dimension_numbers<[1], [0], [0], [1], [0, 0, 1, 1], [], []>} : vector<16x256xf32>, vector<256x128xf32>, vector<16x128xf32> -> vector<16x128xf32>
    %c0_3 = arith.constant 0 : index
    %c0_4 = arith.constant 0 : index
    %3 = vector.load %arg5[%c0_3, %c0_4] : memref<1x128xf32, #tpu.memory_space<vmem>>, vector<1x128xf32>
    %4 = vector.broadcast %3 : vector<1x128xf32> to vector<16x128xf32>
    %5 = arith.addf %2, %4 : vector<16x128xf32>
    %cst_5 = arith.constant 5.000000e-01 : f32
    %6 = vector.broadcast %cst_5 : f32 to vector<16x128xf32>
    %7 = arith.mulf %6, %5 : vector<16x128xf32>
    %cst_6 = arith.constant 4.471500e-02 : f32
    %8 = vector.broadcast %cst_6 : f32 to vector<16x128xf32>
    %9 = arith.mulf %8, %5 : vector<16x128xf32>
    %10 = arith.mulf %9, %5 : vector<16x128xf32>
    %11 = arith.mulf %10, %5 : vector<16x128xf32>
    %12 = arith.addf %5, %11 : vector<16x128xf32>
    %cst_7 = arith.constant 0.797884583 : f32
    %13 = vector.broadcast %cst_7 : f32 to vector<16x128xf32>
    %14 = arith.mulf %13, %12 : vector<16x128xf32>
    %15 = math.tanh %14 : vector<16x128xf32>
    %cst_8 = arith.constant 1.000000e+00 : f32
    %16 = vector.broadcast %cst_8 : f32 to vector<16x128xf32>
    %17 = arith.addf %16, %15 : vector<16x128xf32>
    %18 = arith.mulf %7, %17 : vector<16x128xf32>
    %c0_9 = arith.constant 0 : index
    %c0_10 = arith.constant 0 : index
    %19 = vector.load %arg6[%c0_9, %c0_10] : memref<128x128xf32, #tpu.memory_space<vmem>>, vector<128x128xf32>
    %cst_11 = arith.constant dense<0.000000e+00> : vector<16x128xf32>
    %20 = tpu.matmul %18, %19, %cst_11 {dimension_numbers = #tpu.dot_dimension_numbers<[1], [0], [0], [1], [0, 0, 1, 1], [], []>} : vector<16x128xf32>, vector<128x128xf32>, vector<16x128xf32> -> vector<16x128xf32>
    %c0_12 = arith.constant 0 : index
    %c0_13 = arith.constant 0 : index
    %21 = vector.load %arg7[%c0_12, %c0_13] : memref<1x128xf32, #tpu.memory_space<vmem>>, vector<1x128xf32>
    %22 = vector.broadcast %21 : vector<1x128xf32> to vector<16x128xf32>
    %23 = arith.addf %20, %22 : vector<16x128xf32>
    %cst_14 = arith.constant 5.000000e-01 : f32
    %24 = vector.broadcast %cst_14 : f32 to vector<16x128xf32>
    %25 = arith.mulf %24, %23 : vector<16x128xf32>
    %cst_15 = arith.constant 4.471500e-02 : f32
    %26 = vector.broadcast %cst_15 : f32 to vector<16x128xf32>
    %27 = arith.mulf %26, %23 : vector<16x128xf32>
    %28 = arith.mulf %27, %23 : vector<16x128xf32>
    %29 = arith.mulf %28, %23 : vector<16x128xf32>
    %30 = arith.addf %23, %29 : vector<16x128xf32>
    %cst_16 = arith.constant 0.797884583 : f32
    %31 = vector.broadcast %cst_16 : f32 to vector<16x128xf32>
    %32 = arith.mulf %31, %30 : vector<16x128xf32>
    %33 = math.tanh %32 : vector<16x128xf32>
    %cst_17 = arith.constant 1.000000e+00 : f32
    %34 = vector.broadcast %cst_17 : f32 to vector<16x128xf32>
    %35 = arith.addf %34, %33 : vector<16x128xf32>
    %36 = arith.mulf %25, %35 : vector<16x128xf32>
    %c0_18 = arith.constant 0 : index
    %c0_19 = arith.constant 0 : index
    %37 = vector.load %arg8[%c0_18, %c0_19] : memref<128x64xf32, #tpu.memory_space<vmem>>, vector<128x64xf32>
    %cst_20 = arith.constant dense<0.000000e+00> : vector<16x64xf32>
    %38 = tpu.matmul %36, %37, %cst_20 {dimension_numbers = #tpu.dot_dimension_numbers<[1], [0], [0], [1], [0, 0, 1, 1], [], []>} : vector<16x128xf32>, vector<128x64xf32>, vector<16x64xf32> -> vector<16x64xf32>
    %c0_21 = arith.constant 0 : index
    %c0_22 = arith.constant 0 : index
    %39 = vector.load %arg9[%c0_21, %c0_22] : memref<1x64xf32, #tpu.memory_space<vmem>>, vector<1x64xf32>
    %40 = vector.broadcast %39 : vector<1x64xf32> to vector<16x64xf32>
    %41 = arith.addf %38, %40 : vector<16x64xf32>
    %cst_23 = arith.constant 5.000000e-01 : f32
    %42 = vector.broadcast %cst_23 : f32 to vector<16x64xf32>
    %43 = arith.mulf %42, %41 : vector<16x64xf32>
    %cst_24 = arith.constant 4.471500e-02 : f32
    %44 = vector.broadcast %cst_24 : f32 to vector<16x64xf32>
    %45 = arith.mulf %44, %41 : vector<16x64xf32>
    %46 = arith.mulf %45, %41 : vector<16x64xf32>
    %47 = arith.mulf %46, %41 : vector<16x64xf32>
    %48 = arith.addf %41, %47 : vector<16x64xf32>
    %cst_25 = arith.constant 0.797884583 : f32
    %49 = vector.broadcast %cst_25 : f32 to vector<16x64xf32>
    %50 = arith.mulf %49, %48 : vector<16x64xf32>
    %51 = math.tanh %50 : vector<16x64xf32>
    %cst_26 = arith.constant 1.000000e+00 : f32
    %52 = vector.broadcast %cst_26 : f32 to vector<16x64xf32>
    %53 = arith.addf %52, %51 : vector<16x64xf32>
    %54 = arith.mulf %43, %53 : vector<16x64xf32>
    %c0_27 = arith.constant 0 : index
    %c0_28 = arith.constant 0 : index
    %55 = vector.load %arg1[%c0_27, %c0_28] : memref<2x384xf32, #tpu.memory_space<vmem>>, vector<2x384xf32>
    %c0_29 = arith.constant 0 : index
    %c0_30 = arith.constant 0 : index
    %56 = vector.load %arg10[%c0_29, %c0_30] : memref<384x64xf32, #tpu.memory_space<vmem>>, vector<384x64xf32>
    %cst_31 = arith.constant dense<0.000000e+00> : vector<2x64xf32>
    %57 = tpu.matmul %55, %56, %cst_31 {dimension_numbers = #tpu.dot_dimension_numbers<[1], [0], [0], [1], [0, 0, 1, 1], [], []>} : vector<2x384xf32>, vector<384x64xf32>, vector<2x64xf32> -> vector<2x64xf32>
    %c0_32 = arith.constant 0 : index
    %c0_33 = arith.constant 0 : index
    %58 = vector.load %arg11[%c0_32, %c0_33] : memref<1x64xf32, #tpu.memory_space<vmem>>, vector<1x64xf32>
    %59 = vector.broadcast %58 : vector<1x64xf32> to vector<2x64xf32>
    %60 = arith.addf %57, %59 : vector<2x64xf32>
    %cst_34 = arith.constant 5.000000e-01 : f32
    %61 = vector.broadcast %cst_34 : f32 to vector<2x64xf32>
    %62 = arith.mulf %61, %60 : vector<2x64xf32>
    %cst_35 = arith.constant 4.471500e-02 : f32
    %63 = vector.broadcast %cst_35 : f32 to vector<2x64xf32>
    %64 = arith.mulf %63, %60 : vector<2x64xf32>
    %65 = arith.mulf %64, %60 : vector<2x64xf32>
    %66 = arith.mulf %65, %60 : vector<2x64xf32>
    %67 = arith.addf %60, %66 : vector<2x64xf32>
    %cst_36 = arith.constant 0.797884583 : f32
    %68 = vector.broadcast %cst_36 : f32 to vector<2x64xf32>
    %69 = arith.mulf %68, %67 : vector<2x64xf32>
    %70 = math.tanh %69 : vector<2x64xf32>
    %cst_37 = arith.constant 1.000000e+00 : f32
    %71 = vector.broadcast %cst_37 : f32 to vector<2x64xf32>
    %72 = arith.addf %71, %70 : vector<2x64xf32>
    %73 = arith.mulf %62, %72 : vector<2x64xf32>
    %c0_38 = arith.constant 0 : index
    %c0_39 = arith.constant 0 : index
    %74 = vector.load %arg35[%c0_38, %c0_39] : memref<18x64xf32, #tpu.memory_space<vmem>>, vector<16x64xf32>
    tpu.vector_store %arg35[%c0_38, %c0_39], %54 {strides = array<i32>} : memref<18x64xf32, #tpu.memory_space<vmem>>, vector<16x64xf32>,
    %c16 = arith.constant 16 : index
    %c0_40 = arith.constant 0 : index
    %75 = vector.load %arg35[%c16, %c0_40] : memref<18x64xf32, #tpu.memory_space<vmem>>, vector<2x64xf32>
    tpu.vector_store %arg35[%c16, %c0_40], %73 {strides = array<i32>} : memref<18x64xf32, #tpu.memory_space<vmem>>, vector<2x64xf32>,
    %c0_41 = arith.constant 0 : index
    %c0_42 = arith.constant 0 : index
    %76 = vector.load %arg35[%c0_41, %c0_42] : memref<18x64xf32, #tpu.memory_space<vmem>>, vector<18x64xf32>
    %c0_43 = arith.constant 0 : index
    %c0_44 = arith.constant 0 : index
    %77 = vector.load %arg2[%c0_43, %c0_44] : memref<18x64xf32, #tpu.memory_space<vmem>>, vector<18x64xf32>
    %78 = arith.addf %76, %77 : vector<18x64xf32>
    %c0_45 = arith.constant 0 : index
    %c0_46 = arith.constant 0 : index
    %79 = vector.load %arg12[%c0_45, %c0_46] : memref<64x192xf32, #tpu.memory_space<vmem>>, vector<64x192xf32>
    %cst_47 = arith.constant dense<0.000000e+00> : vector<18x192xf32>
    %80 = tpu.matmul %78, %79, %cst_47 {dimension_numbers = #tpu.dot_dimension_numbers<[1], [0], [0], [1], [0, 0, 1, 1], [], []>} : vector<18x64xf32>, vector<64x192xf32>, vector<18x192xf32> -> vector<18x192xf32>
    %c0_48 = arith.constant 0 : index
    %c0_49 = arith.constant 0 : index
    %81 = vector.load %arg13[%c0_48, %c0_49] : memref<1x192xf32, #tpu.memory_space<vmem>>, vector<1x192xf32>
    %82 = vector.broadcast %81 : vector<1x192xf32> to vector<18x192xf32>
    %83 = arith.addf %80, %82 : vector<18x192xf32>
    %c0_50 = arith.constant 0 : index
    %c0_51 = arith.constant 0 : index
    %84 = vector.load %arg3[%c0_50, %c0_51] : memref<18x18xf32, #tpu.memory_space<vmem>>, vector<18x18xf32>
    %c0_52 = arith.constant 0 : index
    %c0_53 = arith.constant 0 : index
    %85 = vector.load %arg14[%c0_52, %c0_53] : memref<64x64xf32, #tpu.memory_space<vmem>>, vector<64x64xf32>
    %cst_54 = arith.constant 0.000000e+00 : f32
    %86 = vector.broadcast %cst_54 : f32 to vector<18x64xf32>
    %87 = vector.extract_strided_slice %83 {offsets = [0, 0], sizes = [18, 8], strides = [1, 1]} : vector<18x192xf32> to vector<18x8xf32>
    %cst_55 = arith.constant 0.353553385 : f32
    %88 = vector.broadcast %cst_55 : f32 to vector<18x8xf32>
    %89 = arith.mulf %87, %88 : vector<18x8xf32>
    %90 = vector.extract_strided_slice %83 {offsets = [0, 64], sizes = [18, 8], strides = [1, 1]} : vector<18x192xf32> to vector<18x8xf32>
    %91 = vector.extract_strided_slice %83 {offsets = [0, 128], sizes = [18, 8], strides = [1, 1]} : vector<18x192xf32> to vector<18x8xf32>
    %cst_56 = arith.constant dense<0.000000e+00> : vector<18x18xf32>
    %92 = tpu.matmul %89, %90, %cst_56 {dimension_numbers = #tpu.dot_dimension_numbers<[1], [1], [0], [0], [0, 0, 1, 0], [], []>} : vector<18x8xf32>, vector<18x8xf32>, vector<18x18xf32> -> vector<18x18xf32>
    %93 = arith.addf %92, %84 : vector<18x18xf32>
    %cst_57 = arith.constant dense<0xFF800000> : vector<18xf32>
    %94 = vector.multi_reduction <maximumf>, %93, %cst_57 [1] : vector<18x18xf32> to vector<18xf32>
    %95 = vector.shape_cast %94 : vector<18xf32> to vector<18x1xf32>
    %96 = vector.broadcast %95 : vector<18x1xf32> to vector<18x18xf32>
    %97 = arith.subf %93, %96 : vector<18x18xf32>
    %98 = math.exp %97 : vector<18x18xf32>
    %cst_58 = arith.constant dense<0.000000e+00> : vector<18xf32>
    %99 = vector.multi_reduction <add>, %98, %cst_58 [1] : vector<18x18xf32> to vector<18xf32>
    %100 = vector.shape_cast %99 : vector<18xf32> to vector<18x1xf32>
    %101 = tpu.reciprocal %100 {approx = true} : vector<18x1xf32> -> vector<18x1xf32>
    %102 = vector.broadcast %101 : vector<18x1xf32> to vector<18x18xf32>
    %103 = arith.mulf %98, %102 : vector<18x18xf32>
    %cst_59 = arith.constant dense<0.000000e+00> : vector<18x8xf32>
    %104 = tpu.matmul %103, %91, %cst_59 {dimension_numbers = #tpu.dot_dimension_numbers<[1], [0], [0], [1], [0, 0, 1, 1], [], []>} : vector<18x18xf32>, vector<18x8xf32>, vector<18x8xf32> -> vector<18x8xf32>
    %105 = vector.extract_strided_slice %85 {offsets = [0, 0], sizes = [8, 64], strides = [1, 1]} : vector<64x64xf32> to vector<8x64xf32>
    %cst_60 = arith.constant dense<0.000000e+00> : vector<18x64xf32>
    %106 = tpu.matmul %104, %105, %cst_60 {dimension_numbers = #tpu.dot_dimension_numbers<[1], [0], [0], [1], [0, 0, 1, 1], [], []>} : vector<18x8xf32>, vector<8x64xf32>, vector<18x64xf32> -> vector<18x64xf32>
    %107 = arith.addf %86, %106 : vector<18x64xf32>
    %108 = vector.extract_strided_slice %83 {offsets = [0, 8], sizes = [18, 8], strides = [1, 1]} : vector<18x192xf32> to vector<18x8xf32>
    %cst_61 = arith.constant 0.353553385 : f32
    %109 = vector.broadcast %cst_61 : f32 to vector<18x8xf32>
    %110 = arith.mulf %108, %109 : vector<18x8xf32>
    %111 = vector.extract_strided_slice %83 {offsets = [0, 72], sizes = [18, 8], strides = [1, 1]} : vector<18x192xf32> to vector<18x8xf32>
    %112 = vector.extract_strided_slice %83 {offsets = [0, 136], sizes = [18, 8], strides = [1, 1]} : vector<18x192xf32> to vector<18x8xf32>
    %cst_62 = arith.constant dense<0.000000e+00> : vector<18x18xf32>
    %113 = tpu.matmul %110, %111, %cst_62 {dimension_numbers = #tpu.dot_dimension_numbers<[1], [1], [0], [0], [0, 0, 1, 0], [], []>} : vector<18x8xf32>, vector<18x8xf32>, vector<18x18xf32> -> vector<18x18xf32>
    %114 = arith.addf %113, %84 : vector<18x18xf32>
    %cst_63 = arith.constant dense<0xFF800000> : vector<18xf32>
    %115 = vector.multi_reduction <maximumf>, %114, %cst_63 [1] : vector<18x18xf32> to vector<18xf32>
    %116 = vector.shape_cast %115 : vector<18xf32> to vector<18x1xf32>
    %117 = vector.broadcast %116 : vector<18x1xf32> to vector<18x18xf32>
    %118 = arith.subf %114, %117 : vector<18x18xf32>
    %119 = math.exp %118 : vector<18x18xf32>
    %cst_64 = arith.constant dense<0.000000e+00> : vector<18xf32>
    %120 = vector.multi_reduction <add>, %119, %cst_64 [1] : vector<18x18xf32> to vector<18xf32>
    %121 = vector.shape_cast %120 : vector<18xf32> to vector<18x1xf32>
    %122 = tpu.reciprocal %121 {approx = true} : vector<18x1xf32> -> vector<18x1xf32>
    %123 = vector.broadcast %122 : vector<18x1xf32> to vector<18x18xf32>
    %124 = arith.mulf %119, %123 : vector<18x18xf32>
    %cst_65 = arith.constant dense<0.000000e+00> : vector<18x8xf32>
    %125 = tpu.matmul %124, %112, %cst_65 {dimension_numbers = #tpu.dot_dimension_numbers<[1], [0], [0], [1], [0, 0, 1, 1], [], []>} : vector<18x18xf32>, vector<18x8xf32>, vector<18x8xf32> -> vector<18x8xf32>
    %126 = vector.extract_strided_slice %85 {offsets = [8, 0], sizes = [8, 64], strides = [1, 1]} : vector<64x64xf32> to vector<8x64xf32>
    %cst_66 = arith.constant dense<0.000000e+00> : vector<18x64xf32>
    %127 = tpu.matmul %125, %126, %cst_66 {dimension_numbers = #tpu.dot_dimension_numbers<[1], [0], [0], [1], [0, 0, 1, 1], [], []>} : vector<18x8xf32>, vector<8x64xf32>, vector<18x64xf32> -> vector<18x64xf32>
    %128 = arith.addf %107, %127 : vector<18x64xf32>
    %129 = vector.extract_strided_slice %83 {offsets = [0, 16], sizes = [18, 8], strides = [1, 1]} : vector<18x192xf32> to vector<18x8xf32>
    %cst_67 = arith.constant 0.353553385 : f32
    %130 = vector.broadcast %cst_67 : f32 to vector<18x8xf32>
    %131 = arith.mulf %129, %130 : vector<18x8xf32>
    %132 = vector.extract_strided_slice %83 {offsets = [0, 80], sizes = [18, 8], strides = [1, 1]} : vector<18x192xf32> to vector<18x8xf32>
    %133 = vector.extract_strided_slice %83 {offsets = [0, 144], sizes = [18, 8], strides = [1, 1]} : vector<18x192xf32> to vector<18x8xf32>
    %cst_68 = arith.constant dense<0.000000e+00> : vector<18x18xf32>
    %134 = tpu.matmul %131, %132, %cst_68 {dimension_numbers = #tpu.dot_dimension_numbers<[1], [1], [0], [0], [0, 0, 1, 0], [], []>} : vector<18x8xf32>, vector<18x8xf32>, vector<18x18xf32> -> vector<18x18xf32>
    %135 = arith.addf %134, %84 : vector<18x18xf32>
    %cst_69 = arith.constant dense<0xFF800000> : vector<18xf32>
    %136 = vector.multi_reduction <maximumf>, %135, %cst_69 [1] : vector<18x18xf32> to vector<18xf32>
    %137 = vector.shape_cast %136 : vector<18xf32> to vector<18x1xf32>
    %138 = vector.broadcast %137 : vector<18x1xf32> to vector<18x18xf32>
    %139 = arith.subf %135, %138 : vector<18x18xf32>
    %140 = math.exp %139 : vector<18x18xf32>
    %cst_70 = arith.constant dense<0.000000e+00> : vector<18xf32>
    %141 = vector.multi_reduction <add>, %140, %cst_70 [1] : vector<18x18xf32> to vector<18xf32>
    %142 = vector.shape_cast %141 : vector<18xf32> to vector<18x1xf32>
    %143 = tpu.reciprocal %142 {approx = true} : vector<18x1xf32> -> vector<18x1xf32>
    %144 = vector.broadcast %143 : vector<18x1xf32> to vector<18x18xf32>
    %145 = arith.mulf %140, %144 : vector<18x18xf32>
    %cst_71 = arith.constant dense<0.000000e+00> : vector<18x8xf32>
    %146 = tpu.matmul %145, %133, %cst_71 {dimension_numbers = #tpu.dot_dimension_numbers<[1], [0], [0], [1], [0, 0, 1, 1], [], []>} : vector<18x18xf32>, vector<18x8xf32>, vector<18x8xf32> -> vector<18x8xf32>
    %147 = vector.extract_strided_slice %85 {offsets = [16, 0], sizes = [8, 64], strides = [1, 1]} : vector<64x64xf32> to vector<8x64xf32>
    %cst_72 = arith.constant dense<0.000000e+00> : vector<18x64xf32>
    %148 = tpu.matmul %146, %147, %cst_72 {dimension_numbers = #tpu.dot_dimension_numbers<[1], [0], [0], [1], [0, 0, 1, 1], [], []>} : vector<18x8xf32>, vector<8x64xf32>, vector<18x64xf32> -> vector<18x64xf32>
    %149 = arith.addf %128, %148 : vector<18x64xf32>
    %150 = vector.extract_strided_slice %83 {offsets = [0, 24], sizes = [18, 8], strides = [1, 1]} : vector<18x192xf32> to vector<18x8xf32>
    %cst_73 = arith.constant 0.353553385 : f32
    %151 = vector.broadcast %cst_73 : f32 to vector<18x8xf32>
    %152 = arith.mulf %150, %151 : vector<18x8xf32>
    %153 = vector.extract_strided_slice %83 {offsets = [0, 88], sizes = [18, 8], strides = [1, 1]} : vector<18x192xf32> to vector<18x8xf32>
    %154 = vector.extract_strided_slice %83 {offsets = [0, 152], sizes = [18, 8], strides = [1, 1]} : vector<18x192xf32> to vector<18x8xf32>
    %cst_74 = arith.constant dense<0.000000e+00> : vector<18x18xf32>
    %155 = tpu.matmul %152, %153, %cst_74 {dimension_numbers = #tpu.dot_dimension_numbers<[1], [1], [0], [0], [0, 0, 1, 0], [], []>} : vector<18x8xf32>, vector<18x8xf32>, vector<18x18xf32> -> vector<18x18xf32>
    %156 = arith.addf %155, %84 : vector<18x18xf32>
    %cst_75 = arith.constant dense<0xFF800000> : vector<18xf32>
    %157 = vector.multi_reduction <maximumf>, %156, %cst_75 [1] : vector<18x18xf32> to vector<18xf32>
    %158 = vector.shape_cast %157 : vector<18xf32> to vector<18x1xf32>
    %159 = vector.broadcast %158 : vector<18x1xf32> to vector<18x18xf32>
    %160 = arith.subf %156, %159 : vector<18x18xf32>
    %161 = math.exp %160 : vector<18x18xf32>
    %cst_76 = arith.constant dense<0.000000e+00> : vector<18xf32>
    %162 = vector.multi_reduction <add>, %161, %cst_76 [1] : vector<18x18xf32> to vector<18xf32>
    %163 = vector.shape_cast %162 : vector<18xf32> to vector<18x1xf32>
    %164 = tpu.reciprocal %163 {approx = true} : vector<18x1xf32> -> vector<18x1xf32>
    %165 = vector.broadcast %164 : vector<18x1xf32> to vector<18x18xf32>
    %166 = arith.mulf %161, %165 : vector<18x18xf32>
    %cst_77 = arith.constant dense<0.000000e+00> : vector<18x8xf32>
    %167 = tpu.matmul %166, %154, %cst_77 {dimension_numbers = #tpu.dot_dimension_numbers<[1], [0], [0], [1], [0, 0, 1, 1], [], []>} : vector<18x18xf32>, vector<18x8xf32>, vector<18x8xf32> -> vector<18x8xf32>
    %168 = vector.extract_strided_slice %85 {offsets = [24, 0], sizes = [8, 64], strides = [1, 1]} : vector<64x64xf32> to vector<8x64xf32>
    %cst_78 = arith.constant dense<0.000000e+00> : vector<18x64xf32>
    %169 = tpu.matmul %167, %168, %cst_78 {dimension_numbers = #tpu.dot_dimension_numbers<[1], [0], [0], [1], [0, 0, 1, 1], [], []>} : vector<18x8xf32>, vector<8x64xf32>, vector<18x64xf32> -> vector<18x64xf32>
    %170 = arith.addf %149, %169 : vector<18x64xf32>
    %171 = vector.extract_strided_slice %83 {offsets = [0, 32], sizes = [18, 8], strides = [1, 1]} : vector<18x192xf32> to vector<18x8xf32>
    %cst_79 = arith.constant 0.353553385 : f32
    %172 = vector.broadcast %cst_79 : f32 to vector<18x8xf32>
    %173 = arith.mulf %171, %172 : vector<18x8xf32>
    %174 = vector.extract_strided_slice %83 {offsets = [0, 96], sizes = [18, 8], strides = [1, 1]} : vector<18x192xf32> to vector<18x8xf32>
    %175 = vector.extract_strided_slice %83 {offsets = [0, 160], sizes = [18, 8], strides = [1, 1]} : vector<18x192xf32> to vector<18x8xf32>
    %cst_80 = arith.constant dense<0.000000e+00> : vector<18x18xf32>
    %176 = tpu.matmul %173, %174, %cst_80 {dimension_numbers = #tpu.dot_dimension_numbers<[1], [1], [0], [0], [0, 0, 1, 0], [], []>} : vector<18x8xf32>, vector<18x8xf32>, vector<18x18xf32> -> vector<18x18xf32>
    %177 = arith.addf %176, %84 : vector<18x18xf32>
    %cst_81 = arith.constant dense<0xFF800000> : vector<18xf32>
    %178 = vector.multi_reduction <maximumf>, %177, %cst_81 [1] : vector<18x18xf32> to vector<18xf32>
    %179 = vector.shape_cast %178 : vector<18xf32> to vector<18x1xf32>
    %180 = vector.broadcast %179 : vector<18x1xf32> to vector<18x18xf32>
    %181 = arith.subf %177, %180 : vector<18x18xf32>
    %182 = math.exp %181 : vector<18x18xf32>
    %cst_82 = arith.constant dense<0.000000e+00> : vector<18xf32>
    %183 = vector.multi_reduction <add>, %182, %cst_82 [1] : vector<18x18xf32> to vector<18xf32>
    %184 = vector.shape_cast %183 : vector<18xf32> to vector<18x1xf32>
    %185 = tpu.reciprocal %184 {approx = true} : vector<18x1xf32> -> vector<18x1xf32>
    %186 = vector.broadcast %185 : vector<18x1xf32> to vector<18x18xf32>
    %187 = arith.mulf %182, %186 : vector<18x18xf32>
    %cst_83 = arith.constant dense<0.000000e+00> : vector<18x8xf32>
    %188 = tpu.matmul %187, %175, %cst_83 {dimension_numbers = #tpu.dot_dimension_numbers<[1], [0], [0], [1], [0, 0, 1, 1], [], []>} : vector<18x18xf32>, vector<18x8xf32>, vector<18x8xf32> -> vector<18x8xf32>
    %189 = vector.extract_strided_slice %85 {offsets = [32, 0], sizes = [8, 64], strides = [1, 1]} : vector<64x64xf32> to vector<8x64xf32>
    %cst_84 = arith.constant dense<0.000000e+00> : vector<18x64xf32>
    %190 = tpu.matmul %188, %189, %cst_84 {dimension_numbers = #tpu.dot_dimension_numbers<[1], [0], [0], [1], [0, 0, 1, 1], [], []>} : vector<18x8xf32>, vector<8x64xf32>, vector<18x64xf32> -> vector<18x64xf32>
    %191 = arith.addf %170, %190 : vector<18x64xf32>
    %192 = vector.extract_strided_slice %83 {offsets = [0, 40], sizes = [18, 8], strides = [1, 1]} : vector<18x192xf32> to vector<18x8xf32>
    %cst_85 = arith.constant 0.353553385 : f32
    %193 = vector.broadcast %cst_85 : f32 to vector<18x8xf32>
    %194 = arith.mulf %192, %193 : vector<18x8xf32>
    %195 = vector.extract_strided_slice %83 {offsets = [0, 104], sizes = [18, 8], strides = [1, 1]} : vector<18x192xf32> to vector<18x8xf32>
    %196 = vector.extract_strided_slice %83 {offsets = [0, 168], sizes = [18, 8], strides = [1, 1]} : vector<18x192xf32> to vector<18x8xf32>
    %cst_86 = arith.constant dense<0.000000e+00> : vector<18x18xf32>
    %197 = tpu.matmul %194, %195, %cst_86 {dimension_numbers = #tpu.dot_dimension_numbers<[1], [1], [0], [0], [0, 0, 1, 0], [], []>} : vector<18x8xf32>, vector<18x8xf32>, vector<18x18xf32> -> vector<18x18xf32>
    %198 = arith.addf %197, %84 : vector<18x18xf32>
    %cst_87 = arith.constant dense<0xFF800000> : vector<18xf32>
    %199 = vector.multi_reduction <maximumf>, %198, %cst_87 [1] : vector<18x18xf32> to vector<18xf32>
    %200 = vector.shape_cast %199 : vector<18xf32> to vector<18x1xf32>
    %201 = vector.broadcast %200 : vector<18x1xf32> to vector<18x18xf32>
    %202 = arith.subf %198, %201 : vector<18x18xf32>
    %203 = math.exp %202 : vector<18x18xf32>
    %cst_88 = arith.constant dense<0.000000e+00> : vector<18xf32>
    %204 = vector.multi_reduction <add>, %203, %cst_88 [1] : vector<18x18xf32> to vector<18xf32>
    %205 = vector.shape_cast %204 : vector<18xf32> to vector<18x1xf32>
    %206 = tpu.reciprocal %205 {approx = true} : vector<18x1xf32> -> vector<18x1xf32>
    %207 = vector.broadcast %206 : vector<18x1xf32> to vector<18x18xf32>
    %208 = arith.mulf %203, %207 : vector<18x18xf32>
    %cst_89 = arith.constant dense<0.000000e+00> : vector<18x8xf32>
    %209 = tpu.matmul %208, %196, %cst_89 {dimension_numbers = #tpu.dot_dimension_numbers<[1], [0], [0], [1], [0, 0, 1, 1], [], []>} : vector<18x18xf32>, vector<18x8xf32>, vector<18x8xf32> -> vector<18x8xf32>
    %210 = vector.extract_strided_slice %85 {offsets = [40, 0], sizes = [8, 64], strides = [1, 1]} : vector<64x64xf32> to vector<8x64xf32>
    %cst_90 = arith.constant dense<0.000000e+00> : vector<18x64xf32>
    %211 = tpu.matmul %209, %210, %cst_90 {dimension_numbers = #tpu.dot_dimension_numbers<[1], [0], [0], [1], [0, 0, 1, 1], [], []>} : vector<18x8xf32>, vector<8x64xf32>, vector<18x64xf32> -> vector<18x64xf32>
    %212 = arith.addf %191, %211 : vector<18x64xf32>
    %213 = vector.extract_strided_slice %83 {offsets = [0, 48], sizes = [18, 8], strides = [1, 1]} : vector<18x192xf32> to vector<18x8xf32>
    %cst_91 = arith.constant 0.353553385 : f32
    %214 = vector.broadcast %cst_91 : f32 to vector<18x8xf32>
    %215 = arith.mulf %213, %214 : vector<18x8xf32>
    %216 = vector.extract_strided_slice %83 {offsets = [0, 112], sizes = [18, 8], strides = [1, 1]} : vector<18x192xf32> to vector<18x8xf32>
    %217 = vector.extract_strided_slice %83 {offsets = [0, 176], sizes = [18, 8], strides = [1, 1]} : vector<18x192xf32> to vector<18x8xf32>
    %cst_92 = arith.constant dense<0.000000e+00> : vector<18x18xf32>
    %218 = tpu.matmul %215, %216, %cst_92 {dimension_numbers = #tpu.dot_dimension_numbers<[1], [1], [0], [0], [0, 0, 1, 0], [], []>} : vector<18x8xf32>, vector<18x8xf32>, vector<18x18xf32> -> vector<18x18xf32>
    %219 = arith.addf %218, %84 : vector<18x18xf32>
    %cst_93 = arith.constant dense<0xFF800000> : vector<18xf32>
    %220 = vector.multi_reduction <maximumf>, %219, %cst_93 [1] : vector<18x18xf32> to vector<18xf32>
    %221 = vector.shape_cast %220 : vector<18xf32> to vector<18x1xf32>
    %222 = vector.broadcast %221 : vector<18x1xf32> to vector<18x18xf32>
    %223 = arith.subf %219, %222 : vector<18x18xf32>
    %224 = math.exp %223 : vector<18x18xf32>
    %cst_94 = arith.constant dense<0.000000e+00> : vector<18xf32>
    %225 = vector.multi_reduction <add>, %224, %cst_94 [1] : vector<18x18xf32> to vector<18xf32>
    %226 = vector.shape_cast %225 : vector<18xf32> to vector<18x1xf32>
    %227 = tpu.reciprocal %226 {approx = true} : vector<18x1xf32> -> vector<18x1xf32>
    %228 = vector.broadcast %227 : vector<18x1xf32> to vector<18x18xf32>
    %229 = arith.mulf %224, %228 : vector<18x18xf32>
    %cst_95 = arith.constant dense<0.000000e+00> : vector<18x8xf32>
    %230 = tpu.matmul %229, %217, %cst_95 {dimension_numbers = #tpu.dot_dimension_numbers<[1], [0], [0], [1], [0, 0, 1, 1], [], []>} : vector<18x18xf32>, vector<18x8xf32>, vector<18x8xf32> -> vector<18x8xf32>
    %231 = vector.extract_strided_slice %85 {offsets = [48, 0], sizes = [8, 64], strides = [1, 1]} : vector<64x64xf32> to vector<8x64xf32>
    %cst_96 = arith.constant dense<0.000000e+00> : vector<18x64xf32>
    %232 = tpu.matmul %230, %231, %cst_96 {dimension_numbers = #tpu.dot_dimension_numbers<[1], [0], [0], [1], [0, 0, 1, 1], [], []>} : vector<18x8xf32>, vector<8x64xf32>, vector<18x64xf32> -> vector<18x64xf32>
    %233 = arith.addf %212, %232 : vector<18x64xf32>
    %234 = vector.extract_strided_slice %83 {offsets = [0, 56], sizes = [18, 8], strides = [1, 1]} : vector<18x192xf32> to vector<18x8xf32>
    %cst_97 = arith.constant 0.353553385 : f32
    %235 = vector.broadcast %cst_97 : f32 to vector<18x8xf32>
    %236 = arith.mulf %234, %235 : vector<18x8xf32>
    %237 = vector.extract_strided_slice %83 {offsets = [0, 120], sizes = [18, 8], strides = [1, 1]} : vector<18x192xf32> to vector<18x8xf32>
    %238 = vector.extract_strided_slice %83 {offsets = [0, 184], sizes = [18, 8], strides = [1, 1]} : vector<18x192xf32> to vector<18x8xf32>
    %cst_98 = arith.constant dense<0.000000e+00> : vector<18x18xf32>
    %239 = tpu.matmul %236, %237, %cst_98 {dimension_numbers = #tpu.dot_dimension_numbers<[1], [1], [0], [0], [0, 0, 1, 0], [], []>} : vector<18x8xf32>, vector<18x8xf32>, vector<18x18xf32> -> vector<18x18xf32>
    %240 = arith.addf %239, %84 : vector<18x18xf32>
    %cst_99 = arith.constant dense<0xFF800000> : vector<18xf32>
    %241 = vector.multi_reduction <maximumf>, %240, %cst_99 [1] : vector<18x18xf32> to vector<18xf32>
    %242 = vector.shape_cast %241 : vector<18xf32> to vector<18x1xf32>
    %243 = vector.broadcast %242 : vector<18x1xf32> to vector<18x18xf32>
    %244 = arith.subf %240, %243 : vector<18x18xf32>
    %245 = math.exp %244 : vector<18x18xf32>
    %cst_100 = arith.constant dense<0.000000e+00> : vector<18xf32>
    %246 = vector.multi_reduction <add>, %245, %cst_100 [1] : vector<18x18xf32> to vector<18xf32>
    %247 = vector.shape_cast %246 : vector<18xf32> to vector<18x1xf32>
    %248 = tpu.reciprocal %247 {approx = true} : vector<18x1xf32> -> vector<18x1xf32>
    %249 = vector.broadcast %248 : vector<18x1xf32> to vector<18x18xf32>
    %250 = arith.mulf %245, %249 : vector<18x18xf32>
    %cst_101 = arith.constant dense<0.000000e+00> : vector<18x8xf32>
    %251 = tpu.matmul %250, %238, %cst_101 {dimension_numbers = #tpu.dot_dimension_numbers<[1], [0], [0], [1], [0, 0, 1, 1], [], []>} : vector<18x18xf32>, vector<18x8xf32>, vector<18x8xf32> -> vector<18x8xf32>
    %252 = vector.extract_strided_slice %85 {offsets = [56, 0], sizes = [8, 64], strides = [1, 1]} : vector<64x64xf32> to vector<8x64xf32>
    %cst_102 = arith.constant dense<0.000000e+00> : vector<18x64xf32>
    %253 = tpu.matmul %251, %252, %cst_102 {dimension_numbers = #tpu.dot_dimension_numbers<[1], [0], [0], [1], [0, 0, 1, 1], [], []>} : vector<18x8xf32>, vector<8x64xf32>, vector<18x64xf32> -> vector<18x64xf32>
    %254 = arith.addf %233, %253 : vector<18x64xf32>
    %c0_103 = arith.constant 0 : index
    %c0_104 = arith.constant 0 : index
    %255 = vector.load %arg15[%c0_103, %c0_104] : memref<1x64xf32, #tpu.memory_space<vmem>>, vector<1x64xf32>
    %256 = vector.broadcast %255 : vector<1x64xf32> to vector<18x64xf32>
    %257 = arith.addf %254, %256 : vector<18x64xf32>
    %258 = arith.addf %78, %257 : vector<18x64xf32>
    %c0_105 = arith.constant 0 : index
    %c0_106 = arith.constant 0 : index
    %259 = vector.load %arg16[%c0_105, %c0_106] : memref<1x64xf32, #tpu.memory_space<vmem>>, vector<1x64xf32>
    %c0_107 = arith.constant 0 : index
    %c0_108 = arith.constant 0 : index
    %260 = vector.load %arg17[%c0_107, %c0_108] : memref<1x64xf32, #tpu.memory_space<vmem>>, vector<1x64xf32>
    %cst_109 = arith.constant dense<0.000000e+00> : vector<18xf32>
    %261 = vector.multi_reduction <add>, %258, %cst_109 [1] : vector<18x64xf32> to vector<18xf32>
    %262 = vector.shape_cast %261 : vector<18xf32> to vector<18x1xf32>
    %cst_110 = arith.constant 6.400000e+01 : f32
    %263 = vector.broadcast %cst_110 : f32 to vector<18x1xf32>
    %264 = arith.divf %262, %263 : vector<18x1xf32>
    %265 = vector.broadcast %264 : vector<18x1xf32> to vector<18x64xf32>
    %266 = arith.subf %258, %265 : vector<18x64xf32>
    %267 = arith.mulf %266, %266 : vector<18x64xf32>
    %cst_111 = arith.constant dense<0.000000e+00> : vector<18xf32>
    %268 = vector.multi_reduction <add>, %267, %cst_111 [1] : vector<18x64xf32> to vector<18xf32>
    %269 = vector.shape_cast %268 : vector<18xf32> to vector<18x1xf32>
    %cst_112 = arith.constant 6.400000e+01 : f32
    %270 = vector.broadcast %cst_112 : f32 to vector<18x1xf32>
    %271 = arith.divf %269, %270 : vector<18x1xf32>
    %272 = vector.broadcast %264 : vector<18x1xf32> to vector<18x64xf32>
    %273 = arith.subf %258, %272 : vector<18x64xf32>
    %cst_113 = arith.constant 9.99999974E-6 : f32
    %274 = vector.broadcast %cst_113 : f32 to vector<18x1xf32>
    %275 = arith.addf %271, %274 : vector<18x1xf32>
    %276 = math.rsqrt %275 : vector<18x1xf32>
    %277 = vector.broadcast %276 : vector<18x1xf32> to vector<18x64xf32>
    %278 = arith.mulf %273, %277 : vector<18x64xf32>
    %279 = vector.broadcast %259 : vector<1x64xf32> to vector<18x64xf32>
    %280 = arith.mulf %278, %279 : vector<18x64xf32>
    %281 = vector.broadcast %260 : vector<1x64xf32> to vector<18x64xf32>
    %282 = arith.addf %280, %281 : vector<18x64xf32>
    %c0_114 = arith.constant 0 : index
    %c0_115 = arith.constant 0 : index
    %283 = vector.load %arg18[%c0_114, %c0_115] : memref<64x512xf32, #tpu.memory_space<vmem>>, vector<64x512xf32>
    %cst_116 = arith.constant dense<0.000000e+00> : vector<18x512xf32>
    %284 = tpu.matmul %282, %283, %cst_116 {dimension_numbers = #tpu.dot_dimension_numbers<[1], [0], [0], [1], [0, 0, 1, 1], [], []>} : vector<18x64xf32>, vector<64x512xf32>, vector<18x512xf32> -> vector<18x512xf32>
    %c0_117 = arith.constant 0 : index
    %c0_118 = arith.constant 0 : index
    %285 = vector.load %arg19[%c0_117, %c0_118] : memref<1x512xf32, #tpu.memory_space<vmem>>, vector<1x512xf32>
    %286 = vector.broadcast %285 : vector<1x512xf32> to vector<18x512xf32>
    %287 = arith.addf %284, %286 : vector<18x512xf32>
    %cst_119 = arith.constant 0.000000e+00 : f32
    %288 = vector.broadcast %cst_119 : f32 to vector<18x512xf32>
    %289 = arith.maximumf %287, %288 : vector<18x512xf32>
    %c0_120 = arith.constant 0 : index
    %c0_121 = arith.constant 0 : index
    %290 = vector.load %arg20[%c0_120, %c0_121] : memref<512x64xf32, #tpu.memory_space<vmem>>, vector<512x64xf32>
    %cst_122 = arith.constant dense<0.000000e+00> : vector<18x64xf32>
    %291 = tpu.matmul %289, %290, %cst_122 {dimension_numbers = #tpu.dot_dimension_numbers<[1], [0], [0], [1], [0, 0, 1, 1], [], []>} : vector<18x512xf32>, vector<512x64xf32>, vector<18x64xf32> -> vector<18x64xf32>
    %c0_123 = arith.constant 0 : index
    %c0_124 = arith.constant 0 : index
    %292 = vector.load %arg21[%c0_123, %c0_124] : memref<1x64xf32, #tpu.memory_space<vmem>>, vector<1x64xf32>
    %293 = vector.broadcast %292 : vector<1x64xf32> to vector<18x64xf32>
    %294 = arith.addf %291, %293 : vector<18x64xf32>
    %295 = arith.addf %282, %294 : vector<18x64xf32>
    %c0_125 = arith.constant 0 : index
    %c0_126 = arith.constant 0 : index
    %296 = vector.load %arg22[%c0_125, %c0_126] : memref<1x64xf32, #tpu.memory_space<vmem>>, vector<1x64xf32>
    %c0_127 = arith.constant 0 : index
    %c0_128 = arith.constant 0 : index
    %297 = vector.load %arg23[%c0_127, %c0_128] : memref<1x64xf32, #tpu.memory_space<vmem>>, vector<1x64xf32>
    %cst_129 = arith.constant dense<0.000000e+00> : vector<18xf32>
    %298 = vector.multi_reduction <add>, %295, %cst_129 [1] : vector<18x64xf32> to vector<18xf32>
    %299 = vector.shape_cast %298 : vector<18xf32> to vector<18x1xf32>
    %cst_130 = arith.constant 6.400000e+01 : f32
    %300 = vector.broadcast %cst_130 : f32 to vector<18x1xf32>
    %301 = arith.divf %299, %300 : vector<18x1xf32>
    %302 = vector.broadcast %301 : vector<18x1xf32> to vector<18x64xf32>
    %303 = arith.subf %295, %302 : vector<18x64xf32>
    %304 = arith.mulf %303, %303 : vector<18x64xf32>
    %cst_131 = arith.constant dense<0.000000e+00> : vector<18xf32>
    %305 = vector.multi_reduction <add>, %304, %cst_131 [1] : vector<18x64xf32> to vector<18xf32>
    %306 = vector.shape_cast %305 : vector<18xf32> to vector<18x1xf32>
    %cst_132 = arith.constant 6.400000e+01 : f32
    %307 = vector.broadcast %cst_132 : f32 to vector<18x1xf32>
    %308 = arith.divf %306, %307 : vector<18x1xf32>
    %309 = vector.broadcast %301 : vector<18x1xf32> to vector<18x64xf32>
    %310 = arith.subf %295, %309 : vector<18x64xf32>
    %cst_133 = arith.constant 9.99999974E-6 : f32
    %311 = vector.broadcast %cst_133 : f32 to vector<18x1xf32>
    %312 = arith.addf %308, %311 : vector<18x1xf32>
    %313 = math.rsqrt %312 : vector<18x1xf32>
    %314 = vector.broadcast %313 : vector<18x1xf32> to vector<18x64xf32>
    %315 = arith.mulf %310, %314 : vector<18x64xf32>
    %316 = vector.broadcast %296 : vector<1x64xf32> to vector<18x64xf32>
    %317 = arith.mulf %315, %316 : vector<18x64xf32>
    %318 = vector.broadcast %297 : vector<1x64xf32> to vector<18x64xf32>
    %319 = arith.addf %317, %318 : vector<18x64xf32>
    %320 = vector.extract_strided_slice %319 {offsets = [16, 0], sizes = [2, 64], strides = [1, 1]} : vector<18x64xf32> to vector<2x64xf32>
    %c0_134 = arith.constant 0 : index
    %c0_135 = arith.constant 0 : index
    %321 = vector.load %arg28[%c0_134, %c0_135] : memref<64x64xf32, #tpu.memory_space<vmem>>, vector<64x64xf32>
    %cst_136 = arith.constant dense<0.000000e+00> : vector<2x64xf32>
    %322 = tpu.matmul %320, %321, %cst_136 {dimension_numbers = #tpu.dot_dimension_numbers<[1], [0], [0], [1], [0, 0, 1, 1], [], []>} : vector<2x64xf32>, vector<64x64xf32>, vector<2x64xf32> -> vector<2x64xf32>
    %c0_137 = arith.constant 0 : index
    %c0_138 = arith.constant 0 : index
    %323 = vector.load %arg29[%c0_137, %c0_138] : memref<1x64xf32, #tpu.memory_space<vmem>>, vector<1x64xf32>
    %324 = vector.broadcast %323 : vector<1x64xf32> to vector<2x64xf32>
    %325 = arith.addf %322, %324 : vector<2x64xf32>
    %c0_139 = arith.constant 0 : index
    %c0_140 = arith.constant 0 : index
    %326 = vector.load %arg30[%c0_139, %c0_140] : memref<1x64xf32, #tpu.memory_space<vmem>>, vector<1x64xf32>
    %c0_141 = arith.constant 0 : index
    %c0_142 = arith.constant 0 : index
    %327 = vector.load %arg31[%c0_141, %c0_142] : memref<1x64xf32, #tpu.memory_space<vmem>>, vector<1x64xf32>
    %cst_143 = arith.constant dense<0.000000e+00> : vector<2xf32>
    %328 = vector.multi_reduction <add>, %325, %cst_143 [1] : vector<2x64xf32> to vector<2xf32>
    %329 = vector.shape_cast %328 : vector<2xf32> to vector<2x1xf32>
    %cst_144 = arith.constant 6.400000e+01 : f32
    %330 = vector.broadcast %cst_144 : f32 to vector<2x1xf32>
    %331 = arith.divf %329, %330 : vector<2x1xf32>
    %332 = vector.broadcast %331 : vector<2x1xf32> to vector<2x64xf32>
    %333 = arith.subf %325, %332 : vector<2x64xf32>
    %334 = arith.mulf %333, %333 : vector<2x64xf32>
    %cst_145 = arith.constant dense<0.000000e+00> : vector<2xf32>
    %335 = vector.multi_reduction <add>, %334, %cst_145 [1] : vector<2x64xf32> to vector<2xf32>
    %336 = vector.shape_cast %335 : vector<2xf32> to vector<2x1xf32>
    %cst_146 = arith.constant 6.400000e+01 : f32
    %337 = vector.broadcast %cst_146 : f32 to vector<2x1xf32>
    %338 = arith.divf %336, %337 : vector<2x1xf32>
    %339 = vector.broadcast %331 : vector<2x1xf32> to vector<2x64xf32>
    %340 = arith.subf %325, %339 : vector<2x64xf32>
    %cst_147 = arith.constant 9.99999974E-6 : f32
    %341 = vector.broadcast %cst_147 : f32 to vector<2x1xf32>
    %342 = arith.addf %338, %341 : vector<2x1xf32>
    %343 = math.rsqrt %342 : vector<2x1xf32>
    %344 = vector.broadcast %343 : vector<2x1xf32> to vector<2x64xf32>
    %345 = arith.mulf %340, %344 : vector<2x64xf32>
    %346 = vector.broadcast %326 : vector<1x64xf32> to vector<2x64xf32>
    %347 = arith.mulf %345, %346 : vector<2x64xf32>
    %348 = vector.broadcast %327 : vector<1x64xf32> to vector<2x64xf32>
    %349 = arith.addf %347, %348 : vector<2x64xf32>
    %cst_148 = arith.constant 0.000000e+00 : f32
    %350 = vector.broadcast %cst_148 : f32 to vector<2x64xf32>
    %351 = arith.cmpf oge, %349, %350 : vector<2x64xf32>
    %cst_149 = arith.constant 0.00999999977 : f32
    %352 = vector.broadcast %cst_149 : f32 to vector<2x64xf32>
    %353 = arith.mulf %352, %349 : vector<2x64xf32>
    %354 = arith.select %351, %349, %353 : vector<2x64xi1>, vector<2x64xf32>
    %c0_150 = arith.constant 0 : index
    %c0_151 = arith.constant 0 : index
    %355 = vector.load %arg32[%c0_150, %c0_151] : memref<64x32xf32, #tpu.memory_space<vmem>>, vector<64x32xf32>
    %cst_152 = arith.constant dense<0.000000e+00> : vector<2x32xf32>
    %356 = tpu.matmul %354, %355, %cst_152 {dimension_numbers = #tpu.dot_dimension_numbers<[1], [0], [0], [1], [0, 0, 1, 1], [], []>} : vector<2x64xf32>, vector<64x32xf32>, vector<2x32xf32> -> vector<2x32xf32>
    %cst_153 = arith.constant 0.000000e+00 : f32
    %357 = vector.broadcast %cst_153 : f32 to vector<2x32xf32>
    %358 = arith.maximumf %356, %357 : vector<2x32xf32>
    %c0_154 = arith.constant 0 : index
    %c0_155 = arith.constant 0 : index
    %359 = vector.load %arg34[%c0_154, %c0_155] : memref<2x32xf32, #tpu.memory_space<vmem>>, vector<2x32xf32>
    tpu.vector_store %arg34[%c0_154, %c0_155], %358 {strides = array<i32>} : memref<2x32xf32, #tpu.memory_space<vmem>>, vector<2x32xf32>,
    %360 = vector.extract_strided_slice %319 {offsets = [0, 0], sizes = [16, 64], strides = [1, 1]} : vector<18x64xf32> to vector<16x64xf32>
    %c0_156 = arith.constant 0 : index
    %c0_157 = arith.constant 0 : index
    %361 = vector.load %arg24[%c0_156, %c0_157] : memref<64x256xf32, #tpu.memory_space<vmem>>, vector<64x256xf32>
    %cst_158 = arith.constant dense<0.000000e+00> : vector<16x256xf32>
    %362 = tpu.matmul %360, %361, %cst_158 {dimension_numbers = #tpu.dot_dimension_numbers<[1], [0], [0], [1], [0, 0, 1, 1], [], []>} : vector<16x64xf32>, vector<64x256xf32>, vector<16x256xf32> -> vector<16x256xf32>
    %c0_159 = arith.constant 0 : index
    %c0_160 = arith.constant 0 : index
    %363 = vector.load %arg25[%c0_159, %c0_160] : memref<1x256xf32, #tpu.memory_space<vmem>>, vector<1x256xf32>
    %364 = vector.broadcast %363 : vector<1x256xf32> to vector<16x256xf32>
    %365 = arith.addf %362, %364 : vector<16x256xf32>
    %cst_161 = arith.constant 5.000000e-01 : f32
    %366 = vector.broadcast %cst_161 : f32 to vector<16x256xf32>
    %367 = arith.mulf %366, %365 : vector<16x256xf32>
    %cst_162 = arith.constant 4.471500e-02 : f32
    %368 = vector.broadcast %cst_162 : f32 to vector<16x256xf32>
    %369 = arith.mulf %368, %365 : vector<16x256xf32>
    %370 = arith.mulf %369, %365 : vector<16x256xf32>
    %371 = arith.mulf %370, %365 : vector<16x256xf32>
    %372 = arith.addf %365, %371 : vector<16x256xf32>
    %cst_163 = arith.constant 0.797884583 : f32
    %373 = vector.broadcast %cst_163 : f32 to vector<16x256xf32>
    %374 = arith.mulf %373, %372 : vector<16x256xf32>
    %375 = math.tanh %374 : vector<16x256xf32>
    %cst_164 = arith.constant 1.000000e+00 : f32
    %376 = vector.broadcast %cst_164 : f32 to vector<16x256xf32>
    %377 = arith.addf %376, %375 : vector<16x256xf32>
    %378 = arith.mulf %367, %377 : vector<16x256xf32>
    %c0_165 = arith.constant 0 : index
    %c0_166 = arith.constant 0 : index
    %379 = vector.load %arg26[%c0_165, %c0_166] : memref<256x64xf32, #tpu.memory_space<vmem>>, vector<256x64xf32>
    %cst_167 = arith.constant dense<0.000000e+00> : vector<16x64xf32>
    %380 = tpu.matmul %378, %379, %cst_167 {dimension_numbers = #tpu.dot_dimension_numbers<[1], [0], [0], [1], [0, 0, 1, 1], [], []>} : vector<16x256xf32>, vector<256x64xf32>, vector<16x64xf32> -> vector<16x64xf32>
    %c0_168 = arith.constant 0 : index
    %c0_169 = arith.constant 0 : index
    %381 = vector.load %arg27[%c0_168, %c0_169] : memref<1x64xf32, #tpu.memory_space<vmem>>, vector<1x64xf32>
    %382 = vector.broadcast %381 : vector<1x64xf32> to vector<16x64xf32>
    %383 = arith.addf %380, %382 : vector<16x64xf32>
    %c0_170 = arith.constant 0 : index
    %c0_171 = arith.constant 0 : index
    %384 = vector.load %arg33[%c0_170, %c0_171] : memref<16x64xf32, #tpu.memory_space<vmem>>, vector<16x64xf32>
    tpu.vector_store %arg33[%c0_170, %c0_171], %383 {strides = array<i32>} : memref<16x64xf32, #tpu.memory_space<vmem>>, vector<16x64xf32>,
    return
  }
}

</mosaic_0001>

<llo_original>
// kernel: tile.38
$region0: #{tile.38}
  #allocation0 [shape = 's32[1]{0}', space=sflag, size = 0x4, scoped, tag = 'scoped memory for tile.38']
  %s0 = inlined_call_operand.vmem [shape: f32[8], index: 0, kind: input, shape index: {}]
  %s1 = inlined_call_operand.vmem [shape: f32[8,8], index: 1, kind: output, shape index: {}]
  // Predicated region
  $region2: #{tile.38} parent=0 // pred_check
    _
  $region3: #{tile.38} parent=0 // pred_check_branch
    %3 = sbr.rel (0) target = $region5
  $region4: #{tile.38} parent=0 // pred_region
    _
  $region5: #{tile.38} parent=0 // pred_fallthru
    _
  %v4 = vld [vmem:[%s0] ss:$0 sm:$0xff]
  %5 = vst [vmem:[%s1] sm:$0xff] %v4

// kernel: tile.39
$region0: #{tile.39}
  %s0 = inlined_call_operand.vmem [shape: f32[8,8], index: 0, kind: input, shape index: {}]
  %s1 = inlined_call_operand.vmem [shape: f32[1,64], index: 1, kind: output, shape index: {}]
  $region1: #{tile.39} parent=0
    #allocation0 [shape = 'u8[4096]{0}', space=vmem, size = 0x1000, scoped, tag = 'scoped mem for output reshape']
    %v2 = vld [vmem:[%s0] sm:$0x1]
    %vm3 = vcmask 64512
    %4 = vst.msk [vmem:[#allocation0] sm:$0x1] %vm3, %v2
    %s5 = scalar_lea.vmem %s0, 7
    %v6 = vld [vmem:[%s5] sm:$0x1]
    %7 = vrot.lane.b32.xlu0 %v6, 56
    %v8 = vpop.permute.xlu0 %7
    %vm9 = vcmask 523712
    %10 = vst.msk [vmem:[#allocation0] sm:$0x1] %vm9, %v8
    %s11 = scalar_lea.vmem %s0, 6
    %v12 = vld [vmem:[%s11] sm:$0x1]
    %13 = vrot.lane.b32.xlu0 %v12, 48
    %v14 = vpop.permute.xlu0 %13
    %vm15 = vcmask 458112
    %16 = vst.msk [vmem:[#allocation0] sm:$0x1] %vm15, %v14
    %s17 = scalar_lea.vmem %s0, 5
    %v18 = vld [vmem:[%s17] sm:$0x1]
    %19 = vrot.lane.b32.xlu0 %v18, 40
    %v20 = vpop.permute.xlu0 %19
    %vm21 = vcmask 392512
    %22 = vst.msk [vmem:[#allocation0] sm:$0x1] %vm21, %v20
    %s23 = scalar_lea.vmem %s0, 4
    %v24 = vld [vmem:[%s23] sm:$0x1]
    %25 = vrot.lane.b32.xlu0 %v24, 32
    %v26 = vpop.permute.xlu0 %25
    %vm27 = vcmask 326912
    %28 = vst.msk [vmem:[#allocation0] sm:$0x1] %vm27, %v26
    %s29 = scalar_lea.vmem %s0, 3
    %v30 = vld [vmem:[%s29] sm:$0x1]
    %31 = vrot.lane.b32.xlu0 %v30, 24
    %v32 = vpop.permute.xlu0 %31
    %vm33 = vcmask 261312
    %34 = vst.msk [vmem:[#allocation0] sm:$0x1] %vm33, %v32
    %s35 = scalar_lea.vmem %s0, 2
    %v36 = vld [vmem:[%s35] sm:$0x1]
    %37 = vrot.lane.b32.xlu0 %v36, 16
    %v38 = vpop.permute.xlu0 %37
    %vm39 = vcmask 195712
    %40 = vst.msk [vmem:[#allocation0] sm:$0x1] %vm39, %v38
    %s41 = scalar_lea.vmem %s0, 1
    %v42 = vld [vmem:[%s41] sm:$0x1]
    %43 = vrot.lane.b32.xlu0 %v42, 8
    %v44 = vpop.permute.xlu0 %43
    %vm45 = vcmask 130112
    %46 = vst.msk [vmem:[#allocation0] sm:$0x1] %vm45, %v44
    %s48 = sshll.u32 1, 1
    %s49 = ssub.s32 %s48, 1
    %v51 = vld [vmem:[#allocation0] sm:%s49]
    %s52 = sshll.u32 1, 1
    %s53 = ssub.s32 %s52, 1
    %54 = vst [vmem:[%s1] sm:%s53] %v51

// kernel: tile.23
$region0: #{tile.23}
  #allocation0 [shape = 's32[1]{0}', space=sflag, size = 0x4, scoped, tag = 'scoped memory for tile.23']
  %s0 = inlined_call_operand.vmem [shape: f32[8], index: 0, kind: input, shape index: {}]
  %s1 = inlined_call_operand.vmem [shape: f32[2,8], index: 1, kind: output, shape index: {}]
  // Predicated region
  $region2: #{tile.23} parent=0 // pred_check
    _
  $region3: #{tile.23} parent=0 // pred_check_branch
    %3 = sbr.rel (0) target = $region5
  $region4: #{tile.23} parent=0 // pred_region
    _
  $region5: #{tile.23} parent=0 // pred_fallthru
    _
  %v4 = vld [vmem:[%s0] ss:$0 sm:$0xff]
  %5 = vst [vmem:[%s1] sm:$0x3] %v4

// kernel: tile.24
$region0: #{tile.24}
  %s0 = inlined_call_operand.vmem [shape: f32[2,8], index: 0, kind: input, shape index: {}]
  %s1 = inlined_call_operand.vmem [shape: f32[16], index: 1, kind: output, shape index: {}]
  $region1: #{tile.24} parent=0
    #allocation0 [shape = 'u8[4096]{0}', space=vmem, size = 0x1000, scoped, tag = 'scoped mem for output reshape']
    #allocation1 [shape = 'u8[4096]{0}', space=vmem, size = 0x1000, scoped, tag = 'scoped mem for input reshape']
    %s3 = sshll.u32 1, 2
    %s4 = ssub.s32 %s3, 1
    %v5 = vld [vmem:[%s0] sm:%s4]
    %6 = vst [vmem:[#allocation1] sm:%s4] %v5
    %v7 = vld [vmem:[#allocation1] sm:$0x1]
    %vm8 = vcmask 64512
    %9 = vst.msk [vmem:[#allocation0] sm:$0x1] %vm8, %v7
    %s10 = scalar_lea.vmem [#allocation1], 1
    %v11 = vld [vmem:[%s10] sm:$0x1]
    %12 = vrot.lane.b32.xlu0 %v11, 8
    %v13 = vpop.permute.xlu0 %12
    %vm14 = vcmask 130112
    %15 = vst.msk [vmem:[#allocation0] sm:$0x1] %vm14, %v13
    %s17 = sshll.u32 1, 1
    %s18 = ssub.s32 %s17, 1
    %v20 = vld [vmem:[#allocation0] sm:%s18]
    %s21 = sshll.u32 1, 1
    %s22 = ssub.s32 %s21, 1
    %23 = vst [vmem:[%s1] sm:%s22] %v20

// kernel: tile.33
$region0: #{tile.33}
  #allocation0 [shape = 's32[1]{0}', space=sflag, size = 0x4, scoped, tag = 'scoped memory for tile.33']
  %s0 = inlined_call_operand.vmem [shape: f32[16], index: 0, kind: input, shape index: {}]
  %s1 = inlined_call_operand.vmem [shape: f32[8,16], index: 1, kind: output, shape index: {}]
  // Predicated region
  $region2: #{tile.33} parent=0 // pred_check
    _
  $region3: #{tile.33} parent=0 // pred_check_branch
    %3 = sbr.rel (0) target = $region5
  $region4: #{tile.33} parent=0 // pred_region
    _
  $region5: #{tile.33} parent=0 // pred_fallthru
    _
  %v4 = vld [vmem:[%s0] ss:$0 sm:$0xff]
  %5 = vst [vmem:[%s1] sm:$0xff] %v4

// kernel: tile.34
$region0: #{tile.34}
  %s0 = inlined_call_operand.vmem [shape: f32[8,16], index: 0, kind: input, shape index: {}]
  %s1 = inlined_call_operand.vmem [shape: f32[1,128], index: 1, kind: output, shape index: {}]
  $region1: #{tile.34} parent=0
    #allocation0 [shape = 'u8[4096]{0}', space=vmem, size = 0x1000, scoped, tag = 'scoped mem for output reshape']
    %v2 = vld [vmem:[%s0] sm:$0x1]
    %vm3 = vcmask 130048
    %4 = vst.msk [vmem:[#allocation0] sm:$0x1] %vm3, %v2
    %s5 = scalar_lea.vmem %s0, 7
    %v6 = vld [vmem:[%s5] sm:$0x1]
    %7 = vrot.lane.b32.xlu0 %v6, 112
    %v8 = vpop.permute.xlu0 %7
    %vm9 = vcmask 1048448
    %10 = vst.msk [vmem:[#allocation0] sm:$0x1] %vm9, %v8
    %s11 = scalar_lea.vmem %s0, 6
    %v12 = vld [vmem:[%s11] sm:$0x1]
    %13 = vrot.lane.b32.xlu0 %v12, 96
    %v14 = vpop.permute.xlu0 %13
    %vm15 = vcmask 917248
    %16 = vst.msk [vmem:[#allocation0] sm:$0x1] %vm15, %v14
    %s17 = scalar_lea.vmem %s0, 5
    %v18 = vld [vmem:[%s17] sm:$0x1]
    %19 = vrot.lane.b32.xlu0 %v18, 80
    %v20 = vpop.permute.xlu0 %19
    %vm21 = vcmask 786048
    %22 = vst.msk [vmem:[#allocation0] sm:$0x1] %vm21, %v20
    %s23 = scalar_lea.vmem %s0, 4
    %v24 = vld [vmem:[%s23] sm:$0x1]
    %25 = vrot.lane.b32.xlu0 %v24, 64
    %v26 = vpop.permute.xlu0 %25
    %vm27 = vcmask 654848
    %28 = vst.msk [vmem:[#allocation0] sm:$0x1] %vm27, %v26
    %s29 = scalar_lea.vmem %s0, 3
    %v30 = vld [vmem:[%s29] sm:$0x1]
    %31 = vrot.lane.b32.xlu0 %v30, 48
    %v32 = vpop.permute.xlu0 %31
    %vm33 = vcmask 523648
    %34 = vst.msk [vmem:[#allocation0] sm:$0x1] %vm33, %v32
    %s35 = scalar_lea.vmem %s0, 2
    %v36 = vld [vmem:[%s35] sm:$0x1]
    %37 = vrot.lane.b32.xlu0 %v36, 32
    %v38 = vpop.permute.xlu0 %37
    %vm39 = vcmask 392448
    %40 = vst.msk [vmem:[#allocation0] sm:$0x1] %vm39, %v38
    %s41 = scalar_lea.vmem %s0, 1
    %v42 = vld [vmem:[%s41] sm:$0x1]
    %43 = vrot.lane.b32.xlu0 %v42, 16
    %v44 = vpop.permute.xlu0 %43
    %vm45 = vcmask 261248
    %46 = vst.msk [vmem:[#allocation0] sm:$0x1] %vm45, %v44
    %s48 = sshll.u32 1, 1
    %s49 = ssub.s32 %s48, 1
    %v51 = vld [vmem:[#allocation0] sm:%s49]
    %s52 = sshll.u32 1, 1
    %s53 = ssub.s32 %s52, 1
    %54 = vst [vmem:[%s1] sm:%s53] %v51

// kernel: cross_stage_forward.1
$region0: #{cross_stage_forward.1}
  #allocation0 [shape = 'u32[]', space=smem, size = 0x4, offset = 0x4, fixed_abs, tag = 'smem constant byte address 0x4 - core index']
  #allocation1 [shape = 'u32[144,128]{1,0:T(1,128)}', space=vmem, size = 0x12000, scoped, tag = 'internal scratch']
  #allocation2 [shape = 'f32[18,64]{1,0:T(8,128)}', space=vmem, size = 0x3000, scoped, tag = 'scratch operand']
  %s0 = inlined_call_operand.smem [shape: u32[35], index: -1, kind: input, shape index: {}]
  %s1 = sld [smem:[%s0]]
  %s2 = scalar_lea.smem %s0, 1
  %s3 = sld [smem:[%s2]]
  %s4 = scalar_lea.smem %s0, 2
  %s5 = sld [smem:[%s4]]
  %s6 = scalar_lea.smem %s0, 3
  %s7 = sld [smem:[%s6]]
  %s8 = scalar_lea.smem %s0, 4
  %s9 = sld [smem:[%s8]]
  %s10 = scalar_lea.smem %s0, 5
  %s11 = sld [smem:[%s10]]
  %s12 = scalar_lea.smem %s0, 6
  %s13 = sld [smem:[%s12]]
  %s14 = scalar_lea.smem %s0, 7
  %s15 = sld [smem:[%s14]]
  %s16 = scalar_lea.smem %s0, 8
  %s17 = sld [smem:[%s16]]
  %s18 = scalar_lea.smem %s0, 9
  %s19 = sld [smem:[%s18]]
  %s20 = scalar_lea.smem %s0, 10
  %s21 = sld [smem:[%s20]]
  %s22 = scalar_lea.smem %s0, 11
  %s23 = sld [smem:[%s22]]
  %s24 = scalar_lea.smem %s0, 12
  %s25 = sld [smem:[%s24]]
  %s26 = scalar_lea.smem %s0, 13
  %s27 = sld [smem:[%s26]]
  %s28 = scalar_lea.smem %s0, 14
  %s29 = sld [smem:[%s28]]
  %s30 = scalar_lea.smem %s0, 15
  %s31 = sld [smem:[%s30]]
  %s32 = scalar_lea.smem %s0, 16
  %s33 = sld [smem:[%s32]]
  %s34 = scalar_lea.smem %s0, 17
  %s35 = sld [smem:[%s34]]
  %s36 = scalar_lea.smem %s0, 18
  %s37 = sld [smem:[%s36]]
  %s38 = scalar_lea.smem %s0, 19
  %s39 = sld [smem:[%s38]]
  %s40 = scalar_lea.smem %s0, 20
  %s41 = sld [smem:[%s40]]
  %s42 = scalar_lea.smem %s0, 21
  %s43 = sld [smem:[%s42]]
  %s44 = scalar_lea.smem %s0, 22
  %s45 = sld [smem:[%s44]]
  %s46 = scalar_lea.smem %s0, 23
  %s47 = sld [smem:[%s46]]
  %s48 = scalar_lea.smem %s0, 24
  %s49 = sld [smem:[%s48]]
  %s50 = scalar_lea.smem %s0, 25
  %s51 = sld [smem:[%s50]]
  %s52 = scalar_lea.smem %s0, 26
  %s53 = sld [smem:[%s52]]
  %s54 = scalar_lea.smem %s0, 27
  %s55 = sld [smem:[%s54]]
  %s56 = scalar_lea.smem %s0, 28
  %s57 = sld [smem:[%s56]]
  %s58 = scalar_lea.smem %s0, 29
  %s59 = sld [smem:[%s58]]
  %s60 = scalar_lea.smem %s0, 30
  %s61 = sld [smem:[%s60]]
  %s62 = scalar_lea.smem %s0, 31
  %s63 = sld [smem:[%s62]]
  %s64 = scalar_lea.smem %s0, 32
  %s65 = sld [smem:[%s64]]
  %s66 = scalar_lea.smem %s0, 33
  %s67 = sld [smem:[%s66]]
  %s68 = scalar_lea.smem %s0, 34
  %s69 = sld [smem:[%s68]]
  %70 = xla_tuple %s67, %s69
  %s71 = sld [smem:[#allocation0]]
  $region150: #{cross_stage_forward.1} parent=0
    _
  %s73 = ssub.s32 1, %s71
  %s74 = scalar_select 0, %s73, %s71
  $region1: #{cross_stage_forward.1} parent=0
    #allocation3 [shape = 'u8[1024]{0}', space=vmem, size = 0x400, scoped, tag = 'output window, operand 1, single buffered']
    #allocation4 [shape = 's32[1]{0}', space=sflag, size = 0x4, scoped, tag = 'scoped memory for cross_stage_forward.1']
    %75 = vsyncpa [#allocation4], 0
    // Predicated region
    $region2: #{cross_stage_forward.1} parent=1 // pred_check
      _
    $region3: #{cross_stage_forward.1} parent=1 // pred_check_branch
      %77 = sbr.rel (0) target = $region5
    $region4: #{cross_stage_forward.1} parent=1 // pred_region
      _
    $region5: #{cross_stage_forward.1} parent=1 // pred_fallthru
      _
    // Predicated region
    $region6: #{cross_stage_forward.1} parent=1 // pred_check
      _
    $region7: #{cross_stage_forward.1} parent=1 // pred_check_branch
      %79 = sbr.rel (0) target = $region9
    $region8: #{cross_stage_forward.1} parent=1 // pred_region
      _
    $region9: #{cross_stage_forward.1} parent=1 // pred_fallthru
      _
    // Predicated region
    $region10: #{cross_stage_forward.1} parent=1 // pred_check
      _
    $region11: #{cross_stage_forward.1} parent=1 // pred_check_branch
      %81 = sbr.rel (0) target = $region13
    $region12: #{cross_stage_forward.1} parent=1 // pred_region
      _
    $region13: #{cross_stage_forward.1} parent=1 // pred_fallthru
      _
    // Predicated region
    $region14: #{cross_stage_forward.1} parent=1 // pred_check
      _
    $region15: #{cross_stage_forward.1} parent=1 // pred_check_branch
      %83 = sbr.rel (0) target = $region17
    $region16: #{cross_stage_forward.1} parent=1 // pred_region
      _
    $region17: #{cross_stage_forward.1} parent=1 // pred_fallthru
      _
    // Predicated region
    $region18: #{cross_stage_forward.1} parent=1 // pred_check
      _
    $region19: #{cross_stage_forward.1} parent=1 // pred_check_branch
      %85 = sbr.rel (0) target = $region21
    $region20: #{cross_stage_forward.1} parent=1 // pred_region
      _
    $region21: #{cross_stage_forward.1} parent=1 // pred_fallthru
      _
    // Predicated region
    $region22: #{cross_stage_forward.1} parent=1 // pred_check
      _
    $region23: #{cross_stage_forward.1} parent=1 // pred_check_branch
      %87 = sbr.rel (0) target = $region25
    $region24: #{cross_stage_forward.1} parent=1 // pred_region
      _
    $region25: #{cross_stage_forward.1} parent=1 // pred_fallthru
      _
    // Predicated region
    $region26: #{cross_stage_forward.1} parent=1 // pred_check
      _
    $region27: #{cross_stage_forward.1} parent=1 // pred_check_branch
      %89 = sbr.rel (0) target = $region29
    $region28: #{cross_stage_forward.1} parent=1 // pred_region
      _
    $region29: #{cross_stage_forward.1} parent=1 // pred_fallthru
      _
    // Predicated region
    $region30: #{cross_stage_forward.1} parent=1 // pred_check
      _
    $region31: #{cross_stage_forward.1} parent=1 // pred_check_branch
      %91 = sbr.rel (0) target = $region33
    $region32: #{cross_stage_forward.1} parent=1 // pred_region
      _
    $region33: #{cross_stage_forward.1} parent=1 // pred_fallthru
      _
    // Predicated region
    $region34: #{cross_stage_forward.1} parent=1 // pred_check
      _
    $region35: #{cross_stage_forward.1} parent=1 // pred_check_branch
      %93 = sbr.rel (0) target = $region37
    $region36: #{cross_stage_forward.1} parent=1 // pred_region
      _
    $region37: #{cross_stage_forward.1} parent=1 // pred_fallthru
      _
    // Predicated region
    $region38: #{cross_stage_forward.1} parent=1 // pred_check
      _
    $region39: #{cross_stage_forward.1} parent=1 // pred_check_branch
      %95 = sbr.rel (0) target = $region41
    $region40: #{cross_stage_forward.1} parent=1 // pred_region
      _
    $region41: #{cross_stage_forward.1} parent=1 // pred_fallthru
      _
    // Predicated region
    $region42: #{cross_stage_forward.1} parent=1 // pred_check
      _
    $region43: #{cross_stage_forward.1} parent=1 // pred_check_branch
      %97 = sbr.rel (0) target = $region45
    $region44: #{cross_stage_forward.1} parent=1 // pred_region
      _
    $region45: #{cross_stage_forward.1} parent=1 // pred_fallthru
      _
    // Predicated region
    $region46: #{cross_stage_forward.1} parent=1 // pred_check
      _
    $region47: #{cross_stage_forward.1} parent=1 // pred_check_branch
      %99 = sbr.rel (0) target = $region49
    $region48: #{cross_stage_forward.1} parent=1 // pred_region
      _
    $region49: #{cross_stage_forward.1} parent=1 // pred_fallthru
      _
    // Predicated region
    $region50: #{cross_stage_forward.1} parent=1 // pred_check
      _
    $region51: #{cross_stage_forward.1} parent=1 // pred_check_branch
      %101 = sbr.rel (0) target = $region53
    $region52: #{cross_stage_forward.1} parent=1 // pred_region
      _
    $region53: #{cross_stage_forward.1} parent=1 // pred_fallthru
      _
    // Predicated region
    $region54: #{cross_stage_forward.1} parent=1 // pred_check
      _
    $region55: #{cross_stage_forward.1} parent=1 // pred_check_branch
      %103 = sbr.rel (0) target = $region57
    $region56: #{cross_stage_forward.1} parent=1 // pred_region
      _
    $region57: #{cross_stage_forward.1} parent=1 // pred_fallthru
      _
    // Predicated region
    $region58: #{cross_stage_forward.1} parent=1 // pred_check
      _
    $region59: #{cross_stage_forward.1} parent=1 // pred_check_branch
      %105 = sbr.rel (0) target = $region61
    $region60: #{cross_stage_forward.1} parent=1 // pred_region
      _
    $region61: #{cross_stage_forward.1} parent=1 // pred_fallthru
      _
    // Predicated region
    $region62: #{cross_stage_forward.1} parent=1 // pred_check
      _
    $region63: #{cross_stage_forward.1} parent=1 // pred_check_branch
      %107 = sbr.rel (0) target = $region65
    $region64: #{cross_stage_forward.1} parent=1 // pred_region
      _
    $region65: #{cross_stage_forward.1} parent=1 // pred_fallthru
      _
    // Predicated region
    $region66: #{cross_stage_forward.1} parent=1 // pred_check
      _
    $region67: #{cross_stage_forward.1} parent=1 // pred_check_branch
      %109 = sbr.rel (0) target = $region69
    $region68: #{cross_stage_forward.1} parent=1 // pred_region
      _
    $region69: #{cross_stage_forward.1} parent=1 // pred_fallthru
      _
    // Predicated region
    $region70: #{cross_stage_forward.1} parent=1 // pred_check
      _
    $region71: #{cross_stage_forward.1} parent=1 // pred_check_branch
      %111 = sbr.rel (0) target = $region73
    $region72: #{cross_stage_forward.1} parent=1 // pred_region
      _
    $region73: #{cross_stage_forward.1} parent=1 // pred_fallthru
      _
    // Predicated region
    $region74: #{cross_stage_forward.1} parent=1 // pred_check
      _
    $region75: #{cross_stage_forward.1} parent=1 // pred_check_branch
      %113 = sbr.rel (0) target = $region77
    $region76: #{cross_stage_forward.1} parent=1 // pred_region
      _
    $region77: #{cross_stage_forward.1} parent=1 // pred_fallthru
      _
    // Predicated region
    $region78: #{cross_stage_forward.1} parent=1 // pred_check
      _
    $region79: #{cross_stage_forward.1} parent=1 // pred_check_branch
      %115 = sbr.rel (0) target = $region81
    $region80: #{cross_stage_forward.1} parent=1 // pred_region
      _
    $region81: #{cross_stage_forward.1} parent=1 // pred_fallthru
      _
    // Predicated region
    $region82: #{cross_stage_forward.1} parent=1 // pred_check
      _
    $region83: #{cross_stage_forward.1} parent=1 // pred_check_branch
      %117 = sbr.rel (0) target = $region85
    $region84: #{cross_stage_forward.1} parent=1 // pred_region
      _
    $region85: #{cross_stage_forward.1} parent=1 // pred_fallthru
      _
    // Predicated region
    $region86: #{cross_stage_forward.1} parent=1 // pred_check
      _
    $region87: #{cross_stage_forward.1} parent=1 // pred_check_branch
      %119 = sbr.rel (0) target = $region89
    $region88: #{cross_stage_forward.1} parent=1 // pred_region
      _
    $region89: #{cross_stage_forward.1} parent=1 // pred_fallthru
      _
    // Predicated region
    $region90: #{cross_stage_forward.1} parent=1 // pred_check
      _
    $region91: #{cross_stage_forward.1} parent=1 // pred_check_branch
      %121 = sbr.rel (0) target = $region93
    $region92: #{cross_stage_forward.1} parent=1 // pred_region
      _
    $region93: #{cross_stage_forward.1} parent=1 // pred_fallthru
      _
    // Predicated region
    $region94: #{cross_stage_forward.1} parent=1 // pred_check
      _
    $region95: #{cross_stage_forward.1} parent=1 // pred_check_branch
      %123 = sbr.rel (0) target = $region97
    $region96: #{cross_stage_forward.1} parent=1 // pred_region
      _
    $region97: #{cross_stage_forward.1} parent=1 // pred_fallthru
      _
    // Predicated region
    $region98: #{cross_stage_forward.1} parent=1 // pred_check
      _
    $region99: #{cross_stage_forward.1} parent=1 // pred_check_branch
      %125 = sbr.rel (0) target = $region101
    $region100: #{cross_stage_forward.1} parent=1 // pred_region
      _
    $region101: #{cross_stage_forward.1} parent=1 // pred_fallthru
      _
    // Predicated region
    $region102: #{cross_stage_forward.1} parent=1 // pred_check
      _
    $region103: #{cross_stage_forward.1} parent=1 // pred_check_branch
      %127 = sbr.rel (0) target = $region105
    $region104: #{cross_stage_forward.1} parent=1 // pred_region
      _
    $region105: #{cross_stage_forward.1} parent=1 // pred_fallthru
      _
    // Predicated region
    $region106: #{cross_stage_forward.1} parent=1 // pred_check
      _
    $region107: #{cross_stage_forward.1} parent=1 // pred_check_branch
      %129 = sbr.rel (0) target = $region109
    $region108: #{cross_stage_forward.1} parent=1 // pred_region
      _
    $region109: #{cross_stage_forward.1} parent=1 // pred_fallthru
      _
    // Predicated region
    $region110: #{cross_stage_forward.1} parent=1 // pred_check
      _
    $region111: #{cross_stage_forward.1} parent=1 // pred_check_branch
      %131 = sbr.rel (0) target = $region113
    $region112: #{cross_stage_forward.1} parent=1 // pred_region
      _
    $region113: #{cross_stage_forward.1} parent=1 // pred_fallthru
      _
    // Predicated region
    $region114: #{cross_stage_forward.1} parent=1 // pred_check
      _
    $region115: #{cross_stage_forward.1} parent=1 // pred_check_branch
      %133 = sbr.rel (0) target = $region117
    $region116: #{cross_stage_forward.1} parent=1 // pred_region
      _
    $region117: #{cross_stage_forward.1} parent=1 // pred_fallthru
      _
    // Predicated region
    $region118: #{cross_stage_forward.1} parent=1 // pred_check
      _
    $region119: #{cross_stage_forward.1} parent=1 // pred_check_branch
      %135 = sbr.rel (0) target = $region121
    $region120: #{cross_stage_forward.1} parent=1 // pred_region
      _
    $region121: #{cross_stage_forward.1} parent=1 // pred_fallthru
      _
    // Predicated region
    $region122: #{cross_stage_forward.1} parent=1 // pred_check
      _
    $region123: #{cross_stage_forward.1} parent=1 // pred_check_branch
      %137 = sbr.rel (0) target = $region125
    $region124: #{cross_stage_forward.1} parent=1 // pred_region
      _
    $region125: #{cross_stage_forward.1} parent=1 // pred_fallthru
      _
    // Predicated region
    $region126: #{cross_stage_forward.1} parent=1 // pred_check
      _
    $region127: #{cross_stage_forward.1} parent=1 // pred_check_branch
      %139 = sbr.rel (0) target = $region129
    $region128: #{cross_stage_forward.1} parent=1 // pred_region
      _
    $region129: #{cross_stage_forward.1} parent=1 // pred_fallthru
      _
    // Predicated region
    $region130: #{cross_stage_forward.1} parent=1 // pred_check
      _
    $region131: #{cross_stage_forward.1} parent=1 // pred_check_branch
      %141 = sbr.rel (0) target = $region133
    $region132: #{cross_stage_forward.1} parent=1 // pred_region
      _
    $region133: #{cross_stage_forward.1} parent=1 // pred_fallthru
      _
    %v142 = vld [vmem:[%s1] sm:$0xff]
    %v143 = vld [vmem:[%s1 + $0x8] sm:$0xff]
    %v144 = vld [vmem:[%s1 + $0x10] sm:$0xff]
    %v145 = vld [vmem:[%s1 + $0x18] sm:$0xff]
    %v146 = vld [vmem:[%s9] sm:$0xff]
    %v147 = vld [vmem:[%s9 + $0x8] sm:$0xff]
    %v148 = vld [vmem:[%s9 + $0x10] sm:$0xff]
    %v149 = vld [vmem:[%s9 + $0x18] sm:$0xff]
    %v150 = vld [vmem:[%s9 + $0x20] sm:$0xff]
    %v151 = vld [vmem:[%s9 + $0x28] sm:$0xff]
    %v152 = vld [vmem:[%s9 + $0x30] sm:$0xff]
    %v153 = vld [vmem:[%s9 + $0x38] sm:$0xff]
    %v154 = vld [vmem:[%s9 + $0x40] sm:$0xff]
    %v155 = vld [vmem:[%s9 + $0x48] sm:$0xff]
    %v156 = vld [vmem:[%s9 + $0x50] sm:$0xff]
    %v157 = vld [vmem:[%s9 + $0x58] sm:$0xff]
    %v158 = vld [vmem:[%s9 + $0x60] sm:$0xff]
    %v159 = vld [vmem:[%s9 + $0x68] sm:$0xff]
    %v160 = vld [vmem:[%s9 + $0x70] sm:$0xff]
    %v161 = vld [vmem:[%s9 + $0x78] sm:$0xff]
    %v162 = vld [vmem:[%s9 + $0x80] sm:$0xff]
    %v163 = vld [vmem:[%s9 + $0x88] sm:$0xff]
    %v164 = vld [vmem:[%s9 + $0x90] sm:$0xff]
    %v165 = vld [vmem:[%s9 + $0x98] sm:$0xff]
    %v166 = vld [vmem:[%s9 + $0xa0] sm:$0xff]
    %v167 = vld [vmem:[%s9 + $0xa8] sm:$0xff]
    %v168 = vld [vmem:[%s9 + $0xb0] sm:$0xff]
    %v169 = vld [vmem:[%s9 + $0xb8] sm:$0xff]
    %v170 = vld [vmem:[%s9 + $0xc0] sm:$0xff]
    %v171 = vld [vmem:[%s9 + $0xc8] sm:$0xff]
    %v172 = vld [vmem:[%s9 + $0xd0] sm:$0xff]
    %v173 = vld [vmem:[%s9 + $0xd8] sm:$0xff]
    %v174 = vld [vmem:[%s9 + $0xe0] sm:$0xff]
    %v175 = vld [vmem:[%s9 + $0xe8] sm:$0xff]
    %v176 = vld [vmem:[%s9 + $0xf0] sm:$0xff]
    %v177 = vld [vmem:[%s9 + $0xf8] sm:$0xff]
    %v178 = vld [vmem:[%s11] sm:$0x1]
    %v180 = vlaneseq
    %v181 = vshrl.u32 %v180, 7
    %v182 = vsub.s32 0, %v181
    %v183 = vrot.slane %v178, %v182
    %185 = vmatprep.subr.mxu0 0.0
    %186 = vmatpush1.msra.mxu0 %v161
    %187 = vmatprep.subr.mxu0 0.0
    %188 = vmatpush1.msra.mxu0 %v160
    %189 = vmatprep.subr.mxu0 0.0
    %190 = vmatpush1.msra.mxu0 %v159
    %191 = vmatprep.subr.mxu0 0.0
    %192 = vmatpush1.msra.mxu0 %v158
    %193 = vmatprep.subr.mxu0 0.0
    %194 = vmatpush1.msra.mxu0 %v157
    %195 = vmatprep.subr.mxu0 0.0
    %196 = vmatpush1.msra.mxu0 %v156
    %197 = vmatprep.subr.mxu0 0.0
    %198 = vmatpush1.msra.mxu0 %v155
    %199 = vmatprep.subr.mxu0 0.0
    %200 = vmatpush1.msra.mxu0 %v154
    %201 = vmatprep.subr.mxu0 0.0
    %202 = vmatpush1.msra.mxu0 %v153
    %203 = vmatprep.subr.mxu0 0.0
    %204 = vmatpush1.msra.mxu0 %v152
    %205 = vmatprep.subr.mxu0 0.0
    %206 = vmatpush1.msra.mxu0 %v151
    %207 = vmatprep.subr.mxu0 0.0
    %208 = vmatpush1.msra.mxu0 %v150
    %209 = vmatprep.subr.mxu0 0.0
    %210 = vmatpush1.msra.mxu0 %v149
    %211 = vmatprep.subr.mxu0 0.0
    %212 = vmatpush1.msra.mxu0 %v148
    %213 = vmatprep.subr.mxu0 0.0
    %214 = vmatpush1.msra.mxu0 %v147
    %215 = vmatprep.subr.mxu0 0.0
    %216 = vmatpush1.msra.mxu0 %v146
    %217 = vmatprep.subr.mxu0 0.0
    %218 = vmatpush2.msra.mxu0 %v177
    %219 = vmatprep.subr.mxu0 0.0
    %220 = vmatpush2.msra.mxu0 %v176
    %221 = vmatprep.subr.mxu0 0.0
    %222 = vmatpush2.msra.mxu0 %v175
    %223 = vmatprep.subr.mxu0 0.0
    %224 = vmatpush2.msra.mxu0 %v174
    %225 = vmatprep.subr.mxu0 0.0
    %226 = vmatpush2.msra.mxu0 %v173
    %227 = vmatprep.subr.mxu0 0.0
    %228 = vmatpush2.msra.mxu0 %v172
    %229 = vmatprep.subr.mxu0 0.0
    %230 = vmatpush2.msra.mxu0 %v171
    %231 = vmatprep.subr.mxu0 0.0
    %232 = vmatpush2.msra.mxu0 %v170
    %233 = vmatprep.subr.mxu0 0.0
    %234 = vmatpush2.msra.mxu0 %v169
    %235 = vmatprep.subr.mxu0 0.0
    %236 = vmatpush2.msra.mxu0 %v168
    %237 = vmatprep.subr.mxu0 0.0
    %238 = vmatpush2.msra.mxu0 %v167
    %239 = vmatprep.subr.mxu0 0.0
    %240 = vmatpush2.msra.mxu0 %v166
    %241 = vmatprep.subr.mxu0 0.0
    %242 = vmatpush2.msra.mxu0 %v165
    %243 = vmatprep.subr.mxu0 0.0
    %244 = vmatpush2.msra.mxu0 %v164
    %245 = vmatprep.subr.mxu0 0.0
    %246 = vmatpush2.msra.mxu0 %v163
    %247 = vmatprep.subr.mxu0 0.0
    %248 = vmatpush2.msra.mxu0 %v162
    %249 = vmatprep.mubr.f32.mxu0 %v143
    %250 = vmatmul.mubr.f32.gmra.mxu0 %v142
    %v251 = vpop.f32.mrf.mxu0
    %v252 = vadd.f32 %v183, %v251
    %v253 = vpop.f32.mrf.mxu0
    %254 = vmatprep.mubr.f32.mxu0 %v145
    %255 = vmatmul.mubr.f32.gmra.mxu0 %v144
    %v256 = vpop.f32.mrf.mxu0
    %v257 = vadd.f32 %v183, %v256
    %v258 = vpop.f32.mrf.mxu0
    %259 = vdwg.mxu0
    %v260 = vmul.f32 %v252, 0.5
    %v261 = vmul.f32 %v257, 0.5
    %v262 = vmul.f32 %v252, 0.044715
    %v263 = vmul.f32 %v257, 0.044715
    %v264 = vmul.f32 %v262, %v252
    %v265 = vmul.f32 %v263, %v257
    %v266 = vmul.f32 %v264, %v252
    %v267 = vmul.f32 %v265, %v257
    %v268 = vadd.f32 %v252, %v266
    %v269 = vadd.f32 %v257, %v267
    %v270 = vmul.f32 %v268, 0.7978846
    %v271 = vmul.f32 %v269, 0.7978846
    %v272 = vtanh.pop %v270
    %v273 = vtanh.pop %v271
    %v274 = vadd.f32 %v272, 1.0
    %v275 = vadd.f32 %v273, 1.0
    %v276 = vmul.f32 %v260, %v274
    %v277 = vmul.f32 %v261, %v275
    %v278 = vld [vmem:[%s13] sm:$0xff]
    %v279 = vld [vmem:[%s13 + $0x8] sm:$0xff]
    %v280 = vld [vmem:[%s13 + $0x10] sm:$0xff]
    %v281 = vld [vmem:[%s13 + $0x18] sm:$0xff]
    %v282 = vld [vmem:[%s13 + $0x20] sm:$0xff]
    %v283 = vld [vmem:[%s13 + $0x28] sm:$0xff]
    %v284 = vld [vmem:[%s13 + $0x30] sm:$0xff]
    %v285 = vld [vmem:[%s13 + $0x38] sm:$0xff]
    %v286 = vld [vmem:[%s13 + $0x40] sm:$0xff]
    %v287 = vld [vmem:[%s13 + $0x48] sm:$0xff]
    %v288 = vld [vmem:[%s13 + $0x50] sm:$0xff]
    %v289 = vld [vmem:[%s13 + $0x58] sm:$0xff]
    %v290 = vld [vmem:[%s13 + $0x60] sm:$0xff]
    %v291 = vld [vmem:[%s13 + $0x68] sm:$0xff]
    %v292 = vld [vmem:[%s13 + $0x70] sm:$0xff]
    %v293 = vld [vmem:[%s13 + $0x78] sm:$0xff]
    %v294 = vld [vmem:[%s15] sm:$0x1]
    %v296 = vlaneseq
    %v297 = vshrl.u32 %v296, 7
    %v298 = vsub.s32 0, %v297
    %v299 = vrot.slane %v294, %v298
    %301 = vmatprep.subr.mxu0 0.0
    %302 = vmatpush1.msra.mxu0 %v293
    %303 = vmatprep.subr.mxu0 0.0
    %304 = vmatpush1.msra.mxu0 %v292
    %305 = vmatprep.subr.mxu0 0.0
    %306 = vmatpush1.msra.mxu0 %v291
    %307 = vmatprep.subr.mxu0 0.0
    %308 = vmatpush1.msra.mxu0 %v290
    %309 = vmatprep.subr.mxu0 0.0
    %310 = vmatpush1.msra.mxu0 %v289
    %311 = vmatprep.subr.mxu0 0.0
    %312 = vmatpush1.msra.mxu0 %v288
    %313 = vmatprep.subr.mxu0 0.0
    %314 = vmatpush1.msra.mxu0 %v287
    %315 = vmatprep.subr.mxu0 0.0
    %316 = vmatpush1.msra.mxu0 %v286
    %317 = vmatprep.subr.mxu0 0.0
    %318 = vmatpush1.msra.mxu0 %v285
    %319 = vmatprep.subr.mxu0 0.0
    %320 = vmatpush1.msra.mxu0 %v284
    %321 = vmatprep.subr.mxu0 0.0
    %322 = vmatpush1.msra.mxu0 %v283
    %323 = vmatprep.subr.mxu0 0.0
    %324 = vmatpush1.msra.mxu0 %v282
    %325 = vmatprep.subr.mxu0 0.0
    %326 = vmatpush1.msra.mxu0 %v281
    %327 = vmatprep.subr.mxu0 0.0
    %328 = vmatpush1.msra.mxu0 %v280
    %329 = vmatprep.subr.mxu0 0.0
    %330 = vmatpush1.msra.mxu0 %v279
    %331 = vmatprep.subr.mxu0 0.0
    %332 = vmatpush1.msra.mxu0 %v278
    %333 = vmatprep.subr.mxu0 0.0
    %334 = vmatpush2.msra.mxu0 0.0
    %335 = vmatprep.subr.mxu0 0.0
    %336 = vmatpush2.msra.mxu0 0.0
    %337 = vmatprep.subr.mxu0 0.0
    %338 = vmatpush2.msra.mxu0 0.0
    %339 = vmatprep.subr.mxu0 0.0
    %340 = vmatpush2.msra.mxu0 0.0
    %341 = vmatprep.subr.mxu0 0.0
    %342 = vmatpush2.msra.mxu0 0.0
    %343 = vmatprep.subr.mxu0 0.0
    %344 = vmatpush2.msra.mxu0 0.0
    %345 = vmatprep.subr.mxu0 0.0
    %346 = vmatpush2.msra.mxu0 0.0
    %347 = vmatprep.subr.mxu0 0.0
    %348 = vmatpush2.msra.mxu0 0.0
    %349 = vmatprep.subr.mxu0 0.0
    %350 = vmatpush2.msra.mxu0 0.0
    %351 = vmatprep.subr.mxu0 0.0
    %352 = vmatpush2.msra.mxu0 0.0
    %353 = vmatprep.subr.mxu0 0.0
    %354 = vmatpush2.msra.mxu0 0.0
    %355 = vmatprep.subr.mxu0 0.0
    %356 = vmatpush2.msra.mxu0 0.0
    %357 = vmatprep.subr.mxu0 0.0
    %358 = vmatpush2.msra.mxu0 0.0
    %359 = vmatprep.subr.mxu0 0.0
    %360 = vmatpush2.msra.mxu0 0.0
    %361 = vmatprep.subr.mxu0 0.0
    %362 = vmatpush2.msra.mxu0 0.0
    %363 = vmatprep.subr.mxu0 0.0
    %364 = vmatpush2.msra.mxu0 0.0
    %365 = vmatprep.mubr.f32.mxu0 0.0
    %366 = vmatmul.mubr.f32.gmra.mxu0 %v276
    %v367 = vpop.f32.mrf.mxu0
    %v368 = vadd.f32 %v299, %v367
    %v369 = vpop.f32.mrf.mxu0
    %370 = vmatprep.mubr.f32.mxu0 0.0
    %371 = vmatmul.mubr.f32.gmra.mxu0 %v277
    %v372 = vpop.f32.mrf.mxu0
    %v373 = vadd.f32 %v299, %v372
    %v374 = vpop.f32.mrf.mxu0
    %375 = vdwg.mxu0
    %v376 = vmul.f32 %v368, 0.5
    %v377 = vmul.f32 %v373, 0.5
    %v378 = vmul.f32 %v368, 0.044715
    %v379 = vmul.f32 %v373, 0.044715
    %v380 = vmul.f32 %v378, %v368
    %v381 = vmul.f32 %v379, %v373
    %v382 = vmul.f32 %v380, %v368
    %v383 = vmul.f32 %v381, %v373
    %v384 = vadd.f32 %v368, %v382
    %v385 = vadd.f32 %v373, %v383
    %v386 = vmul.f32 %v384, 0.7978846
    %v387 = vmul.f32 %v385, 0.7978846
    %v388 = vtanh.pop %v386
    %v389 = vtanh.pop %v387
    %v390 = vadd.f32 %v388, 1.0
    %v391 = vadd.f32 %v389, 1.0
    %v392 = vmul.f32 %v376, %v390
    %v393 = vmul.f32 %v377, %v391
    %v394 = vld [vmem:[%s17] sm:$0xff]
    %v395 = vld [vmem:[%s17 + $0x8] sm:$0xff]
    %v396 = vld [vmem:[%s17 + $0x10] sm:$0xff]
    %v397 = vld [vmem:[%s17 + $0x18] sm:$0xff]
    %v398 = vld [vmem:[%s17 + $0x20] sm:$0xff]
    %v399 = vld [vmem:[%s17 + $0x28] sm:$0xff]
    %v400 = vld [vmem:[%s17 + $0x30] sm:$0xff]
    %v401 = vld [vmem:[%s17 + $0x38] sm:$0xff]
    %v402 = vld [vmem:[%s17 + $0x40] sm:$0xff]
    %v403 = vld [vmem:[%s17 + $0x48] sm:$0xff]
    %v404 = vld [vmem:[%s17 + $0x50] sm:$0xff]
    %v405 = vld [vmem:[%s17 + $0x58] sm:$0xff]
    %v406 = vld [vmem:[%s17 + $0x60] sm:$0xff]
    %v407 = vld [vmem:[%s17 + $0x68] sm:$0xff]
    %v408 = vld [vmem:[%s17 + $0x70] sm:$0xff]
    %v409 = vld [vmem:[%s17 + $0x78] sm:$0xff]
    %v410 = vld [vmem:[%s19] sm:$0x1]
    %v412 = vlaneseq
    %v413 = vshrl.u32 %v412, 7
    %v414 = vsub.s32 0, %v413
    %v415 = vrot.slane %v410, %v414
    %417 = vmatprep.subr.mxu0 0.0
    %418 = vmatpush1.msra.mxu0 %v409
    %419 = vmatprep.subr.mxu0 0.0
    %420 = vmatpush1.msra.mxu0 %v408
    %421 = vmatprep.subr.mxu0 0.0
    %422 = vmatpush1.msra.mxu0 %v407
    %423 = vmatprep.subr.mxu0 0.0
    %424 = vmatpush1.msra.mxu0 %v406
    %425 = vmatprep.subr.mxu0 0.0
    %426 = vmatpush1.msra.mxu0 %v405
    %427 = vmatprep.subr.mxu0 0.0
    %428 = vmatpush1.msra.mxu0 %v404
    %429 = vmatprep.subr.mxu0 0.0
    %430 = vmatpush1.msra.mxu0 %v403
    %431 = vmatprep.subr.mxu0 0.0
    %432 = vmatpush1.msra.mxu0 %v402
    %433 = vmatprep.subr.mxu0 0.0
    %434 = vmatpush1.msra.mxu0 %v401
    %435 = vmatprep.subr.mxu0 0.0
    %436 = vmatpush1.msra.mxu0 %v400
    %437 = vmatprep.subr.mxu0 0.0
    %438 = vmatpush1.msra.mxu0 %v399
    %439 = vmatprep.subr.mxu0 0.0
    %440 = vmatpush1.msra.mxu0 %v398
    %441 = vmatprep.subr.mxu0 0.0
    %442 = vmatpush1.msra.mxu0 %v397
    %443 = vmatprep.subr.mxu0 0.0
    %444 = vmatpush1.msra.mxu0 %v396
    %445 = vmatprep.subr.mxu0 0.0
    %446 = vmatpush1.msra.mxu0 %v395
    %447 = vmatprep.subr.mxu0 0.0
    %448 = vmatpush1.msra.mxu0 %v394
    %449 = vmatprep.subr.mxu0 0.0
    %450 = vmatpush2.msra.mxu0 0.0
    %451 = vmatprep.subr.mxu0 0.0
    %452 = vmatpush2.msra.mxu0 0.0
    %453 = vmatprep.subr.mxu0 0.0
    %454 = vmatpush2.msra.mxu0 0.0
    %455 = vmatprep.subr.mxu0 0.0
    %456 = vmatpush2.msra.mxu0 0.0
    %457 = vmatprep.subr.mxu0 0.0
    %458 = vmatpush2.msra.mxu0 0.0
    %459 = vmatprep.subr.mxu0 0.0
    %460 = vmatpush2.msra.mxu0 0.0
    %461 = vmatprep.subr.mxu0 0.0
    %462 = vmatpush2.msra.mxu0 0.0
    %463 = vmatprep.subr.mxu0 0.0
    %464 = vmatpush2.msra.mxu0 0.0
    %465 = vmatprep.subr.mxu0 0.0
    %466 = vmatpush2.msra.mxu0 0.0
    %467 = vmatprep.subr.mxu0 0.0
    %468 = vmatpush2.msra.mxu0 0.0
    %469 = vmatprep.subr.mxu0 0.0
    %470 = vmatpush2.msra.mxu0 0.0
    %471 = vmatprep.subr.mxu0 0.0
    %472 = vmatpush2.msra.mxu0 0.0
    %473 = vmatprep.subr.mxu0 0.0
    %474 = vmatpush2.msra.mxu0 0.0
    %475 = vmatprep.subr.mxu0 0.0
    %476 = vmatpush2.msra.mxu0 0.0
    %477 = vmatprep.subr.mxu0 0.0
    %478 = vmatpush2.msra.mxu0 0.0
    %479 = vmatprep.subr.mxu0 0.0
    %480 = vmatpush2.msra.mxu0 0.0
    %481 = vmatprep.mubr.f32.mxu0 0.0
    %482 = vmatmul.mubr.f32.gmra.mxu0 %v392
    %v483 = vpop.f32.mrf.mxu0
    %v484 = vadd.f32 %v415, %v483
    %v485 = vpop.f32.mrf.mxu0
    %486 = vmatprep.mubr.f32.mxu0 0.0
    %487 = vmatmul.mubr.f32.gmra.mxu0 %v393
    %v488 = vpop.f32.mrf.mxu0
    %v489 = vadd.f32 %v415, %v488
    %v490 = vpop.f32.mrf.mxu0
    %491 = vdwg.mxu0
    %v492 = vmul.f32 %v484, 0.5
    %v493 = vmul.f32 %v489, 0.5
    %v494 = vmul.f32 %v484, 0.044715
    %v495 = vmul.f32 %v489, 0.044715
    %v496 = vmul.f32 %v494, %v484
    %v497 = vmul.f32 %v495, %v489
    %v498 = vmul.f32 %v496, %v484
    %v499 = vmul.f32 %v497, %v489
    %v500 = vadd.f32 %v484, %v498
    %v501 = vadd.f32 %v489, %v499
    %v502 = vmul.f32 %v500, 0.7978846
    %v503 = vmul.f32 %v501, 0.7978846
    %v504 = vtanh.pop %v502
    %v505 = vtanh.pop %v503
    %v506 = vadd.f32 %v504, 1.0
    %v507 = vadd.f32 %v505, 1.0
    %v508 = vmul.f32 %v492, %v506
    %v509 = vmul.f32 %v493, %v507
    %v510 = vld [vmem:[%s3] sm:$0x3f]
    %v511 = vld [vmem:[%s21] sm:$0xff]
    %v512 = vld [vmem:[%s21 + $0x8] sm:$0xff]
    %v513 = vld [vmem:[%s21 + $0x10] sm:$0xff]
    %v514 = vld [vmem:[%s21 + $0x18] sm:$0xff]
    %v515 = vld [vmem:[%s21 + $0x20] sm:$0xff]
    %v516 = vld [vmem:[%s21 + $0x28] sm:$0xff]
    %v517 = vld [vmem:[%s21 + $0x30] sm:$0xff]
    %v518 = vld [vmem:[%s21 + $0x38] sm:$0xff]
    %v519 = vld [vmem:[%s21 + $0x40] sm:$0xff]
    %v520 = vld [vmem:[%s21 + $0x48] sm:$0xff]
    %v521 = vld [vmem:[%s21 + $0x50] sm:$0xff]
    %v522 = vld [vmem:[%s21 + $0x58] sm:$0xff]
    %v523 = vld [vmem:[%s21 + $0x60] sm:$0xff]
    %v524 = vld [vmem:[%s21 + $0x68] sm:$0xff]
    %v525 = vld [vmem:[%s21 + $0x70] sm:$0xff]
    %v526 = vld [vmem:[%s21 + $0x78] sm:$0xff]
    %v527 = vld [vmem:[%s21 + $0x80] sm:$0xff]
    %v528 = vld [vmem:[%s21 + $0x88] sm:$0xff]
    %v529 = vld [vmem:[%s21 + $0x90] sm:$0xff]
    %v530 = vld [vmem:[%s21 + $0x98] sm:$0xff]
    %v531 = vld [vmem:[%s21 + $0xa0] sm:$0xff]
    %v532 = vld [vmem:[%s21 + $0xa8] sm:$0xff]
    %v533 = vld [vmem:[%s21 + $0xb0] sm:$0xff]
    %v534 = vld [vmem:[%s21 + $0xb8] sm:$0xff]
    %v535 = vld [vmem:[%s21 + $0xc0] sm:$0xff]
    %v536 = vld [vmem:[%s21 + $0xc8] sm:$0xff]
    %v537 = vld [vmem:[%s21 + $0xd0] sm:$0xff]
    %v538 = vld [vmem:[%s21 + $0xd8] sm:$0xff]
    %v539 = vld [vmem:[%s21 + $0xe0] sm:$0xff]
    %v540 = vld [vmem:[%s21 + $0xe8] sm:$0xff]
    %v541 = vld [vmem:[%s21 + $0xf0] sm:$0xff]
    %v542 = vld [vmem:[%s21 + $0xf8] sm:$0xff]
    %v543 = vld [vmem:[%s21 + $0x100] sm:$0xff]
    %v544 = vld [vmem:[%s21 + $0x108] sm:$0xff]
    %v545 = vld [vmem:[%s21 + $0x110] sm:$0xff]
    %v546 = vld [vmem:[%s21 + $0x118] sm:$0xff]
    %v547 = vld [vmem:[%s21 + $0x120] sm:$0xff]
    %v548 = vld [vmem:[%s21 + $0x128] sm:$0xff]
    %v549 = vld [vmem:[%s21 + $0x130] sm:$0xff]
    %v550 = vld [vmem:[%s21 + $0x138] sm:$0xff]
    %v551 = vld [vmem:[%s21 + $0x140] sm:$0xff]
    %v552 = vld [vmem:[%s21 + $0x148] sm:$0xff]
    %v553 = vld [vmem:[%s21 + $0x150] sm:$0xff]
    %v554 = vld [vmem:[%s21 + $0x158] sm:$0xff]
    %v555 = vld [vmem:[%s21 + $0x160] sm:$0xff]
    %v556 = vld [vmem:[%s21 + $0x168] sm:$0xff]
    %v557 = vld [vmem:[%s21 + $0x170] sm:$0xff]
    %v558 = vld [vmem:[%s21 + $0x178] sm:$0xff]
    %v559 = vld [vmem:[%s23] sm:$0x1]
    %v561 = vlaneseq
    %v562 = vshrl.u32 %v561, 7
    %v563 = vsub.s32 0, %v562
    %v564 = vrot.slane %v559, %v563
    %v567 = vcombine.high %v510, %v510
    %v569 = vunpack.c.l.s4 1983009808
    %v570 = vunpack.c.0.s8 %v569
    %v571 = vlaneseq
    %v572 = vshrl.u32 %v571, 7
    %v573 = vsub.s32 %v570, %v572
    %v574 = vrot.slane %v510, %v573
    %v576 = vunpack.c.l.s4 1983009808
    %v577 = vunpack.c.0.s8 %v576
    %v578 = vlaneseq
    %v579 = vshrl.u32 %v578, 7
    %v580 = vsub.s32 %v577, %v579
    %v581 = vrot.slane %v567, %v580
    %v582 = vcombine.high %v574, %v574
    %586 = vmatprep.subr.mxu0 0.0
    %587 = vmatpush1.msra.mxu0 %v526
    %588 = vmatprep.subr.mxu0 0.0
    %589 = vmatpush1.msra.mxu0 %v525
    %590 = vmatprep.subr.mxu0 0.0
    %591 = vmatpush1.msra.mxu0 %v524
    %592 = vmatprep.subr.mxu0 0.0
    %593 = vmatpush1.msra.mxu0 %v523
    %594 = vmatprep.subr.mxu0 0.0
    %595 = vmatpush1.msra.mxu0 %v522
    %596 = vmatprep.subr.mxu0 0.0
    %597 = vmatpush1.msra.mxu0 %v521
    %598 = vmatprep.subr.mxu0 0.0
    %599 = vmatpush1.msra.mxu0 %v520
    %600 = vmatprep.subr.mxu0 0.0
    %601 = vmatpush1.msra.mxu0 %v519
    %602 = vmatprep.subr.mxu0 0.0
    %603 = vmatpush1.msra.mxu0 %v518
    %604 = vmatprep.subr.mxu0 0.0
    %605 = vmatpush1.msra.mxu0 %v517
    %606 = vmatprep.subr.mxu0 0.0
    %607 = vmatpush1.msra.mxu0 %v516
    %608 = vmatprep.subr.mxu0 0.0
    %609 = vmatpush1.msra.mxu0 %v515
    %610 = vmatprep.subr.mxu0 0.0
    %611 = vmatpush1.msra.mxu0 %v514
    %612 = vmatprep.subr.mxu0 0.0
    %613 = vmatpush1.msra.mxu0 %v513
    %614 = vmatprep.subr.mxu0 0.0
    %615 = vmatpush1.msra.mxu0 %v512
    %616 = vmatprep.subr.mxu0 0.0
    %617 = vmatpush1.msra.mxu0 %v511
    %618 = vmatprep.subr.mxu0 0.0
    %619 = vmatpush2.msra.mxu0 %v542
    %620 = vmatprep.subr.mxu0 0.0
    %621 = vmatpush2.msra.mxu0 %v541
    %622 = vmatprep.subr.mxu0 0.0
    %623 = vmatpush2.msra.mxu0 %v540
    %624 = vmatprep.subr.mxu0 0.0
    %625 = vmatpush2.msra.mxu0 %v539
    %626 = vmatprep.subr.mxu0 0.0
    %627 = vmatpush2.msra.mxu0 %v538
    %628 = vmatprep.subr.mxu0 0.0
    %629 = vmatpush2.msra.mxu0 %v537
    %630 = vmatprep.subr.mxu0 0.0
    %631 = vmatpush2.msra.mxu0 %v536
    %632 = vmatprep.subr.mxu0 0.0
    %633 = vmatpush2.msra.mxu0 %v535
    %634 = vmatprep.subr.mxu0 0.0
    %635 = vmatpush2.msra.mxu0 %v534
    %636 = vmatprep.subr.mxu0 0.0
    %637 = vmatpush2.msra.mxu0 %v533
    %638 = vmatprep.subr.mxu0 0.0
    %639 = vmatpush2.msra.mxu0 %v532
    %640 = vmatprep.subr.mxu0 0.0
    %641 = vmatpush2.msra.mxu0 %v531
    %642 = vmatprep.subr.mxu0 0.0
    %643 = vmatpush2.msra.mxu0 %v530
    %644 = vmatprep.subr.mxu0 0.0
    %645 = vmatpush2.msra.mxu0 %v529
    %646 = vmatprep.subr.mxu0 0.0
    %647 = vmatpush2.msra.mxu0 %v528
    %648 = vmatprep.subr.mxu0 0.0
    %649 = vmatpush2.msra.mxu0 %v527
    %650 = vmatprep.mubr.f32.mxu0 %v582
    %651 = vmatmul.mubr.f32.gmra.mxu0 %v574
    %v652 = vpop.f32.mrf.mxu0
    %v653 = vadd.f32 %v564, %v652
    %v654 = vpop.f32.mrf.mxu0
    %655 = vdwg.mxu0
    %656 = vmatprep.subr.mxu0 0.0
    %657 = vmatpush1.msra.mxu0 %v558
    %658 = vmatprep.subr.mxu0 0.0
    %659 = vmatpush1.msra.mxu0 %v557
    %660 = vmatprep.subr.mxu0 0.0
    %661 = vmatpush1.msra.mxu0 %v556
    %662 = vmatprep.subr.mxu0 0.0
    %663 = vmatpush1.msra.mxu0 %v555
    %664 = vmatprep.subr.mxu0 0.0
    %665 = vmatpush1.msra.mxu0 %v554
    %666 = vmatprep.subr.mxu0 0.0
    %667 = vmatpush1.msra.mxu0 %v553
    %668 = vmatprep.subr.mxu0 0.0
    %669 = vmatpush1.msra.mxu0 %v552
    %670 = vmatprep.subr.mxu0 0.0
    %671 = vmatpush1.msra.mxu0 %v551
    %672 = vmatprep.subr.mxu0 0.0
    %673 = vmatpush1.msra.mxu0 %v550
    %674 = vmatprep.subr.mxu0 0.0
    %675 = vmatpush1.msra.mxu0 %v549
    %676 = vmatprep.subr.mxu0 0.0
    %677 = vmatpush1.msra.mxu0 %v548
    %678 = vmatprep.subr.mxu0 0.0
    %679 = vmatpush1.msra.mxu0 %v547
    %680 = vmatprep.subr.mxu0 0.0
    %681 = vmatpush1.msra.mxu0 %v546
    %682 = vmatprep.subr.mxu0 0.0
    %683 = vmatpush1.msra.mxu0 %v545
    %684 = vmatprep.subr.mxu0 0.0
    %685 = vmatpush1.msra.mxu0 %v544
    %686 = vmatprep.subr.mxu0 0.0
    %687 = vmatpush1.msra.mxu0 %v543
    %688 = vmatprep.subr.mxu0 0.0
    %689 = vmatpush2.msra.mxu0 0.0
    %690 = vmatprep.subr.mxu0 0.0
    %691 = vmatpush2.msra.mxu0 0.0
    %692 = vmatprep.subr.mxu0 0.0
    %693 = vmatpush2.msra.mxu0 0.0
    %694 = vmatprep.subr.mxu0 0.0
    %695 = vmatpush2.msra.mxu0 0.0
    %696 = vmatprep.subr.mxu0 0.0
    %697 = vmatpush2.msra.mxu0 0.0
    %698 = vmatprep.subr.mxu0 0.0
    %699 = vmatpush2.msra.mxu0 0.0
    %700 = vmatprep.subr.mxu0 0.0
    %701 = vmatpush2.msra.mxu0 0.0
    %702 = vmatprep.subr.mxu0 0.0
    %703 = vmatpush2.msra.mxu0 0.0
    %704 = vmatprep.subr.mxu0 0.0
    %705 = vmatpush2.msra.mxu0 0.0
    %706 = vmatprep.subr.mxu0 0.0
    %707 = vmatpush2.msra.mxu0 0.0
    %708 = vmatprep.subr.mxu0 0.0
    %709 = vmatpush2.msra.mxu0 0.0
    %710 = vmatprep.subr.mxu0 0.0
    %711 = vmatpush2.msra.mxu0 0.0
    %712 = vmatprep.subr.mxu0 0.0
    %713 = vmatpush2.msra.mxu0 0.0
    %714 = vmatprep.subr.mxu0 0.0
    %715 = vmatpush2.msra.mxu0 0.0
    %716 = vmatprep.subr.mxu0 0.0
    %717 = vmatpush2.msra.mxu0 0.0
    %718 = vmatprep.subr.mxu0 0.0
    %719 = vmatpush2.msra.mxu0 0.0
    %720 = vmatprep.mubr.f32.mxu0 0.0
    %721 = vmatmul.mubr.f32.gmra.mxu0 %v581
    %v722 = vpop.f32.mrf.mxu0
    %v723 = vadd.f32 %v653, %v722
    %v724 = vpop.f32.mrf.mxu0
    %725 = vdwg.mxu0
    %v726 = vmul.f32 %v723, 0.5
    %v727 = vmul.f32 %v723, 0.044715
    %v728 = vmul.f32 %v727, %v723
    %v729 = vmul.f32 %v728, %v723
    %v730 = vadd.f32 %v723, %v729
    %v731 = vmul.f32 %v730, 0.7978846
    %v732 = vtanh.pop %v731
    %v733 = vadd.f32 %v732, 1.0
    %v734 = vmul.f32 %v726, %v733
    %vm735 = vcmask 523264
    %736 = vst.msk [vmem:[#allocation2] sm:$0xff] %vm735, %v508
    %737 = vst.msk [vmem:[#allocation2 + $0x8] sm:$0xff] %vm735, %v509
    %vm738 = vcmask 517120
    %739 = vst.msk [vmem:[#allocation2 + $0x10] sm:$0x3] %vm738, %v734
    %v740 = vld [vmem:[#allocation2] sm:$0xff]
    %v741 = vld [vmem:[#allocation2 + $0x8] sm:$0xff]
    %v742 = vld [vmem:[#allocation2 + $0x10] sm:$0x3]
    %v743 = vld [vmem:[%s5] sm:$0xff]
    %v744 = vld [vmem:[%s5 + $0x8] sm:$0xff]
    %v745 = vld [vmem:[%s5 + $0x10] sm:$0x3]
    %v746 = vadd.f32 %v740, %v743
    %v747 = vadd.f32 %v741, %v744
    %v748 = vadd.f32 %v742, %v745
    %v749 = vld [vmem:[%s25] sm:$0xff]
    %v750 = vld [vmem:[%s25 + $0x8] sm:$0xff]
    %v751 = vld [vmem:[%s25 + $0x10] sm:$0xff]
    %v752 = vld [vmem:[%s25 + $0x18] sm:$0xff]
    %v753 = vld [vmem:[%s25 + $0x20] sm:$0xff]
    %v754 = vld [vmem:[%s25 + $0x28] sm:$0xff]
    %v755 = vld [vmem:[%s25 + $0x30] sm:$0xff]
    %v756 = vld [vmem:[%s25 + $0x38] sm:$0xff]
    %v757 = vld [vmem:[%s25 + $0x40] sm:$0xff]
    %v758 = vld [vmem:[%s25 + $0x48] sm:$0xff]
    %v759 = vld [vmem:[%s25 + $0x50] sm:$0xff]
    %v760 = vld [vmem:[%s25 + $0x58] sm:$0xff]
    %v761 = vld [vmem:[%s25 + $0x60] sm:$0xff]
    %v762 = vld [vmem:[%s25 + $0x68] sm:$0xff]
    %v763 = vld [vmem:[%s25 + $0x70] sm:$0xff]
    %v764 = vld [vmem:[%s25 + $0x78] sm:$0xff]
    %v765 = vld [vmem:[%s27] sm:$0x3]
    %v767 = vlaneseq
    %v768 = vshrl.u32 %v767, 7
    %v769 = vsub.s32 0, %v768
    %v770 = vrot.slane %v765, %v769
    %v771 = vlaneseq
    %v772 = vshrl.u32 %v771, 7
    %v773 = vsub.s32 1, %v772
    %v774 = vrot.slane %v765, %v773
    %v778 = vsel %vm735, %v746, 0
    %v781 = vsel %vm735, %v747, 0
    %v784 = vsel %vm735, %v748, 0
    %786 = vmatprep.subr.mxu0 0.0
    %787 = vmatpush1.msra.mxu0 0.0
    %788 = vmatprep.subr.mxu0 0.0
    %789 = vmatpush1.msra.mxu0 0.0
    %790 = vmatprep.subr.mxu0 0.0
    %791 = vmatpush1.msra.mxu0 0.0
    %792 = vmatprep.subr.mxu0 0.0
    %793 = vmatpush1.msra.mxu0 0.0
    %794 = vmatprep.subr.mxu0 0.0
    %795 = vmatpush1.msra.mxu0 0.0
    %796 = vmatprep.subr.mxu0 0.0
    %797 = vmatpush1.msra.mxu0 0.0
    %798 = vmatprep.subr.mxu0 0.0
    %799 = vmatpush1.msra.mxu0 0.0
    %800 = vmatprep.subr.mxu0 0.0
    %801 = vmatpush1.msra.mxu0 0.0
    %802 = vmatprep.subr.mxu0 %v764
    %803 = vmatpush1.msra.mxu0 %v763
    %804 = vmatprep.subr.mxu0 %v762
    %805 = vmatpush1.msra.mxu0 %v761
    %806 = vmatprep.subr.mxu0 %v760
    %807 = vmatpush1.msra.mxu0 %v759
    %808 = vmatprep.subr.mxu0 %v758
    %809 = vmatpush1.msra.mxu0 %v757
    %810 = vmatprep.subr.mxu0 %v756
    %811 = vmatpush1.msra.mxu0 %v755
    %812 = vmatprep.subr.mxu0 %v754
    %813 = vmatpush1.msra.mxu0 %v753
    %814 = vmatprep.subr.mxu0 %v752
    %815 = vmatpush1.msra.mxu0 %v751
    %816 = vmatprep.subr.mxu0 %v750
    %817 = vmatpush1.msra.mxu0 %v749
    %818 = vmatprep.subr.mxu0 0.0
    %819 = vmatpush2.msra.mxu0 0.0
    %820 = vmatprep.subr.mxu0 0.0
    %821 = vmatpush2.msra.mxu0 0.0
    %822 = vmatprep.subr.mxu0 0.0
    %823 = vmatpush2.msra.mxu0 0.0
    %824 = vmatprep.subr.mxu0 0.0
    %825 = vmatpush2.msra.mxu0 0.0
    %826 = vmatprep.subr.mxu0 0.0
    %827 = vmatpush2.msra.mxu0 0.0
    %828 = vmatprep.subr.mxu0 0.0
    %829 = vmatpush2.msra.mxu0 0.0
    %830 = vmatprep.subr.mxu0 0.0
    %831 = vmatpush2.msra.mxu0 0.0
    %832 = vmatprep.subr.mxu0 0.0
    %833 = vmatpush2.msra.mxu0 0.0
    %834 = vmatprep.subr.mxu0 0.0
    %835 = vmatpush2.msra.mxu0 0.0
    %836 = vmatprep.subr.mxu0 0.0
    %837 = vmatpush2.msra.mxu0 0.0
    %838 = vmatprep.subr.mxu0 0.0
    %839 = vmatpush2.msra.mxu0 0.0
    %840 = vmatprep.subr.mxu0 0.0
    %841 = vmatpush2.msra.mxu0 0.0
    %842 = vmatprep.subr.mxu0 0.0
    %843 = vmatpush2.msra.mxu0 0.0
    %844 = vmatprep.subr.mxu0 0.0
    %845 = vmatpush2.msra.mxu0 0.0
    %846 = vmatprep.subr.mxu0 0.0
    %847 = vmatpush2.msra.mxu0 0.0
    %848 = vmatprep.subr.mxu0 0.0
    %849 = vmatpush2.msra.mxu0 0.0
    %850 = vmatprep.mubr.f32.mxu0 0.0
    %851 = vmatmul.mubr.f32.gmra.mxu0 %v778
    %v852 = vpop.f32.mrf.mxu0
    %v853 = vadd.f32 %v770, %v852
    %v854 = vpop.f32.mrf.mxu0
    %v855 = vadd.f32 %v774, %v854
    %856 = vmatprep.mubr.f32.mxu0 0.0
    %857 = vmatmul.mubr.f32.gmra.mxu0 %v781
    %v858 = vpop.f32.mrf.mxu0
    %v859 = vadd.f32 %v770, %v858
    %v860 = vpop.f32.mrf.mxu0
    %v861 = vadd.f32 %v774, %v860
    %862 = vmatprep.mubr.f32.mxu0 0.0
    %863 = vmatmul.mubr.f32.gmra.mxu0 %v784
    %v864 = vpop.f32.mrf.mxu0
    %v865 = vadd.f32 %v770, %v864
    %v866 = vpop.f32.mrf.mxu0
    %v867 = vadd.f32 %v774, %v866
    %868 = vdwg.mxu0
    %v869 = vld [vmem:[%s7] sm:$0xff]
    %v870 = vld [vmem:[%s7 + $0x8] sm:$0xff]
    %v871 = vld [vmem:[%s7 + $0x10] sm:$0x3]
    %v872 = vld [vmem:[%s29] sm:$0xff]
    %v873 = vld [vmem:[%s29 + $0x8] sm:$0xff]
    %v874 = vld [vmem:[%s29 + $0x10] sm:$0xff]
    %v875 = vld [vmem:[%s29 + $0x18] sm:$0xff]
    %v876 = vld [vmem:[%s29 + $0x20] sm:$0xff]
    %v877 = vld [vmem:[%s29 + $0x28] sm:$0xff]
    %v878 = vld [vmem:[%s29 + $0x30] sm:$0xff]
    %v879 = vld [vmem:[%s29 + $0x38] sm:$0xff]
    %v880 = vmul.f32 %v853, 0.35355338
    %v881 = vmul.f32 %v859, 0.35355338
    %v882 = vmul.f32 %v865, 0.35355338
    %886 = vrot.lane.b32.xlu0 %v853, 64
    %v887 = vpop.permute.xlu0 %886
    %888 = vrot.lane.b32.xlu0 %v859, 64
    %v889 = vpop.permute.xlu0 %888
    %890 = vrot.lane.b32.xlu0 %v865, 64
    %v891 = vpop.permute.xlu0 %890
    %vm892 = vcmask 64512
    %v894 = vsel %vm892, %v880, 0
    %v897 = vsel %vm892, %v881, 0
    %v900 = vsel %vm892, %v882, 0
    %v902 = vsel %vm892, %v887, 0
    %v904 = vsel %vm892, %v889, 0
    %v906 = vsel %vm892, %v891, 0
    %908 = vmatprep.subr.mxu0 0.0
    %909 = vmatpush1.xpose.msra.mxu0 0.0
    %910 = vmatprep.subr.mxu0 0.0
    %911 = vmatpush1.xpose.msra.mxu0 0.0
    %912 = vmatprep.subr.mxu0 0.0
    %913 = vmatpush1.xpose.msra.mxu0 0.0
    %914 = vmatprep.subr.mxu0 0.0
    %915 = vmatpush1.xpose.msra.mxu0 0.0
    %916 = vmatprep.subr.mxu0 0.0
    %917 = vmatpush1.xpose.msra.mxu0 0.0
    %918 = vmatprep.subr.mxu0 0.0
    %919 = vmatpush1.xpose.msra.mxu0 0.0
    %920 = vmatprep.subr.mxu0 0.0
    %921 = vmatpush1.xpose.msra.mxu0 0.0
    %922 = vmatprep.subr.mxu0 0.0
    %923 = vmatpush1.xpose.msra.mxu0 0.0
    %924 = vmatprep.subr.mxu0 0.0
    %925 = vmatpush1.xpose.msra.mxu0 0.0
    %926 = vmatprep.subr.mxu0 0.0
    %927 = vmatpush1.xpose.msra.mxu0 0.0
    %928 = vmatprep.subr.mxu0 0.0
    %929 = vmatpush1.xpose.msra.mxu0 0.0
    %930 = vmatprep.subr.mxu0 0.0
    %931 = vmatpush1.xpose.msra.mxu0 0.0
    %932 = vmatprep.subr.mxu0 0.0
    %933 = vmatpush1.xpose.msra.mxu0 0.0
    %934 = vmatprep.subr.mxu0 0.0
    %935 = vmatpush1.xpose.msra.mxu0 %v906
    %936 = vmatprep.subr.mxu0 0.0
    %937 = vmatpush1.xpose.msra.mxu0 %v904
    %938 = vmatprep.subr.mxu0 0.0
    %939 = vmatpush1.xpose.msra.mxu0 %v902
    %940 = vmatprep.subr.mxu0 0.0
    %941 = vmatpush2.xpose.msra.mxu0 0.0
    %942 = vmatprep.subr.mxu0 0.0
    %943 = vmatpush2.xpose.msra.mxu0 0.0
    %944 = vmatprep.subr.mxu0 0.0
    %945 = vmatpush2.xpose.msra.mxu0 0.0
    %946 = vmatprep.subr.mxu0 0.0
    %947 = vmatpush2.xpose.msra.mxu0 0.0
    %948 = vmatprep.subr.mxu0 0.0
    %949 = vmatpush2.xpose.msra.mxu0 0.0
    %950 = vmatprep.subr.mxu0 0.0
    %951 = vmatpush2.xpose.msra.mxu0 0.0
    %952 = vmatprep.subr.mxu0 0.0
    %953 = vmatpush2.xpose.msra.mxu0 0.0
    %954 = vmatprep.subr.mxu0 0.0
    %955 = vmatpush2.xpose.msra.mxu0 0.0
    %956 = vmatprep.subr.mxu0 0.0
    %957 = vmatpush2.xpose.msra.mxu0 0.0
    %958 = vmatprep.subr.mxu0 0.0
    %959 = vmatpush2.xpose.msra.mxu0 0.0
    %960 = vmatprep.subr.mxu0 0.0
    %961 = vmatpush2.xpose.msra.mxu0 0.0
    %962 = vmatprep.subr.mxu0 0.0
    %963 = vmatpush2.xpose.msra.mxu0 0.0
    %964 = vmatprep.subr.mxu0 0.0
    %965 = vmatpush2.xpose.msra.mxu0 0.0
    %966 = vmatprep.subr.mxu0 0.0
    %967 = vmatpush2.xpose.msra.mxu0 0.0
    %968 = vmatprep.subr.mxu0 0.0
    %969 = vmatpush2.xpose.msra.mxu0 0.0
    %970 = vmatprep.subr.mxu0 0.0
    %971 = vmatpush2.xpose.msra.mxu0 0.0
    %972 = vmatprep.mubr.f32.mxu0 0.0
    %973 = vmatmul.mubr.f32.gmra.mxu0 %v894
    %v974 = vpop.f32.mrf.mxu0
    %v975 = vadd.f32 %v869, %v974
    %v976 = vpop.f32.mrf.mxu0
    %977 = vmatprep.mubr.f32.mxu0 0.0
    %978 = vmatmul.mubr.f32.gmra.mxu0 %v897
    %v979 = vpop.f32.mrf.mxu0
    %v980 = vadd.f32 %v870, %v979
    %v981 = vpop.f32.mrf.mxu0
    %982 = vmatprep.mubr.f32.mxu0 0.0
    %983 = vmatmul.mubr.f32.gmra.mxu0 %v900
    %v984 = vpop.f32.mrf.mxu0
    %v985 = vadd.f32 %v871, %v984
    %v986 = vpop.f32.mrf.mxu0
    %987 = vdwg.mxu0
    %vm988 = vcmask 146432
    %v989 = vsel %vm988, %v975, -inf
    %990 = vmax.xlane.f32.xlu0 %v989
    %v991 = vpop.xlane.xlu0 %990
    %v992 = vsel %vm988, %v980, -inf
    %993 = vmax.xlane.f32.xlu0 %v992
    %v994 = vpop.xlane.xlu0 %993
    %vm995 = vcmask 140288
    %v996 = vsel %vm995, %v985, -inf
    %997 = vmax.xlane.f32.xlu0 %v996
    %v998 = vpop.xlane.xlu0 %997
    %v999 = vsub.f32 %v975, %v991
    %v1000 = vsub.f32 %v980, %v994
    %v1001 = vsub.f32 %v985, %v998
    %v1002 = vmul.f32 %v999, 1.442695
    %v1003 = vpow.pop %v1002
    %v1004 = vmul.f32 %v1000, 1.442695
    %v1005 = vpow.pop %v1004
    %v1006 = vmul.f32 %v1001, 1.442695
    %v1007 = vpow.pop %v1006
    %v1008 = vsel %vm988, %v1003, 0.0
    %1009 = vadd.xlane.f32.xlu0 %v1008
    %v1010 = vpop.xlane.xlu0 %1009
    %v1011 = vsel %vm988, %v1005, 0.0
    %1012 = vadd.xlane.f32.xlu0 %v1011
    %v1013 = vpop.xlane.xlu0 %1012
    %v1014 = vsel %vm995, %v1007, 0.0
    %1015 = vadd.xlane.f32.xlu0 %v1014
    %v1016 = vpop.xlane.xlu0 %1015
    %v1017 = vrcp.pop %v1010
    %v1018 = vrcp.pop %v1013
    %v1019 = vrcp.pop %v1016
    %v1020 = vmul.f32 %v1003, %v1017
    %v1021 = vmul.f32 %v1005, %v1018
    %v1022 = vmul.f32 %v1007, %v1019
    %v1024 = vsel %vm988, %v1020, 0
    %v1027 = vsel %vm988, %v1021, 0
    %v1030 = vsel %vm988, %v1022, 0
    %vm1032 = vcmask 1041408
    %v1034 = vsel %vm1032, %v867, 0
    %1036 = vmatprep.subr.mxu0 0.0
    %1037 = vmatpush1.msra.mxu0 0.0
    %1038 = vmatprep.subr.mxu0 0.0
    %1039 = vmatpush1.msra.mxu0 0.0
    %1040 = vmatprep.subr.mxu0 0.0
    %1041 = vmatpush1.msra.mxu0 0.0
    %1042 = vmatprep.subr.mxu0 0.0
    %1043 = vmatpush1.msra.mxu0 0.0
    %1044 = vmatprep.subr.mxu0 0.0
    %1045 = vmatpush1.msra.mxu0 0.0
    %1046 = vmatprep.subr.mxu0 0.0
    %1047 = vmatpush1.msra.mxu0 0.0
    %1048 = vmatprep.subr.mxu0 0.0
    %1049 = vmatpush1.msra.mxu0 0.0
    %1050 = vmatprep.subr.mxu0 0.0
    %1051 = vmatpush1.msra.mxu0 0.0
    %1052 = vmatprep.subr.mxu0 0.0
    %1053 = vmatpush1.msra.mxu0 0.0
    %1054 = vmatprep.subr.mxu0 0.0
    %1055 = vmatpush1.msra.mxu0 0.0
    %1056 = vmatprep.subr.mxu0 0.0
    %1057 = vmatpush1.msra.mxu0 0.0
    %1058 = vmatprep.subr.mxu0 0.0
    %1059 = vmatpush1.msra.mxu0 0.0
    %1060 = vmatprep.subr.mxu0 0.0
    %1061 = vmatpush1.msra.mxu0 0.0
    %1062 = vmatprep.subr.mxu0 0.0
    %1063 = vmatpush1.msra.mxu0 %v1034
    %1064 = vmatprep.subr.mxu0 0.0
    %1065 = vmatpush1.msra.mxu0 %v861
    %1066 = vmatprep.subr.mxu0 0.0
    %1067 = vmatpush1.msra.mxu0 %v855
    %1068 = vmatprep.subr.mxu0 0.0
    %1069 = vmatpush2.msra.mxu0 0.0
    %1070 = vmatprep.subr.mxu0 0.0
    %1071 = vmatpush2.msra.mxu0 0.0
    %1072 = vmatprep.subr.mxu0 0.0
    %1073 = vmatpush2.msra.mxu0 0.0
    %1074 = vmatprep.subr.mxu0 0.0
    %1075 = vmatpush2.msra.mxu0 0.0
    %1076 = vmatprep.subr.mxu0 0.0
    %1077 = vmatpush2.msra.mxu0 0.0
    %1078 = vmatprep.subr.mxu0 0.0
    %1079 = vmatpush2.msra.mxu0 0.0
    %1080 = vmatprep.subr.mxu0 0.0
    %1081 = vmatpush2.msra.mxu0 0.0
    %1082 = vmatprep.subr.mxu0 0.0
    %1083 = vmatpush2.msra.mxu0 0.0
    %1084 = vmatprep.subr.mxu0 0.0
    %1085 = vmatpush2.msra.mxu0 0.0
    %1086 = vmatprep.subr.mxu0 0.0
    %1087 = vmatpush2.msra.mxu0 0.0
    %1088 = vmatprep.subr.mxu0 0.0
    %1089 = vmatpush2.msra.mxu0 0.0
    %1090 = vmatprep.subr.mxu0 0.0
    %1091 = vmatpush2.msra.mxu0 0.0
    %1092 = vmatprep.subr.mxu0 0.0
    %1093 = vmatpush2.msra.mxu0 0.0
    %1094 = vmatprep.subr.mxu0 0.0
    %1095 = vmatpush2.msra.mxu0 0.0
    %1096 = vmatprep.subr.mxu0 0.0
    %1097 = vmatpush2.msra.mxu0 0.0
    %1098 = vmatprep.subr.mxu0 0.0
    %1099 = vmatpush2.msra.mxu0 0.0
    %1100 = vmatprep.mubr.f32.mxu0 0.0
    %1101 = vmatmul.mubr.f32.gmra.mxu0 %v1024
    %v1102 = vpop.f32.mrf.mxu0
    %v1103 = vadd.f32 0.0, %v1102
    %v1104 = vpop.f32.mrf.mxu0
    %1105 = vmatprep.mubr.f32.mxu0 0.0
    %1106 = vmatmul.mubr.f32.gmra.mxu0 %v1027
    %v1107 = vpop.f32.mrf.mxu0
    %v1108 = vadd.f32 0.0, %v1107
    %v1109 = vpop.f32.mrf.mxu0
    %1110 = vmatprep.mubr.f32.mxu0 0.0
    %1111 = vmatmul.mubr.f32.gmra.mxu0 %v1030
    %v1112 = vpop.f32.mrf.mxu0
    %v1113 = vadd.f32 0.0, %v1112
    %v1114 = vpop.f32.mrf.mxu0
    %1115 = vdwg.mxu0
    %1116 = vrot.lane.b32.xlu0 %v880, 120
    %v1117 = vpop.permute.xlu0 %1116
    %1118 = vrot.lane.b32.xlu0 %v881, 120
    %v1119 = vpop.permute.xlu0 %1118
    %1120 = vrot.lane.b32.xlu0 %v882, 120
    %v1121 = vpop.permute.xlu0 %1120
    %1122 = vrot.lane.b32.xlu0 %v853, 56
    %v1123 = vpop.permute.xlu0 %1122
    %1124 = vrot.lane.b32.xlu0 %v859, 56
    %v1125 = vpop.permute.xlu0 %1124
    %1126 = vrot.lane.b32.xlu0 %v865, 56
    %v1127 = vpop.permute.xlu0 %1126
    %v1128 = vsel %vm892, %v1117, 0
    %v1130 = vsel %vm892, %v1119, 0
    %v1132 = vsel %vm892, %v1121, 0
    %v1134 = vsel %vm892, %v1123, 0
    %v1136 = vsel %vm892, %v1125, 0
    %v1138 = vsel %vm892, %v1127, 0
    %1140 = vmatprep.subr.mxu0 0.0
    %1141 = vmatpush1.xpose.msra.mxu0 0.0
    %1142 = vmatprep.subr.mxu0 0.0
    %1143 = vmatpush1.xpose.msra.mxu0 0.0
    %1144 = vmatprep.subr.mxu0 0.0
    %1145 = vmatpush1.xpose.msra.mxu0 0.0
    %1146 = vmatprep.subr.mxu0 0.0
    %1147 = vmatpush1.xpose.msra.mxu0 0.0
    %1148 = vmatprep.subr.mxu0 0.0
    %1149 = vmatpush1.xpose.msra.mxu0 0.0
    %1150 = vmatprep.subr.mxu0 0.0
    %1151 = vmatpush1.xpose.msra.mxu0 0.0
    %1152 = vmatprep.subr.mxu0 0.0
    %1153 = vmatpush1.xpose.msra.mxu0 0.0
    %1154 = vmatprep.subr.mxu0 0.0
    %1155 = vmatpush1.xpose.msra.mxu0 0.0
    %1156 = vmatprep.subr.mxu0 0.0
    %1157 = vmatpush1.xpose.msra.mxu0 0.0
    %1158 = vmatprep.subr.mxu0 0.0
    %1159 = vmatpush1.xpose.msra.mxu0 0.0
    %1160 = vmatprep.subr.mxu0 0.0
    %1161 = vmatpush1.xpose.msra.mxu0 0.0
    %1162 = vmatprep.subr.mxu0 0.0
    %1163 = vmatpush1.xpose.msra.mxu0 0.0
    %1164 = vmatprep.subr.mxu0 0.0
    %1165 = vmatpush1.xpose.msra.mxu0 0.0
    %1166 = vmatprep.subr.mxu0 0.0
    %1167 = vmatpush1.xpose.msra.mxu0 %v1138
    %1168 = vmatprep.subr.mxu0 0.0
    %1169 = vmatpush1.xpose.msra.mxu0 %v1136
    %1170 = vmatprep.subr.mxu0 0.0
    %1171 = vmatpush1.xpose.msra.mxu0 %v1134
    %1172 = vmatprep.subr.mxu0 0.0
    %1173 = vmatpush2.xpose.msra.mxu0 0.0
    %1174 = vmatprep.subr.mxu0 0.0
    %1175 = vmatpush2.xpose.msra.mxu0 0.0
    %1176 = vmatprep.subr.mxu0 0.0
    %1177 = vmatpush2.xpose.msra.mxu0 0.0
    %1178 = vmatprep.subr.mxu0 0.0
    %1179 = vmatpush2.xpose.msra.mxu0 0.0
    %1180 = vmatprep.subr.mxu0 0.0
    %1181 = vmatpush2.xpose.msra.mxu0 0.0
    %1182 = vmatprep.subr.mxu0 0.0
    %1183 = vmatpush2.xpose.msra.mxu0 0.0
    %1184 = vmatprep.subr.mxu0 0.0
    %1185 = vmatpush2.xpose.msra.mxu0 0.0
    %1186 = vmatprep.subr.mxu0 0.0
    %1187 = vmatpush2.xpose.msra.mxu0 0.0
    %1188 = vmatprep.subr.mxu0 0.0
    %1189 = vmatpush2.xpose.msra.mxu0 0.0
    %1190 = vmatprep.subr.mxu0 0.0
    %1191 = vmatpush2.xpose.msra.mxu0 0.0
    %1192 = vmatprep.subr.mxu0 0.0
    %1193 = vmatpush2.xpose.msra.mxu0 0.0
    %1194 = vmatprep.subr.mxu0 0.0
    %1195 = vmatpush2.xpose.msra.mxu0 0.0
    %1196 = vmatprep.subr.mxu0 0.0
    %1197 = vmatpush2.xpose.msra.mxu0 0.0
    %1198 = vmatprep.subr.mxu0 0.0
    %1199 = vmatpush2.xpose.msra.mxu0 0.0
    %1200 = vmatprep.subr.mxu0 0.0
    %1201 = vmatpush2.xpose.msra.mxu0 0.0
    %1202 = vmatprep.subr.mxu0 0.0
    %1203 = vmatpush2.xpose.msra.mxu0 0.0
    %1204 = vmatprep.mubr.f32.mxu0 0.0
    %1205 = vmatmul.mubr.f32.gmra.mxu0 %v1128
    %v1206 = vpop.f32.mrf.mxu0
    %v1207 = vadd.f32 %v869, %v1206
    %v1208 = vpop.f32.mrf.mxu0
    %1209 = vmatprep.mubr.f32.mxu0 0.0
    %1210 = vmatmul.mubr.f32.gmra.mxu0 %v1130
    %v1211 = vpop.f32.mrf.mxu0
    %v1212 = vadd.f32 %v870, %v1211
    %v1213 = vpop.f32.mrf.mxu0
    %1214 = vmatprep.mubr.f32.mxu0 0.0
    %1215 = vmatmul.mubr.f32.gmra.mxu0 %v1132
    %v1216 = vpop.f32.mrf.mxu0
    %v1217 = vadd.f32 %v871, %v1216
    %v1218 = vpop.f32.mrf.mxu0
    %1219 = vdwg.mxu0
    %v1220 = vsel %vm988, %v1207, -inf
    %1221 = vmax.xlane.f32.xlu0 %v1220
    %v1222 = vpop.xlane.xlu0 %1221
    %v1223 = vsel %vm988, %v1212, -inf
    %1224 = vmax.xlane.f32.xlu0 %v1223
    %v1225 = vpop.xlane.xlu0 %1224
    %v1226 = vsel %vm995, %v1217, -inf
    %1227 = vmax.xlane.f32.xlu0 %v1226
    %v1228 = vpop.xlane.xlu0 %1227
    %v1229 = vsub.f32 %v1207, %v1222
    %v1230 = vsub.f32 %v1212, %v1225
    %v1231 = vsub.f32 %v1217, %v1228
    %v1232 = vmul.f32 %v1229, 1.442695
    %v1233 = vpow.pop %v1232
    %v1234 = vmul.f32 %v1230, 1.442695
    %v1235 = vpow.pop %v1234
    %v1236 = vmul.f32 %v1231, 1.442695
    %v1237 = vpow.pop %v1236
    %v1238 = vsel %vm988, %v1233, 0.0
    %1239 = vadd.xlane.f32.xlu0 %v1238
    %v1240 = vpop.xlane.xlu0 %1239
    %v1241 = vsel %vm988, %v1235, 0.0
    %1242 = vadd.xlane.f32.xlu0 %v1241
    %v1243 = vpop.xlane.xlu0 %1242
    %v1244 = vsel %vm995, %v1237, 0.0
    %1245 = vadd.xlane.f32.xlu0 %v1244
    %v1246 = vpop.xlane.xlu0 %1245
    %v1247 = vrcp.pop %v1240
    %v1248 = vrcp.pop %v1243
    %v1249 = vrcp.pop %v1246
    %v1250 = vmul.f32 %v1233, %v1247
    %v1251 = vmul.f32 %v1235, %v1248
    %v1252 = vmul.f32 %v1237, %v1249
    %1255 = vrot.lane.b32.xlu0 %v855, 120
    %v1256 = vpop.permute.xlu0 %1255
    %1257 = vrot.lane.b32.xlu0 %v861, 120
    %v1258 = vpop.permute.xlu0 %1257
    %1259 = vrot.lane.b32.xlu0 %v867, 120
    %v1260 = vpop.permute.xlu0 %1259
    %v1264 = vsel %vm988, %v1250, 0
    %v1267 = vsel %vm988, %v1251, 0
    %v1270 = vsel %vm988, %v1252, 0
    %v1272 = vsel %vm1032, %v1260, 0
    %1274 = vmatprep.subr.mxu0 0.0
    %1275 = vmatpush1.msra.mxu0 0.0
    %1276 = vmatprep.subr.mxu0 0.0
    %1277 = vmatpush1.msra.mxu0 0.0
    %1278 = vmatprep.subr.mxu0 0.0
    %1279 = vmatpush1.msra.mxu0 0.0
    %1280 = vmatprep.subr.mxu0 0.0
    %1281 = vmatpush1.msra.mxu0 0.0
    %1282 = vmatprep.subr.mxu0 0.0
    %1283 = vmatpush1.msra.mxu0 0.0
    %1284 = vmatprep.subr.mxu0 0.0
    %1285 = vmatpush1.msra.mxu0 0.0
    %1286 = vmatprep.subr.mxu0 0.0
    %1287 = vmatpush1.msra.mxu0 0.0
    %1288 = vmatprep.subr.mxu0 0.0
    %1289 = vmatpush1.msra.mxu0 0.0
    %1290 = vmatprep.subr.mxu0 0.0
    %1291 = vmatpush1.msra.mxu0 0.0
    %1292 = vmatprep.subr.mxu0 0.0
    %1293 = vmatpush1.msra.mxu0 0.0
    %1294 = vmatprep.subr.mxu0 0.0
    %1295 = vmatpush1.msra.mxu0 0.0
    %1296 = vmatprep.subr.mxu0 0.0
    %1297 = vmatpush1.msra.mxu0 0.0
    %1298 = vmatprep.subr.mxu0 0.0
    %1299 = vmatpush1.msra.mxu0 0.0
    %1300 = vmatprep.subr.mxu0 0.0
    %1301 = vmatpush1.msra.mxu0 %v1272
    %1302 = vmatprep.subr.mxu0 0.0
    %1303 = vmatpush1.msra.mxu0 %v1258
    %1304 = vmatprep.subr.mxu0 0.0
    %1305 = vmatpush1.msra.mxu0 %v1256
    %1306 = vmatprep.subr.mxu0 0.0
    %1307 = vmatpush2.msra.mxu0 0.0
    %1308 = vmatprep.subr.mxu0 0.0
    %1309 = vmatpush2.msra.mxu0 0.0
    %1310 = vmatprep.subr.mxu0 0.0
    %1311 = vmatpush2.msra.mxu0 0.0
    %1312 = vmatprep.subr.mxu0 0.0
    %1313 = vmatpush2.msra.mxu0 0.0
    %1314 = vmatprep.subr.mxu0 0.0
    %1315 = vmatpush2.msra.mxu0 0.0
    %1316 = vmatprep.subr.mxu0 0.0
    %1317 = vmatpush2.msra.mxu0 0.0
    %1318 = vmatprep.subr.mxu0 0.0
    %1319 = vmatpush2.msra.mxu0 0.0
    %1320 = vmatprep.subr.mxu0 0.0
    %1321 = vmatpush2.msra.mxu0 0.0
    %1322 = vmatprep.subr.mxu0 0.0
    %1323 = vmatpush2.msra.mxu0 0.0
    %1324 = vmatprep.subr.mxu0 0.0
    %1325 = vmatpush2.msra.mxu0 0.0
    %1326 = vmatprep.subr.mxu0 0.0
    %1327 = vmatpush2.msra.mxu0 0.0
    %1328 = vmatprep.subr.mxu0 0.0
    %1329 = vmatpush2.msra.mxu0 0.0
    %1330 = vmatprep.subr.mxu0 0.0
    %1331 = vmatpush2.msra.mxu0 0.0
    %1332 = vmatprep.subr.mxu0 0.0
    %1333 = vmatpush2.msra.mxu0 0.0
    %1334 = vmatprep.subr.mxu0 0.0
    %1335 = vmatpush2.msra.mxu0 0.0
    %1336 = vmatprep.subr.mxu0 0.0
    %1337 = vmatpush2.msra.mxu0 0.0
    %1338 = vmatprep.mubr.f32.mxu0 0.0
    %1339 = vmatmul.mubr.f32.gmra.mxu0 %v1264
    %v1340 = vpop.f32.mrf.mxu0
    %v1341 = vadd.f32 0.0, %v1340
    %v1342 = vpop.f32.mrf.mxu0
    %1343 = vmatprep.mubr.f32.mxu0 0.0
    %1344 = vmatmul.mubr.f32.gmra.mxu0 %v1267
    %v1345 = vpop.f32.mrf.mxu0
    %v1346 = vadd.f32 0.0, %v1345
    %v1347 = vpop.f32.mrf.mxu0
    %1348 = vmatprep.mubr.f32.mxu0 0.0
    %1349 = vmatmul.mubr.f32.gmra.mxu0 %v1270
    %v1350 = vpop.f32.mrf.mxu0
    %v1351 = vadd.f32 0.0, %v1350
    %v1352 = vpop.f32.mrf.mxu0
    %1353 = vdwg.mxu0
    %v1355 = vsel %vm892, %v1341, 0
    %v1358 = vsel %vm892, %v1346, 0
    %v1361 = vsel %vm892, %v1351, 0
    %1363 = vmatprep.subr.mxu0 0.0
    %1364 = vmatpush1.msra.mxu0 0.0
    %1365 = vmatprep.subr.mxu0 0.0
    %1366 = vmatpush1.msra.mxu0 0.0
    %1367 = vmatprep.subr.mxu0 0.0
    %1368 = vmatpush1.msra.mxu0 0.0
    %1369 = vmatprep.subr.mxu0 0.0
    %1370 = vmatpush1.msra.mxu0 0.0
    %1371 = vmatprep.subr.mxu0 0.0
    %1372 = vmatpush1.msra.mxu0 0.0
    %1373 = vmatprep.subr.mxu0 0.0
    %1374 = vmatpush1.msra.mxu0 0.0
    %1375 = vmatprep.subr.mxu0 0.0
    %1376 = vmatpush1.msra.mxu0 0.0
    %1377 = vmatprep.subr.mxu0 0.0
    %1378 = vmatpush1.msra.mxu0 0.0
    %1379 = vmatprep.subr.mxu0 0.0
    %1380 = vmatpush1.msra.mxu0 0.0
    %1381 = vmatprep.subr.mxu0 0.0
    %1382 = vmatpush1.msra.mxu0 0.0
    %1383 = vmatprep.subr.mxu0 0.0
    %1384 = vmatpush1.msra.mxu0 0.0
    %1385 = vmatprep.subr.mxu0 0.0
    %1386 = vmatpush1.msra.mxu0 0.0
    %1387 = vmatprep.subr.mxu0 0.0
    %1388 = vmatpush1.msra.mxu0 0.0
    %1389 = vmatprep.subr.mxu0 0.0
    %1390 = vmatpush1.msra.mxu0 0.0
    %1391 = vmatprep.subr.mxu0 0.0
    %1392 = vmatpush1.msra.mxu0 0.0
    %1393 = vmatprep.subr.mxu0 0.0
    %1394 = vmatpush1.msra.mxu0 %v873
    %1395 = vmatprep.subr.mxu0 0.0
    %1396 = vmatpush2.msra.mxu0 0.0
    %1397 = vmatprep.subr.mxu0 0.0
    %1398 = vmatpush2.msra.mxu0 0.0
    %1399 = vmatprep.subr.mxu0 0.0
    %1400 = vmatpush2.msra.mxu0 0.0
    %1401 = vmatprep.subr.mxu0 0.0
    %1402 = vmatpush2.msra.mxu0 0.0
    %1403 = vmatprep.subr.mxu0 0.0
    %1404 = vmatpush2.msra.mxu0 0.0
    %1405 = vmatprep.subr.mxu0 0.0
    %1406 = vmatpush2.msra.mxu0 0.0
    %1407 = vmatprep.subr.mxu0 0.0
    %1408 = vmatpush2.msra.mxu0 0.0
    %1409 = vmatprep.subr.mxu0 0.0
    %1410 = vmatpush2.msra.mxu0 0.0
    %1411 = vmatprep.subr.mxu0 0.0
    %1412 = vmatpush2.msra.mxu0 0.0
    %1413 = vmatprep.subr.mxu0 0.0
    %1414 = vmatpush2.msra.mxu0 0.0
    %1415 = vmatprep.subr.mxu0 0.0
    %1416 = vmatpush2.msra.mxu0 0.0
    %1417 = vmatprep.subr.mxu0 0.0
    %1418 = vmatpush2.msra.mxu0 0.0
    %1419 = vmatprep.subr.mxu0 0.0
    %1420 = vmatpush2.msra.mxu0 0.0
    %1421 = vmatprep.subr.mxu0 0.0
    %1422 = vmatpush2.msra.mxu0 0.0
    %1423 = vmatprep.subr.mxu0 0.0
    %1424 = vmatpush2.msra.mxu0 0.0
    %1425 = vmatprep.subr.mxu0 0.0
    %1426 = vmatpush2.msra.mxu0 0.0
    %1427 = vmatprep.mubr.f32.mxu0 0.0
    %1428 = vmatmul.mubr.f32.gmra.mxu0 %v1355
    %v1429 = vpop.f32.mrf.mxu0
    %v1430 = vadd.f32 0.0, %v1429
    %v1431 = vpop.f32.mrf.mxu0
    %1432 = vmatprep.mubr.f32.mxu0 0.0
    %1433 = vmatmul.mubr.f32.gmra.mxu0 %v1358
    %v1434 = vpop.f32.mrf.mxu0
    %v1435 = vadd.f32 0.0, %v1434
    %v1436 = vpop.f32.mrf.mxu0
    %1437 = vmatprep.mubr.f32.mxu0 0.0
    %1438 = vmatmul.mubr.f32.gmra.mxu0 %v1361
    %v1439 = vpop.f32.mrf.mxu0
    %v1440 = vadd.f32 0.0, %v1439
    %v1441 = vpop.f32.mrf.mxu0
    %1442 = vdwg.mxu0
    %v1444 = vsel %vm892, %v1103, 0
    %v1447 = vsel %vm892, %v1108, 0
    %v1450 = vsel %vm892, %v1113, 0
    %1452 = vmatprep.subr.mxu0 0.0
    %1453 = vmatpush1.msra.mxu0 0.0
    %1454 = vmatprep.subr.mxu0 0.0
    %1455 = vmatpush1.msra.mxu0 0.0
    %1456 = vmatprep.subr.mxu0 0.0
    %1457 = vmatpush1.msra.mxu0 0.0
    %1458 = vmatprep.subr.mxu0 0.0
    %1459 = vmatpush1.msra.mxu0 0.0
    %1460 = vmatprep.subr.mxu0 0.0
    %1461 = vmatpush1.msra.mxu0 0.0
    %1462 = vmatprep.subr.mxu0 0.0
    %1463 = vmatpush1.msra.mxu0 0.0
    %1464 = vmatprep.subr.mxu0 0.0
    %1465 = vmatpush1.msra.mxu0 0.0
    %1466 = vmatprep.subr.mxu0 0.0
    %1467 = vmatpush1.msra.mxu0 0.0
    %1468 = vmatprep.subr.mxu0 0.0
    %1469 = vmatpush1.msra.mxu0 0.0
    %1470 = vmatprep.subr.mxu0 0.0
    %1471 = vmatpush1.msra.mxu0 0.0
    %1472 = vmatprep.subr.mxu0 0.0
    %1473 = vmatpush1.msra.mxu0 0.0
    %1474 = vmatprep.subr.mxu0 0.0
    %1475 = vmatpush1.msra.mxu0 0.0
    %1476 = vmatprep.subr.mxu0 0.0
    %1477 = vmatpush1.msra.mxu0 0.0
    %1478 = vmatprep.subr.mxu0 0.0
    %1479 = vmatpush1.msra.mxu0 0.0
    %1480 = vmatprep.subr.mxu0 0.0
    %1481 = vmatpush1.msra.mxu0 0.0
    %1482 = vmatprep.subr.mxu0 0.0
    %1483 = vmatpush1.msra.mxu0 %v872
    %1484 = vmatprep.subr.mxu0 0.0
    %1485 = vmatpush2.msra.mxu0 0.0
    %1486 = vmatprep.subr.mxu0 0.0
    %1487 = vmatpush2.msra.mxu0 0.0
    %1488 = vmatprep.subr.mxu0 0.0
    %1489 = vmatpush2.msra.mxu0 0.0
    %1490 = vmatprep.subr.mxu0 0.0
    %1491 = vmatpush2.msra.mxu0 0.0
    %1492 = vmatprep.subr.mxu0 0.0
    %1493 = vmatpush2.msra.mxu0 0.0
    %1494 = vmatprep.subr.mxu0 0.0
    %1495 = vmatpush2.msra.mxu0 0.0
    %1496 = vmatprep.subr.mxu0 0.0
    %1497 = vmatpush2.msra.mxu0 0.0
    %1498 = vmatprep.subr.mxu0 0.0
    %1499 = vmatpush2.msra.mxu0 0.0
    %1500 = vmatprep.subr.mxu0 0.0
    %1501 = vmatpush2.msra.mxu0 0.0
    %1502 = vmatprep.subr.mxu0 0.0
    %1503 = vmatpush2.msra.mxu0 0.0
    %1504 = vmatprep.subr.mxu0 0.0
    %1505 = vmatpush2.msra.mxu0 0.0
    %1506 = vmatprep.subr.mxu0 0.0
    %1507 = vmatpush2.msra.mxu0 0.0
    %1508 = vmatprep.subr.mxu0 0.0
    %1509 = vmatpush2.msra.mxu0 0.0
    %1510 = vmatprep.subr.mxu0 0.0
    %1511 = vmatpush2.msra.mxu0 0.0
    %1512 = vmatprep.subr.mxu0 0.0
    %1513 = vmatpush2.msra.mxu0 0.0
    %1514 = vmatprep.subr.mxu0 0.0
    %1515 = vmatpush2.msra.mxu0 0.0
    %1516 = vmatprep.mubr.f32.mxu0 0.0
    %1517 = vmatmul.mubr.f32.gmra.mxu0 %v1444
    %v1518 = vpop.f32.mrf.mxu0
    %v1519 = vadd.f32 %v1430, %v1518
    %v1520 = vpop.f32.mrf.mxu0
    %1521 = vmatprep.mubr.f32.mxu0 0.0
    %1522 = vmatmul.mubr.f32.gmra.mxu0 %v1447
    %v1523 = vpop.f32.mrf.mxu0
    %v1524 = vadd.f32 %v1435, %v1523
    %v1525 = vpop.f32.mrf.mxu0
    %1526 = vmatprep.mubr.f32.mxu0 0.0
    %1527 = vmatmul.mubr.f32.gmra.mxu0 %v1450
    %v1528 = vpop.f32.mrf.mxu0
    %v1529 = vadd.f32 %v1440, %v1528
    %v1530 = vpop.f32.mrf.mxu0
    %1531 = vdwg.mxu0
    %1532 = vrot.lane.b32.xlu0 %v880, 112
    %v1533 = vpop.permute.xlu0 %1532
    %1534 = vrot.lane.b32.xlu0 %v881, 112
    %v1535 = vpop.permute.xlu0 %1534
    %1536 = vrot.lane.b32.xlu0 %v882, 112
    %v1537 = vpop.permute.xlu0 %1536
    %1538 = vrot.lane.b32.xlu0 %v853, 48
    %v1539 = vpop.permute.xlu0 %1538
    %1540 = vrot.lane.b32.xlu0 %v859, 48
    %v1541 = vpop.permute.xlu0 %1540
    %1542 = vrot.lane.b32.xlu0 %v865, 48
    %v1543 = vpop.permute.xlu0 %1542
    %v1544 = vsel %vm892, %v1533, 0
    %v1546 = vsel %vm892, %v1535, 0
    %v1548 = vsel %vm892, %v1537, 0
    %v1550 = vsel %vm892, %v1539, 0
    %v1552 = vsel %vm892, %v1541, 0
    %v1554 = vsel %vm892, %v1543, 0
    %1556 = vmatprep.subr.mxu0 0.0
    %1557 = vmatpush1.xpose.msra.mxu0 0.0
    %1558 = vmatprep.subr.mxu0 0.0
    %1559 = vmatpush1.xpose.msra.mxu0 0.0
    %1560 = vmatprep.subr.mxu0 0.0
    %1561 = vmatpush1.xpose.msra.mxu0 0.0
    %1562 = vmatprep.subr.mxu0 0.0
    %1563 = vmatpush1.xpose.msra.mxu0 0.0
    %1564 = vmatprep.subr.mxu0 0.0
    %1565 = vmatpush1.xpose.msra.mxu0 0.0
    %1566 = vmatprep.subr.mxu0 0.0
    %1567 = vmatpush1.xpose.msra.mxu0 0.0
    %1568 = vmatprep.subr.mxu0 0.0
    %1569 = vmatpush1.xpose.msra.mxu0 0.0
    %1570 = vmatprep.subr.mxu0 0.0
    %1571 = vmatpush1.xpose.msra.mxu0 0.0
    %1572 = vmatprep.subr.mxu0 0.0
    %1573 = vmatpush1.xpose.msra.mxu0 0.0
    %1574 = vmatprep.subr.mxu0 0.0
    %1575 = vmatpush1.xpose.msra.mxu0 0.0
    %1576 = vmatprep.subr.mxu0 0.0
    %1577 = vmatpush1.xpose.msra.mxu0 0.0
    %1578 = vmatprep.subr.mxu0 0.0
    %1579 = vmatpush1.xpose.msra.mxu0 0.0
    %1580 = vmatprep.subr.mxu0 0.0
    %1581 = vmatpush1.xpose.msra.mxu0 0.0
    %1582 = vmatprep.subr.mxu0 0.0
    %1583 = vmatpush1.xpose.msra.mxu0 %v1554
    %1584 = vmatprep.subr.mxu0 0.0
    %1585 = vmatpush1.xpose.msra.mxu0 %v1552
    %1586 = vmatprep.subr.mxu0 0.0
    %1587 = vmatpush1.xpose.msra.mxu0 %v1550
    %1588 = vmatprep.subr.mxu0 0.0
    %1589 = vmatpush2.xpose.msra.mxu0 0.0
    %1590 = vmatprep.subr.mxu0 0.0
    %1591 = vmatpush2.xpose.msra.mxu0 0.0
    %1592 = vmatprep.subr.mxu0 0.0
    %1593 = vmatpush2.xpose.msra.mxu0 0.0
    %1594 = vmatprep.subr.mxu0 0.0
    %1595 = vmatpush2.xpose.msra.mxu0 0.0
    %1596 = vmatprep.subr.mxu0 0.0
    %1597 = vmatpush2.xpose.msra.mxu0 0.0
    %1598 = vmatprep.subr.mxu0 0.0
    %1599 = vmatpush2.xpose.msra.mxu0 0.0
    %1600 = vmatprep.subr.mxu0 0.0
    %1601 = vmatpush2.xpose.msra.mxu0 0.0
    %1602 = vmatprep.subr.mxu0 0.0
    %1603 = vmatpush2.xpose.msra.mxu0 0.0
    %1604 = vmatprep.subr.mxu0 0.0
    %1605 = vmatpush2.xpose.msra.mxu0 0.0
    %1606 = vmatprep.subr.mxu0 0.0
    %1607 = vmatpush2.xpose.msra.mxu0 0.0
    %1608 = vmatprep.subr.mxu0 0.0
    %1609 = vmatpush2.xpose.msra.mxu0 0.0
    %1610 = vmatprep.subr.mxu0 0.0
    %1611 = vmatpush2.xpose.msra.mxu0 0.0
    %1612 = vmatprep.subr.mxu0 0.0
    %1613 = vmatpush2.xpose.msra.mxu0 0.0
    %1614 = vmatprep.subr.mxu0 0.0
    %1615 = vmatpush2.xpose.msra.mxu0 0.0
    %1616 = vmatprep.subr.mxu0 0.0
    %1617 = vmatpush2.xpose.msra.mxu0 0.0
    %1618 = vmatprep.subr.mxu0 0.0
    %1619 = vmatpush2.xpose.msra.mxu0 0.0
    %1620 = vmatprep.mubr.f32.mxu0 0.0
    %1621 = vmatmul.mubr.f32.gmra.mxu0 %v1544
    %v1622 = vpop.f32.mrf.mxu0
    %v1623 = vadd.f32 %v869, %v1622
    %v1624 = vpop.f32.mrf.mxu0
    %1625 = vmatprep.mubr.f32.mxu0 0.0
    %1626 = vmatmul.mubr.f32.gmra.mxu0 %v1546
    %v1627 = vpop.f32.mrf.mxu0
    %v1628 = vadd.f32 %v870, %v1627
    %v1629 = vpop.f32.mrf.mxu0
    %1630 = vmatprep.mubr.f32.mxu0 0.0
    %1631 = vmatmul.mubr.f32.gmra.mxu0 %v1548
    %v1632 = vpop.f32.mrf.mxu0
    %v1633 = vadd.f32 %v871, %v1632
    %v1634 = vpop.f32.mrf.mxu0
    %1635 = vdwg.mxu0
    %v1636 = vsel %vm988, %v1623, -inf
    %1637 = vmax.xlane.f32.xlu0 %v1636
    %v1638 = vpop.xlane.xlu0 %1637
    %v1639 = vsel %vm988, %v1628, -inf
    %1640 = vmax.xlane.f32.xlu0 %v1639
    %v1641 = vpop.xlane.xlu0 %1640
    %v1642 = vsel %vm995, %v1633, -inf
    %1643 = vmax.xlane.f32.xlu0 %v1642
    %v1644 = vpop.xlane.xlu0 %1643
    %v1645 = vsub.f32 %v1623, %v1638
    %v1646 = vsub.f32 %v1628, %v1641
    %v1647 = vsub.f32 %v1633, %v1644
    %v1648 = vmul.f32 %v1645, 1.442695
    %v1649 = vpow.pop %v1648
    %v1650 = vmul.f32 %v1646, 1.442695
    %v1651 = vpow.pop %v1650
    %v1652 = vmul.f32 %v1647, 1.442695
    %v1653 = vpow.pop %v1652
    %v1654 = vsel %vm988, %v1649, 0.0
    %1655 = vadd.xlane.f32.xlu0 %v1654
    %v1656 = vpop.xlane.xlu0 %1655
    %v1657 = vsel %vm988, %v1651, 0.0
    %1658 = vadd.xlane.f32.xlu0 %v1657
    %v1659 = vpop.xlane.xlu0 %1658
    %v1660 = vsel %vm995, %v1653, 0.0
    %1661 = vadd.xlane.f32.xlu0 %v1660
    %v1662 = vpop.xlane.xlu0 %1661
    %v1663 = vrcp.pop %v1656
    %v1664 = vrcp.pop %v1659
    %v1665 = vrcp.pop %v1662
    %v1666 = vmul.f32 %v1649, %v1663
    %v1667 = vmul.f32 %v1651, %v1664
    %v1668 = vmul.f32 %v1653, %v1665
    %1669 = vrot.lane.b32.xlu0 %v855, 112
    %v1670 = vpop.permute.xlu0 %1669
    %1671 = vrot.lane.b32.xlu0 %v861, 112
    %v1672 = vpop.permute.xlu0 %1671
    %1673 = vrot.lane.b32.xlu0 %v867, 112
    %v1674 = vpop.permute.xlu0 %1673
    %v1678 = vsel %vm988, %v1666, 0
    %v1681 = vsel %vm988, %v1667, 0
    %v1684 = vsel %vm988, %v1668, 0
    %v1686 = vsel %vm1032, %v1674, 0
    %1688 = vmatprep.subr.mxu0 0.0
    %1689 = vmatpush1.msra.mxu0 0.0
    %1690 = vmatprep.subr.mxu0 0.0
    %1691 = vmatpush1.msra.mxu0 0.0
    %1692 = vmatprep.subr.mxu0 0.0
    %1693 = vmatpush1.msra.mxu0 0.0
    %1694 = vmatprep.subr.mxu0 0.0
    %1695 = vmatpush1.msra.mxu0 0.0
    %1696 = vmatprep.subr.mxu0 0.0
    %1697 = vmatpush1.msra.mxu0 0.0
    %1698 = vmatprep.subr.mxu0 0.0
    %1699 = vmatpush1.msra.mxu0 0.0
    %1700 = vmatprep.subr.mxu0 0.0
    %1701 = vmatpush1.msra.mxu0 0.0
    %1702 = vmatprep.subr.mxu0 0.0
    %1703 = vmatpush1.msra.mxu0 0.0
    %1704 = vmatprep.subr.mxu0 0.0
    %1705 = vmatpush1.msra.mxu0 0.0
    %1706 = vmatprep.subr.mxu0 0.0
    %1707 = vmatpush1.msra.mxu0 0.0
    %1708 = vmatprep.subr.mxu0 0.0
    %1709 = vmatpush1.msra.mxu0 0.0
    %1710 = vmatprep.subr.mxu0 0.0
    %1711 = vmatpush1.msra.mxu0 0.0
    %1712 = vmatprep.subr.mxu0 0.0
    %1713 = vmatpush1.msra.mxu0 0.0
    %1714 = vmatprep.subr.mxu0 0.0
    %1715 = vmatpush1.msra.mxu0 %v1686
    %1716 = vmatprep.subr.mxu0 0.0
    %1717 = vmatpush1.msra.mxu0 %v1672
    %1718 = vmatprep.subr.mxu0 0.0
    %1719 = vmatpush1.msra.mxu0 %v1670
    %1720 = vmatprep.subr.mxu0 0.0
    %1721 = vmatpush2.msra.mxu0 0.0
    %1722 = vmatprep.subr.mxu0 0.0
    %1723 = vmatpush2.msra.mxu0 0.0
    %1724 = vmatprep.subr.mxu0 0.0
    %1725 = vmatpush2.msra.mxu0 0.0
    %1726 = vmatprep.subr.mxu0 0.0
    %1727 = vmatpush2.msra.mxu0 0.0
    %1728 = vmatprep.subr.mxu0 0.0
    %1729 = vmatpush2.msra.mxu0 0.0
    %1730 = vmatprep.subr.mxu0 0.0
    %1731 = vmatpush2.msra.mxu0 0.0
    %1732 = vmatprep.subr.mxu0 0.0
    %1733 = vmatpush2.msra.mxu0 0.0
    %1734 = vmatprep.subr.mxu0 0.0
    %1735 = vmatpush2.msra.mxu0 0.0
    %1736 = vmatprep.subr.mxu0 0.0
    %1737 = vmatpush2.msra.mxu0 0.0
    %1738 = vmatprep.subr.mxu0 0.0
    %1739 = vmatpush2.msra.mxu0 0.0
    %1740 = vmatprep.subr.mxu0 0.0
    %1741 = vmatpush2.msra.mxu0 0.0
    %1742 = vmatprep.subr.mxu0 0.0
    %1743 = vmatpush2.msra.mxu0 0.0
    %1744 = vmatprep.subr.mxu0 0.0
    %1745 = vmatpush2.msra.mxu0 0.0
    %1746 = vmatprep.subr.mxu0 0.0
    %1747 = vmatpush2.msra.mxu0 0.0
    %1748 = vmatprep.subr.mxu0 0.0
    %1749 = vmatpush2.msra.mxu0 0.0
    %1750 = vmatprep.subr.mxu0 0.0
    %1751 = vmatpush2.msra.mxu0 0.0
    %1752 = vmatprep.mubr.f32.mxu0 0.0
    %1753 = vmatmul.mubr.f32.gmra.mxu0 %v1678
    %v1754 = vpop.f32.mrf.mxu0
    %v1755 = vadd.f32 0.0, %v1754
    %v1756 = vpop.f32.mrf.mxu0
    %1757 = vmatprep.mubr.f32.mxu0 0.0
    %1758 = vmatmul.mubr.f32.gmra.mxu0 %v1681
    %v1759 = vpop.f32.mrf.mxu0
    %v1760 = vadd.f32 0.0, %v1759
    %v1761 = vpop.f32.mrf.mxu0
    %1762 = vmatprep.mubr.f32.mxu0 0.0
    %1763 = vmatmul.mubr.f32.gmra.mxu0 %v1684
    %v1764 = vpop.f32.mrf.mxu0
    %v1765 = vadd.f32 0.0, %v1764
    %v1766 = vpop.f32.mrf.mxu0
    %1767 = vdwg.mxu0
    %v1769 = vsel %vm892, %v1755, 0
    %v1772 = vsel %vm892, %v1760, 0
    %v1775 = vsel %vm892, %v1765, 0
    %1777 = vmatprep.subr.mxu0 0.0
    %1778 = vmatpush1.msra.mxu0 0.0
    %1779 = vmatprep.subr.mxu0 0.0
    %1780 = vmatpush1.msra.mxu0 0.0
    %1781 = vmatprep.subr.mxu0 0.0
    %1782 = vmatpush1.msra.mxu0 0.0
    %1783 = vmatprep.subr.mxu0 0.0
    %1784 = vmatpush1.msra.mxu0 0.0
    %1785 = vmatprep.subr.mxu0 0.0
    %1786 = vmatpush1.msra.mxu0 0.0
    %1787 = vmatprep.subr.mxu0 0.0
    %1788 = vmatpush1.msra.mxu0 0.0
    %1789 = vmatprep.subr.mxu0 0.0
    %1790 = vmatpush1.msra.mxu0 0.0
    %1791 = vmatprep.subr.mxu0 0.0
    %1792 = vmatpush1.msra.mxu0 0.0
    %1793 = vmatprep.subr.mxu0 0.0
    %1794 = vmatpush1.msra.mxu0 0.0
    %1795 = vmatprep.subr.mxu0 0.0
    %1796 = vmatpush1.msra.mxu0 0.0
    %1797 = vmatprep.subr.mxu0 0.0
    %1798 = vmatpush1.msra.mxu0 0.0
    %1799 = vmatprep.subr.mxu0 0.0
    %1800 = vmatpush1.msra.mxu0 0.0
    %1801 = vmatprep.subr.mxu0 0.0
    %1802 = vmatpush1.msra.mxu0 0.0
    %1803 = vmatprep.subr.mxu0 0.0
    %1804 = vmatpush1.msra.mxu0 0.0
    %1805 = vmatprep.subr.mxu0 0.0
    %1806 = vmatpush1.msra.mxu0 0.0
    %1807 = vmatprep.subr.mxu0 0.0
    %1808 = vmatpush1.msra.mxu0 %v874
    %1809 = vmatprep.subr.mxu0 0.0
    %1810 = vmatpush2.msra.mxu0 0.0
    %1811 = vmatprep.subr.mxu0 0.0
    %1812 = vmatpush2.msra.mxu0 0.0
    %1813 = vmatprep.subr.mxu0 0.0
    %1814 = vmatpush2.msra.mxu0 0.0
    %1815 = vmatprep.subr.mxu0 0.0
    %1816 = vmatpush2.msra.mxu0 0.0
    %1817 = vmatprep.subr.mxu0 0.0
    %1818 = vmatpush2.msra.mxu0 0.0
    %1819 = vmatprep.subr.mxu0 0.0
    %1820 = vmatpush2.msra.mxu0 0.0
    %1821 = vmatprep.subr.mxu0 0.0
    %1822 = vmatpush2.msra.mxu0 0.0
    %1823 = vmatprep.subr.mxu0 0.0
    %1824 = vmatpush2.msra.mxu0 0.0
    %1825 = vmatprep.subr.mxu0 0.0
    %1826 = vmatpush2.msra.mxu0 0.0
    %1827 = vmatprep.subr.mxu0 0.0
    %1828 = vmatpush2.msra.mxu0 0.0
    %1829 = vmatprep.subr.mxu0 0.0
    %1830 = vmatpush2.msra.mxu0 0.0
    %1831 = vmatprep.subr.mxu0 0.0
    %1832 = vmatpush2.msra.mxu0 0.0
    %1833 = vmatprep.subr.mxu0 0.0
    %1834 = vmatpush2.msra.mxu0 0.0
    %1835 = vmatprep.subr.mxu0 0.0
    %1836 = vmatpush2.msra.mxu0 0.0
    %1837 = vmatprep.subr.mxu0 0.0
    %1838 = vmatpush2.msra.mxu0 0.0
    %1839 = vmatprep.subr.mxu0 0.0
    %1840 = vmatpush2.msra.mxu0 0.0
    %1841 = vmatprep.mubr.f32.mxu0 0.0
    %1842 = vmatmul.mubr.f32.gmra.mxu0 %v1769
    %v1843 = vpop.f32.mrf.mxu0
    %v1844 = vadd.f32 0.0, %v1843
    %v1845 = vpop.f32.mrf.mxu0
    %1846 = vmatprep.mubr.f32.mxu0 0.0
    %1847 = vmatmul.mubr.f32.gmra.mxu0 %v1772
    %v1848 = vpop.f32.mrf.mxu0
    %v1849 = vadd.f32 0.0, %v1848
    %v1850 = vpop.f32.mrf.mxu0
    %1851 = vmatprep.mubr.f32.mxu0 0.0
    %1852 = vmatmul.mubr.f32.gmra.mxu0 %v1775
    %v1853 = vpop.f32.mrf.mxu0
    %v1854 = vadd.f32 0.0, %v1853
    %v1855 = vpop.f32.mrf.mxu0
    %1856 = vdwg.mxu0
    %v1857 = vadd.f32 %v1519, %v1844
    %v1858 = vadd.f32 %v1524, %v1849
    %v1859 = vadd.f32 %v1529, %v1854
    %1860 = vrot.lane.b32.xlu0 %v880, 104
    %v1861 = vpop.permute.xlu0 %1860
    %1862 = vrot.lane.b32.xlu0 %v881, 104
    %v1863 = vpop.permute.xlu0 %1862
    %1864 = vrot.lane.b32.xlu0 %v882, 104
    %v1865 = vpop.permute.xlu0 %1864
    %1866 = vrot.lane.b32.xlu0 %v853, 40
    %v1867 = vpop.permute.xlu0 %1866
    %1868 = vrot.lane.b32.xlu0 %v859, 40
    %v1869 = vpop.permute.xlu0 %1868
    %1870 = vrot.lane.b32.xlu0 %v865, 40
    %v1871 = vpop.permute.xlu0 %1870
    %v1872 = vsel %vm892, %v1861, 0
    %v1874 = vsel %vm892, %v1863, 0
    %v1876 = vsel %vm892, %v1865, 0
    %v1878 = vsel %vm892, %v1867, 0
    %v1880 = vsel %vm892, %v1869, 0
    %v1882 = vsel %vm892, %v1871, 0
    %1884 = vmatprep.subr.mxu0 0.0
    %1885 = vmatpush1.xpose.msra.mxu0 0.0
    %1886 = vmatprep.subr.mxu0 0.0
    %1887 = vmatpush1.xpose.msra.mxu0 0.0
    %1888 = vmatprep.subr.mxu0 0.0
    %1889 = vmatpush1.xpose.msra.mxu0 0.0
    %1890 = vmatprep.subr.mxu0 0.0
    %1891 = vmatpush1.xpose.msra.mxu0 0.0
    %1892 = vmatprep.subr.mxu0 0.0
    %1893 = vmatpush1.xpose.msra.mxu0 0.0
    %1894 = vmatprep.subr.mxu0 0.0
    %1895 = vmatpush1.xpose.msra.mxu0 0.0
    %1896 = vmatprep.subr.mxu0 0.0
    %1897 = vmatpush1.xpose.msra.mxu0 0.0
    %1898 = vmatprep.subr.mxu0 0.0
    %1899 = vmatpush1.xpose.msra.mxu0 0.0
    %1900 = vmatprep.subr.mxu0 0.0
    %1901 = vmatpush1.xpose.msra.mxu0 0.0
    %1902 = vmatprep.subr.mxu0 0.0
    %1903 = vmatpush1.xpose.msra.mxu0 0.0
    %1904 = vmatprep.subr.mxu0 0.0
    %1905 = vmatpush1.xpose.msra.mxu0 0.0
    %1906 = vmatprep.subr.mxu0 0.0
    %1907 = vmatpush1.xpose.msra.mxu0 0.0
    %1908 = vmatprep.subr.mxu0 0.0
    %1909 = vmatpush1.xpose.msra.mxu0 0.0
    %1910 = vmatprep.subr.mxu0 0.0
    %1911 = vmatpush1.xpose.msra.mxu0 %v1882
    %1912 = vmatprep.subr.mxu0 0.0
    %1913 = vmatpush1.xpose.msra.mxu0 %v1880
    %1914 = vmatprep.subr.mxu0 0.0
    %1915 = vmatpush1.xpose.msra.mxu0 %v1878
    %1916 = vmatprep.subr.mxu0 0.0
    %1917 = vmatpush2.xpose.msra.mxu0 0.0
    %1918 = vmatprep.subr.mxu0 0.0
    %1919 = vmatpush2.xpose.msra.mxu0 0.0
    %1920 = vmatprep.subr.mxu0 0.0
    %1921 = vmatpush2.xpose.msra.mxu0 0.0
    %1922 = vmatprep.subr.mxu0 0.0
    %1923 = vmatpush2.xpose.msra.mxu0 0.0
    %1924 = vmatprep.subr.mxu0 0.0
    %1925 = vmatpush2.xpose.msra.mxu0 0.0
    %1926 = vmatprep.subr.mxu0 0.0
    %1927 = vmatpush2.xpose.msra.mxu0 0.0
    %1928 = vmatprep.subr.mxu0 0.0
    %1929 = vmatpush2.xpose.msra.mxu0 0.0
    %1930 = vmatprep.subr.mxu0 0.0
    %1931 = vmatpush2.xpose.msra.mxu0 0.0
    %1932 = vmatprep.subr.mxu0 0.0
    %1933 = vmatpush2.xpose.msra.mxu0 0.0
    %1934 = vmatprep.subr.mxu0 0.0
    %1935 = vmatpush2.xpose.msra.mxu0 0.0
    %1936 = vmatprep.subr.mxu0 0.0
    %1937 = vmatpush2.xpose.msra.mxu0 0.0
    %1938 = vmatprep.subr.mxu0 0.0
    %1939 = vmatpush2.xpose.msra.mxu0 0.0
    %1940 = vmatprep.subr.mxu0 0.0
    %1941 = vmatpush2.xpose.msra.mxu0 0.0
    %1942 = vmatprep.subr.mxu0 0.0
    %1943 = vmatpush2.xpose.msra.mxu0 0.0
    %1944 = vmatprep.subr.mxu0 0.0
    %1945 = vmatpush2.xpose.msra.mxu0 0.0
    %1946 = vmatprep.subr.mxu0 0.0
    %1947 = vmatpush2.xpose.msra.mxu0 0.0
    %1948 = vmatprep.mubr.f32.mxu0 0.0
    %1949 = vmatmul.mubr.f32.gmra.mxu0 %v1872
    %v1950 = vpop.f32.mrf.mxu0
    %v1951 = vadd.f32 %v869, %v1950
    %v1952 = vpop.f32.mrf.mxu0
    %1953 = vmatprep.mubr.f32.mxu0 0.0
    %1954 = vmatmul.mubr.f32.gmra.mxu0 %v1874
    %v1955 = vpop.f32.mrf.mxu0
    %v1956 = vadd.f32 %v870, %v1955
    %v1957 = vpop.f32.mrf.mxu0
    %1958 = vmatprep.mubr.f32.mxu0 0.0
    %1959 = vmatmul.mubr.f32.gmra.mxu0 %v1876
    %v1960 = vpop.f32.mrf.mxu0
    %v1961 = vadd.f32 %v871, %v1960
    %v1962 = vpop.f32.mrf.mxu0
    %1963 = vdwg.mxu0
    %v1964 = vsel %vm988, %v1951, -inf
    %1965 = vmax.xlane.f32.xlu0 %v1964
    %v1966 = vpop.xlane.xlu0 %1965
    %v1967 = vsel %vm988, %v1956, -inf
    %1968 = vmax.xlane.f32.xlu0 %v1967
    %v1969 = vpop.xlane.xlu0 %1968
    %v1970 = vsel %vm995, %v1961, -inf
    %1971 = vmax.xlane.f32.xlu0 %v1970
    %v1972 = vpop.xlane.xlu0 %1971
    %v1973 = vsub.f32 %v1951, %v1966
    %v1974 = vsub.f32 %v1956, %v1969
    %v1975 = vsub.f32 %v1961, %v1972
    %v1976 = vmul.f32 %v1973, 1.442695
    %v1977 = vpow.pop %v1976
    %v1978 = vmul.f32 %v1974, 1.442695
    %v1979 = vpow.pop %v1978
    %v1980 = vmul.f32 %v1975, 1.442695
    %v1981 = vpow.pop %v1980
    %v1982 = vsel %vm988, %v1977, 0.0
    %1983 = vadd.xlane.f32.xlu0 %v1982
    %v1984 = vpop.xlane.xlu0 %1983
    %v1985 = vsel %vm988, %v1979, 0.0
    %1986 = vadd.xlane.f32.xlu0 %v1985
    %v1987 = vpop.xlane.xlu0 %1986
    %v1988 = vsel %vm995, %v1981, 0.0
    %1989 = vadd.xlane.f32.xlu0 %v1988
    %v1990 = vpop.xlane.xlu0 %1989
    %v1991 = vrcp.pop %v1984
    %v1992 = vrcp.pop %v1987
    %v1993 = vrcp.pop %v1990
    %v1994 = vmul.f32 %v1977, %v1991
    %v1995 = vmul.f32 %v1979, %v1992
    %v1996 = vmul.f32 %v1981, %v1993
    %1997 = vrot.lane.b32.xlu0 %v855, 104
    %v1998 = vpop.permute.xlu0 %1997
    %1999 = vrot.lane.b32.xlu0 %v861, 104
    %v2000 = vpop.permute.xlu0 %1999
    %2001 = vrot.lane.b32.xlu0 %v867, 104
    %v2002 = vpop.permute.xlu0 %2001
    %v2006 = vsel %vm988, %v1994, 0
    %v2009 = vsel %vm988, %v1995, 0
    %v2012 = vsel %vm988, %v1996, 0
    %v2014 = vsel %vm1032, %v2002, 0
    %2016 = vmatprep.subr.mxu0 0.0
    %2017 = vmatpush1.msra.mxu0 0.0
    %2018 = vmatprep.subr.mxu0 0.0
    %2019 = vmatpush1.msra.mxu0 0.0
    %2020 = vmatprep.subr.mxu0 0.0
    %2021 = vmatpush1.msra.mxu0 0.0
    %2022 = vmatprep.subr.mxu0 0.0
    %2023 = vmatpush1.msra.mxu0 0.0
    %2024 = vmatprep.subr.mxu0 0.0
    %2025 = vmatpush1.msra.mxu0 0.0
    %2026 = vmatprep.subr.mxu0 0.0
    %2027 = vmatpush1.msra.mxu0 0.0
    %2028 = vmatprep.subr.mxu0 0.0
    %2029 = vmatpush1.msra.mxu0 0.0
    %2030 = vmatprep.subr.mxu0 0.0
    %2031 = vmatpush1.msra.mxu0 0.0
    %2032 = vmatprep.subr.mxu0 0.0
    %2033 = vmatpush1.msra.mxu0 0.0
    %2034 = vmatprep.subr.mxu0 0.0
    %2035 = vmatpush1.msra.mxu0 0.0
    %2036 = vmatprep.subr.mxu0 0.0
    %2037 = vmatpush1.msra.mxu0 0.0
    %2038 = vmatprep.subr.mxu0 0.0
    %2039 = vmatpush1.msra.mxu0 0.0
    %2040 = vmatprep.subr.mxu0 0.0
    %2041 = vmatpush1.msra.mxu0 0.0
    %2042 = vmatprep.subr.mxu0 0.0
    %2043 = vmatpush1.msra.mxu0 %v2014
    %2044 = vmatprep.subr.mxu0 0.0
    %2045 = vmatpush1.msra.mxu0 %v2000
    %2046 = vmatprep.subr.mxu0 0.0
    %2047 = vmatpush1.msra.mxu0 %v1998
    %2048 = vmatprep.subr.mxu0 0.0
    %2049 = vmatpush2.msra.mxu0 0.0
    %2050 = vmatprep.subr.mxu0 0.0
    %2051 = vmatpush2.msra.mxu0 0.0
    %2052 = vmatprep.subr.mxu0 0.0
    %2053 = vmatpush2.msra.mxu0 0.0
    %2054 = vmatprep.subr.mxu0 0.0
    %2055 = vmatpush2.msra.mxu0 0.0
    %2056 = vmatprep.subr.mxu0 0.0
    %2057 = vmatpush2.msra.mxu0 0.0
    %2058 = vmatprep.subr.mxu0 0.0
    %2059 = vmatpush2.msra.mxu0 0.0
    %2060 = vmatprep.subr.mxu0 0.0
    %2061 = vmatpush2.msra.mxu0 0.0
    %2062 = vmatprep.subr.mxu0 0.0
    %2063 = vmatpush2.msra.mxu0 0.0
    %2064 = vmatprep.subr.mxu0 0.0
    %2065 = vmatpush2.msra.mxu0 0.0
    %2066 = vmatprep.subr.mxu0 0.0
    %2067 = vmatpush2.msra.mxu0 0.0
    %2068 = vmatprep.subr.mxu0 0.0
    %2069 = vmatpush2.msra.mxu0 0.0
    %2070 = vmatprep.subr.mxu0 0.0
    %2071 = vmatpush2.msra.mxu0 0.0
    %2072 = vmatprep.subr.mxu0 0.0
    %2073 = vmatpush2.msra.mxu0 0.0
    %2074 = vmatprep.subr.mxu0 0.0
    %2075 = vmatpush2.msra.mxu0 0.0
    %2076 = vmatprep.subr.mxu0 0.0
    %2077 = vmatpush2.msra.mxu0 0.0
    %2078 = vmatprep.subr.mxu0 0.0
    %2079 = vmatpush2.msra.mxu0 0.0
    %2080 = vmatprep.mubr.f32.mxu0 0.0
    %2081 = vmatmul.mubr.f32.gmra.mxu0 %v2006
    %v2082 = vpop.f32.mrf.mxu0
    %v2083 = vadd.f32 0.0, %v2082
    %v2084 = vpop.f32.mrf.mxu0
    %2085 = vmatprep.mubr.f32.mxu0 0.0
    %2086 = vmatmul.mubr.f32.gmra.mxu0 %v2009
    %v2087 = vpop.f32.mrf.mxu0
    %v2088 = vadd.f32 0.0, %v2087
    %v2089 = vpop.f32.mrf.mxu0
    %2090 = vmatprep.mubr.f32.mxu0 0.0
    %2091 = vmatmul.mubr.f32.gmra.mxu0 %v2012
    %v2092 = vpop.f32.mrf.mxu0
    %v2093 = vadd.f32 0.0, %v2092
    %v2094 = vpop.f32.mrf.mxu0
    %2095 = vdwg.mxu0
    %v2097 = vsel %vm892, %v2083, 0
    %v2100 = vsel %vm892, %v2088, 0
    %v2103 = vsel %vm892, %v2093, 0
    %2105 = vmatprep.subr.mxu0 0.0
    %2106 = vmatpush1.msra.mxu0 0.0
    %2107 = vmatprep.subr.mxu0 0.0
    %2108 = vmatpush1.msra.mxu0 0.0
    %2109 = vmatprep.subr.mxu0 0.0
    %2110 = vmatpush1.msra.mxu0 0.0
    %2111 = vmatprep.subr.mxu0 0.0
    %2112 = vmatpush1.msra.mxu0 0.0
    %2113 = vmatprep.subr.mxu0 0.0
    %2114 = vmatpush1.msra.mxu0 0.0
    %2115 = vmatprep.subr.mxu0 0.0
    %2116 = vmatpush1.msra.mxu0 0.0
    %2117 = vmatprep.subr.mxu0 0.0
    %2118 = vmatpush1.msra.mxu0 0.0
    %2119 = vmatprep.subr.mxu0 0.0
    %2120 = vmatpush1.msra.mxu0 0.0
    %2121 = vmatprep.subr.mxu0 0.0
    %2122 = vmatpush1.msra.mxu0 0.0
    %2123 = vmatprep.subr.mxu0 0.0
    %2124 = vmatpush1.msra.mxu0 0.0
    %2125 = vmatprep.subr.mxu0 0.0
    %2126 = vmatpush1.msra.mxu0 0.0
    %2127 = vmatprep.subr.mxu0 0.0
    %2128 = vmatpush1.msra.mxu0 0.0
    %2129 = vmatprep.subr.mxu0 0.0
    %2130 = vmatpush1.msra.mxu0 0.0
    %2131 = vmatprep.subr.mxu0 0.0
    %2132 = vmatpush1.msra.mxu0 0.0
    %2133 = vmatprep.subr.mxu0 0.0
    %2134 = vmatpush1.msra.mxu0 0.0
    %2135 = vmatprep.subr.mxu0 0.0
    %2136 = vmatpush1.msra.mxu0 %v875
    %2137 = vmatprep.subr.mxu0 0.0
    %2138 = vmatpush2.msra.mxu0 0.0
    %2139 = vmatprep.subr.mxu0 0.0
    %2140 = vmatpush2.msra.mxu0 0.0
    %2141 = vmatprep.subr.mxu0 0.0
    %2142 = vmatpush2.msra.mxu0 0.0
    %2143 = vmatprep.subr.mxu0 0.0
    %2144 = vmatpush2.msra.mxu0 0.0
    %2145 = vmatprep.subr.mxu0 0.0
    %2146 = vmatpush2.msra.mxu0 0.0
    %2147 = vmatprep.subr.mxu0 0.0
    %2148 = vmatpush2.msra.mxu0 0.0
    %2149 = vmatprep.subr.mxu0 0.0
    %2150 = vmatpush2.msra.mxu0 0.0
    %2151 = vmatprep.subr.mxu0 0.0
    %2152 = vmatpush2.msra.mxu0 0.0
    %2153 = vmatprep.subr.mxu0 0.0
    %2154 = vmatpush2.msra.mxu0 0.0
    %2155 = vmatprep.subr.mxu0 0.0
    %2156 = vmatpush2.msra.mxu0 0.0
    %2157 = vmatprep.subr.mxu0 0.0
    %2158 = vmatpush2.msra.mxu0 0.0
    %2159 = vmatprep.subr.mxu0 0.0
    %2160 = vmatpush2.msra.mxu0 0.0
    %2161 = vmatprep.subr.mxu0 0.0
    %2162 = vmatpush2.msra.mxu0 0.0
    %2163 = vmatprep.subr.mxu0 0.0
    %2164 = vmatpush2.msra.mxu0 0.0
    %2165 = vmatprep.subr.mxu0 0.0
    %2166 = vmatpush2.msra.mxu0 0.0
    %2167 = vmatprep.subr.mxu0 0.0
    %2168 = vmatpush2.msra.mxu0 0.0
    %2169 = vmatprep.mubr.f32.mxu0 0.0
    %2170 = vmatmul.mubr.f32.gmra.mxu0 %v2097
    %v2171 = vpop.f32.mrf.mxu0
    %v2172 = vadd.f32 0.0, %v2171
    %v2173 = vpop.f32.mrf.mxu0
    %2174 = vmatprep.mubr.f32.mxu0 0.0
    %2175 = vmatmul.mubr.f32.gmra.mxu0 %v2100
    %v2176 = vpop.f32.mrf.mxu0
    %v2177 = vadd.f32 0.0, %v2176
    %v2178 = vpop.f32.mrf.mxu0
    %2179 = vmatprep.mubr.f32.mxu0 0.0
    %2180 = vmatmul.mubr.f32.gmra.mxu0 %v2103
    %v2181 = vpop.f32.mrf.mxu0
    %v2182 = vadd.f32 0.0, %v2181
    %v2183 = vpop.f32.mrf.mxu0
    %2184 = vdwg.mxu0
    %v2185 = vadd.f32 %v1857, %v2172
    %v2186 = vadd.f32 %v1858, %v2177
    %v2187 = vadd.f32 %v1859, %v2182
    %2188 = vrot.lane.b32.xlu0 %v880, 96
    %v2189 = vpop.permute.xlu0 %2188
    %2190 = vrot.lane.b32.xlu0 %v881, 96
    %v2191 = vpop.permute.xlu0 %2190
    %2192 = vrot.lane.b32.xlu0 %v882, 96
    %v2193 = vpop.permute.xlu0 %2192
    %2194 = vrot.lane.b32.xlu0 %v853, 32
    %v2195 = vpop.permute.xlu0 %2194
    %2196 = vrot.lane.b32.xlu0 %v859, 32
    %v2197 = vpop.permute.xlu0 %2196
    %2198 = vrot.lane.b32.xlu0 %v865, 32
    %v2199 = vpop.permute.xlu0 %2198
    %v2200 = vsel %vm892, %v2189, 0
    %v2202 = vsel %vm892, %v2191, 0
    %v2204 = vsel %vm892, %v2193, 0
    %v2206 = vsel %vm892, %v2195, 0
    %v2208 = vsel %vm892, %v2197, 0
    %v2210 = vsel %vm892, %v2199, 0
    %2212 = vmatprep.subr.mxu0 0.0
    %2213 = vmatpush1.xpose.msra.mxu0 0.0
    %2214 = vmatprep.subr.mxu0 0.0
    %2215 = vmatpush1.xpose.msra.mxu0 0.0
    %2216 = vmatprep.subr.mxu0 0.0
    %2217 = vmatpush1.xpose.msra.mxu0 0.0
    %2218 = vmatprep.subr.mxu0 0.0
    %2219 = vmatpush1.xpose.msra.mxu0 0.0
    %2220 = vmatprep.subr.mxu0 0.0
    %2221 = vmatpush1.xpose.msra.mxu0 0.0
    %2222 = vmatprep.subr.mxu0 0.0
    %2223 = vmatpush1.xpose.msra.mxu0 0.0
    %2224 = vmatprep.subr.mxu0 0.0
    %2225 = vmatpush1.xpose.msra.mxu0 0.0
    %2226 = vmatprep.subr.mxu0 0.0
    %2227 = vmatpush1.xpose.msra.mxu0 0.0
    %2228 = vmatprep.subr.mxu0 0.0
    %2229 = vmatpush1.xpose.msra.mxu0 0.0
    %2230 = vmatprep.subr.mxu0 0.0
    %2231 = vmatpush1.xpose.msra.mxu0 0.0
    %2232 = vmatprep.subr.mxu0 0.0
    %2233 = vmatpush1.xpose.msra.mxu0 0.0
    %2234 = vmatprep.subr.mxu0 0.0
    %2235 = vmatpush1.xpose.msra.mxu0 0.0
    %2236 = vmatprep.subr.mxu0 0.0
    %2237 = vmatpush1.xpose.msra.mxu0 0.0
    %2238 = vmatprep.subr.mxu0 0.0
    %2239 = vmatpush1.xpose.msra.mxu0 %v2210
    %2240 = vmatprep.subr.mxu0 0.0
    %2241 = vmatpush1.xpose.msra.mxu0 %v2208
    %2242 = vmatprep.subr.mxu0 0.0
    %2243 = vmatpush1.xpose.msra.mxu0 %v2206
    %2244 = vmatprep.subr.mxu0 0.0
    %2245 = vmatpush2.xpose.msra.mxu0 0.0
    %2246 = vmatprep.subr.mxu0 0.0
    %2247 = vmatpush2.xpose.msra.mxu0 0.0
    %2248 = vmatprep.subr.mxu0 0.0
    %2249 = vmatpush2.xpose.msra.mxu0 0.0
    %2250 = vmatprep.subr.mxu0 0.0
    %2251 = vmatpush2.xpose.msra.mxu0 0.0
    %2252 = vmatprep.subr.mxu0 0.0
    %2253 = vmatpush2.xpose.msra.mxu0 0.0
    %2254 = vmatprep.subr.mxu0 0.0
    %2255 = vmatpush2.xpose.msra.mxu0 0.0
    %2256 = vmatprep.subr.mxu0 0.0
    %2257 = vmatpush2.xpose.msra.mxu0 0.0
    %2258 = vmatprep.subr.mxu0 0.0
    %2259 = vmatpush2.xpose.msra.mxu0 0.0
    %2260 = vmatprep.subr.mxu0 0.0
    %2261 = vmatpush2.xpose.msra.mxu0 0.0
    %2262 = vmatprep.subr.mxu0 0.0
    %2263 = vmatpush2.xpose.msra.mxu0 0.0
    %2264 = vmatprep.subr.mxu0 0.0
    %2265 = vmatpush2.xpose.msra.mxu0 0.0
    %2266 = vmatprep.subr.mxu0 0.0
    %2267 = vmatpush2.xpose.msra.mxu0 0.0
    %2268 = vmatprep.subr.mxu0 0.0
    %2269 = vmatpush2.xpose.msra.mxu0 0.0
    %2270 = vmatprep.subr.mxu0 0.0
    %2271 = vmatpush2.xpose.msra.mxu0 0.0
    %2272 = vmatprep.subr.mxu0 0.0
    %2273 = vmatpush2.xpose.msra.mxu0 0.0
    %2274 = vmatprep.subr.mxu0 0.0
    %2275 = vmatpush2.xpose.msra.mxu0 0.0
    %2276 = vmatprep.mubr.f32.mxu0 0.0
    %2277 = vmatmul.mubr.f32.gmra.mxu0 %v2200
    %v2278 = vpop.f32.mrf.mxu0
    %v2279 = vadd.f32 %v869, %v2278
    %v2280 = vpop.f32.mrf.mxu0
    %2281 = vmatprep.mubr.f32.mxu0 0.0
    %2282 = vmatmul.mubr.f32.gmra.mxu0 %v2202
    %v2283 = vpop.f32.mrf.mxu0
    %v2284 = vadd.f32 %v870, %v2283
    %v2285 = vpop.f32.mrf.mxu0
    %2286 = vmatprep.mubr.f32.mxu0 0.0
    %2287 = vmatmul.mubr.f32.gmra.mxu0 %v2204
    %v2288 = vpop.f32.mrf.mxu0
    %v2289 = vadd.f32 %v871, %v2288
    %v2290 = vpop.f32.mrf.mxu0
    %2291 = vdwg.mxu0
    %v2292 = vsel %vm988, %v2279, -inf
    %2293 = vmax.xlane.f32.xlu0 %v2292
    %v2294 = vpop.xlane.xlu0 %2293
    %v2295 = vsel %vm988, %v2284, -inf
    %2296 = vmax.xlane.f32.xlu0 %v2295
    %v2297 = vpop.xlane.xlu0 %2296
    %v2298 = vsel %vm995, %v2289, -inf
    %2299 = vmax.xlane.f32.xlu0 %v2298
    %v2300 = vpop.xlane.xlu0 %2299
    %v2301 = vsub.f32 %v2279, %v2294
    %v2302 = vsub.f32 %v2284, %v2297
    %v2303 = vsub.f32 %v2289, %v2300
    %v2304 = vmul.f32 %v2301, 1.442695
    %v2305 = vpow.pop %v2304
    %v2306 = vmul.f32 %v2302, 1.442695
    %v2307 = vpow.pop %v2306
    %v2308 = vmul.f32 %v2303, 1.442695
    %v2309 = vpow.pop %v2308
    %v2310 = vsel %vm988, %v2305, 0.0
    %2311 = vadd.xlane.f32.xlu0 %v2310
    %v2312 = vpop.xlane.xlu0 %2311
    %v2313 = vsel %vm988, %v2307, 0.0
    %2314 = vadd.xlane.f32.xlu0 %v2313
    %v2315 = vpop.xlane.xlu0 %2314
    %v2316 = vsel %vm995, %v2309, 0.0
    %2317 = vadd.xlane.f32.xlu0 %v2316
    %v2318 = vpop.xlane.xlu0 %2317
    %v2319 = vrcp.pop %v2312
    %v2320 = vrcp.pop %v2315
    %v2321 = vrcp.pop %v2318
    %v2322 = vmul.f32 %v2305, %v2319
    %v2323 = vmul.f32 %v2307, %v2320
    %v2324 = vmul.f32 %v2309, %v2321
    %2325 = vrot.lane.b32.xlu0 %v855, 96
    %v2326 = vpop.permute.xlu0 %2325
    %2327 = vrot.lane.b32.xlu0 %v861, 96
    %v2328 = vpop.permute.xlu0 %2327
    %2329 = vrot.lane.b32.xlu0 %v867, 96
    %v2330 = vpop.permute.xlu0 %2329
    %v2334 = vsel %vm988, %v2322, 0
    %v2337 = vsel %vm988, %v2323, 0
    %v2340 = vsel %vm988, %v2324, 0
    %v2342 = vsel %vm1032, %v2330, 0
    %2344 = vmatprep.subr.mxu0 0.0
    %2345 = vmatpush1.msra.mxu0 0.0
    %2346 = vmatprep.subr.mxu0 0.0
    %2347 = vmatpush1.msra.mxu0 0.0
    %2348 = vmatprep.subr.mxu0 0.0
    %2349 = vmatpush1.msra.mxu0 0.0
    %2350 = vmatprep.subr.mxu0 0.0
    %2351 = vmatpush1.msra.mxu0 0.0
    %2352 = vmatprep.subr.mxu0 0.0
    %2353 = vmatpush1.msra.mxu0 0.0
    %2354 = vmatprep.subr.mxu0 0.0
    %2355 = vmatpush1.msra.mxu0 0.0
    %2356 = vmatprep.subr.mxu0 0.0
    %2357 = vmatpush1.msra.mxu0 0.0
    %2358 = vmatprep.subr.mxu0 0.0
    %2359 = vmatpush1.msra.mxu0 0.0
    %2360 = vmatprep.subr.mxu0 0.0
    %2361 = vmatpush1.msra.mxu0 0.0
    %2362 = vmatprep.subr.mxu0 0.0
    %2363 = vmatpush1.msra.mxu0 0.0
    %2364 = vmatprep.subr.mxu0 0.0
    %2365 = vmatpush1.msra.mxu0 0.0
    %2366 = vmatprep.subr.mxu0 0.0
    %2367 = vmatpush1.msra.mxu0 0.0
    %2368 = vmatprep.subr.mxu0 0.0
    %2369 = vmatpush1.msra.mxu0 0.0
    %2370 = vmatprep.subr.mxu0 0.0
    %2371 = vmatpush1.msra.mxu0 %v2342
    %2372 = vmatprep.subr.mxu0 0.0
    %2373 = vmatpush1.msra.mxu0 %v2328
    %2374 = vmatprep.subr.mxu0 0.0
    %2375 = vmatpush1.msra.mxu0 %v2326
    %2376 = vmatprep.subr.mxu0 0.0
    %2377 = vmatpush2.msra.mxu0 0.0
    %2378 = vmatprep.subr.mxu0 0.0
    %2379 = vmatpush2.msra.mxu0 0.0
    %2380 = vmatprep.subr.mxu0 0.0
    %2381 = vmatpush2.msra.mxu0 0.0
    %2382 = vmatprep.subr.mxu0 0.0
    %2383 = vmatpush2.msra.mxu0 0.0
    %2384 = vmatprep.subr.mxu0 0.0
    %2385 = vmatpush2.msra.mxu0 0.0
    %2386 = vmatprep.subr.mxu0 0.0
    %2387 = vmatpush2.msra.mxu0 0.0
    %2388 = vmatprep.subr.mxu0 0.0
    %2389 = vmatpush2.msra.mxu0 0.0
    %2390 = vmatprep.subr.mxu0 0.0
    %2391 = vmatpush2.msra.mxu0 0.0
    %2392 = vmatprep.subr.mxu0 0.0
    %2393 = vmatpush2.msra.mxu0 0.0
    %2394 = vmatprep.subr.mxu0 0.0
    %2395 = vmatpush2.msra.mxu0 0.0
    %2396 = vmatprep.subr.mxu0 0.0
    %2397 = vmatpush2.msra.mxu0 0.0
    %2398 = vmatprep.subr.mxu0 0.0
    %2399 = vmatpush2.msra.mxu0 0.0
    %2400 = vmatprep.subr.mxu0 0.0
    %2401 = vmatpush2.msra.mxu0 0.0
    %2402 = vmatprep.subr.mxu0 0.0
    %2403 = vmatpush2.msra.mxu0 0.0
    %2404 = vmatprep.subr.mxu0 0.0
    %2405 = vmatpush2.msra.mxu0 0.0
    %2406 = vmatprep.subr.mxu0 0.0
    %2407 = vmatpush2.msra.mxu0 0.0
    %2408 = vmatprep.mubr.f32.mxu0 0.0
    %2409 = vmatmul.mubr.f32.gmra.mxu0 %v2334
    %v2410 = vpop.f32.mrf.mxu0
    %v2411 = vadd.f32 0.0, %v2410
    %v2412 = vpop.f32.mrf.mxu0
    %2413 = vmatprep.mubr.f32.mxu0 0.0
    %2414 = vmatmul.mubr.f32.gmra.mxu0 %v2337
    %v2415 = vpop.f32.mrf.mxu0
    %v2416 = vadd.f32 0.0, %v2415
    %v2417 = vpop.f32.mrf.mxu0
    %2418 = vmatprep.mubr.f32.mxu0 0.0
    %2419 = vmatmul.mubr.f32.gmra.mxu0 %v2340
    %v2420 = vpop.f32.mrf.mxu0
    %v2421 = vadd.f32 0.0, %v2420
    %v2422 = vpop.f32.mrf.mxu0
    %2423 = vdwg.mxu0
    %v2425 = vsel %vm892, %v2411, 0
    %v2428 = vsel %vm892, %v2416, 0
    %v2431 = vsel %vm892, %v2421, 0
    %2433 = vmatprep.subr.mxu0 0.0
    %2434 = vmatpush1.msra.mxu0 0.0
    %2435 = vmatprep.subr.mxu0 0.0
    %2436 = vmatpush1.msra.mxu0 0.0
    %2437 = vmatprep.subr.mxu0 0.0
    %2438 = vmatpush1.msra.mxu0 0.0
    %2439 = vmatprep.subr.mxu0 0.0
    %2440 = vmatpush1.msra.mxu0 0.0
    %2441 = vmatprep.subr.mxu0 0.0
    %2442 = vmatpush1.msra.mxu0 0.0
    %2443 = vmatprep.subr.mxu0 0.0
    %2444 = vmatpush1.msra.mxu0 0.0
    %2445 = vmatprep.subr.mxu0 0.0
    %2446 = vmatpush1.msra.mxu0 0.0
    %2447 = vmatprep.subr.mxu0 0.0
    %2448 = vmatpush1.msra.mxu0 0.0
    %2449 = vmatprep.subr.mxu0 0.0
    %2450 = vmatpush1.msra.mxu0 0.0
    %2451 = vmatprep.subr.mxu0 0.0
    %2452 = vmatpush1.msra.mxu0 0.0
    %2453 = vmatprep.subr.mxu0 0.0
    %2454 = vmatpush1.msra.mxu0 0.0
    %2455 = vmatprep.subr.mxu0 0.0
    %2456 = vmatpush1.msra.mxu0 0.0
    %2457 = vmatprep.subr.mxu0 0.0
    %2458 = vmatpush1.msra.mxu0 0.0
    %2459 = vmatprep.subr.mxu0 0.0
    %2460 = vmatpush1.msra.mxu0 0.0
    %2461 = vmatprep.subr.mxu0 0.0
    %2462 = vmatpush1.msra.mxu0 0.0
    %2463 = vmatprep.subr.mxu0 0.0
    %2464 = vmatpush1.msra.mxu0 %v876
    %2465 = vmatprep.subr.mxu0 0.0
    %2466 = vmatpush2.msra.mxu0 0.0
    %2467 = vmatprep.subr.mxu0 0.0
    %2468 = vmatpush2.msra.mxu0 0.0
    %2469 = vmatprep.subr.mxu0 0.0
    %2470 = vmatpush2.msra.mxu0 0.0
    %2471 = vmatprep.subr.mxu0 0.0
    %2472 = vmatpush2.msra.mxu0 0.0
    %2473 = vmatprep.subr.mxu0 0.0
    %2474 = vmatpush2.msra.mxu0 0.0
    %2475 = vmatprep.subr.mxu0 0.0
    %2476 = vmatpush2.msra.mxu0 0.0
    %2477 = vmatprep.subr.mxu0 0.0
    %2478 = vmatpush2.msra.mxu0 0.0
    %2479 = vmatprep.subr.mxu0 0.0
    %2480 = vmatpush2.msra.mxu0 0.0
    %2481 = vmatprep.subr.mxu0 0.0
    %2482 = vmatpush2.msra.mxu0 0.0
    %2483 = vmatprep.subr.mxu0 0.0
    %2484 = vmatpush2.msra.mxu0 0.0
    %2485 = vmatprep.subr.mxu0 0.0
    %2486 = vmatpush2.msra.mxu0 0.0
    %2487 = vmatprep.subr.mxu0 0.0
    %2488 = vmatpush2.msra.mxu0 0.0
    %2489 = vmatprep.subr.mxu0 0.0
    %2490 = vmatpush2.msra.mxu0 0.0
    %2491 = vmatprep.subr.mxu0 0.0
    %2492 = vmatpush2.msra.mxu0 0.0
    %2493 = vmatprep.subr.mxu0 0.0
    %2494 = vmatpush2.msra.mxu0 0.0
    %2495 = vmatprep.subr.mxu0 0.0
    %2496 = vmatpush2.msra.mxu0 0.0
    %2497 = vmatprep.mubr.f32.mxu0 0.0
    %2498 = vmatmul.mubr.f32.gmra.mxu0 %v2425
    %v2499 = vpop.f32.mrf.mxu0
    %v2500 = vadd.f32 0.0, %v2499
    %v2501 = vpop.f32.mrf.mxu0
    %2502 = vmatprep.mubr.f32.mxu0 0.0
    %2503 = vmatmul.mubr.f32.gmra.mxu0 %v2428
    %v2504 = vpop.f32.mrf.mxu0
    %v2505 = vadd.f32 0.0, %v2504
    %v2506 = vpop.f32.mrf.mxu0
    %2507 = vmatprep.mubr.f32.mxu0 0.0
    %2508 = vmatmul.mubr.f32.gmra.mxu0 %v2431
    %v2509 = vpop.f32.mrf.mxu0
    %v2510 = vadd.f32 0.0, %v2509
    %v2511 = vpop.f32.mrf.mxu0
    %2512 = vdwg.mxu0
    %v2513 = vadd.f32 %v2185, %v2500
    %v2514 = vadd.f32 %v2186, %v2505
    %v2515 = vadd.f32 %v2187, %v2510
    %2516 = vrot.lane.b32.xlu0 %v880, 88
    %v2517 = vpop.permute.xlu0 %2516
    %2518 = vrot.lane.b32.xlu0 %v881, 88
    %v2519 = vpop.permute.xlu0 %2518
    %2520 = vrot.lane.b32.xlu0 %v882, 88
    %v2521 = vpop.permute.xlu0 %2520
    %2522 = vrot.lane.b32.xlu0 %v853, 24
    %v2523 = vpop.permute.xlu0 %2522
    %2524 = vrot.lane.b32.xlu0 %v859, 24
    %v2525 = vpop.permute.xlu0 %2524
    %2526 = vrot.lane.b32.xlu0 %v865, 24
    %v2527 = vpop.permute.xlu0 %2526
    %v2528 = vsel %vm892, %v2517, 0
    %v2530 = vsel %vm892, %v2519, 0
    %v2532 = vsel %vm892, %v2521, 0
    %v2534 = vsel %vm892, %v2523, 0
    %v2536 = vsel %vm892, %v2525, 0
    %v2538 = vsel %vm892, %v2527, 0
    %2540 = vmatprep.subr.mxu0 0.0
    %2541 = vmatpush1.xpose.msra.mxu0 0.0
    %2542 = vmatprep.subr.mxu0 0.0
    %2543 = vmatpush1.xpose.msra.mxu0 0.0
    %2544 = vmatprep.subr.mxu0 0.0
    %2545 = vmatpush1.xpose.msra.mxu0 0.0
    %2546 = vmatprep.subr.mxu0 0.0
    %2547 = vmatpush1.xpose.msra.mxu0 0.0
    %2548 = vmatprep.subr.mxu0 0.0
    %2549 = vmatpush1.xpose.msra.mxu0 0.0
    %2550 = vmatprep.subr.mxu0 0.0
    %2551 = vmatpush1.xpose.msra.mxu0 0.0
    %2552 = vmatprep.subr.mxu0 0.0
    %2553 = vmatpush1.xpose.msra.mxu0 0.0
    %2554 = vmatprep.subr.mxu0 0.0
    %2555 = vmatpush1.xpose.msra.mxu0 0.0
    %2556 = vmatprep.subr.mxu0 0.0
    %2557 = vmatpush1.xpose.msra.mxu0 0.0
    %2558 = vmatprep.subr.mxu0 0.0
    %2559 = vmatpush1.xpose.msra.mxu0 0.0
    %2560 = vmatprep.subr.mxu0 0.0
    %2561 = vmatpush1.xpose.msra.mxu0 0.0
    %2562 = vmatprep.subr.mxu0 0.0
    %2563 = vmatpush1.xpose.msra.mxu0 0.0
    %2564 = vmatprep.subr.mxu0 0.0
    %2565 = vmatpush1.xpose.msra.mxu0 0.0
    %2566 = vmatprep.subr.mxu0 0.0
    %2567 = vmatpush1.xpose.msra.mxu0 %v2538
    %2568 = vmatprep.subr.mxu0 0.0
    %2569 = vmatpush1.xpose.msra.mxu0 %v2536
    %2570 = vmatprep.subr.mxu0 0.0
    %2571 = vmatpush1.xpose.msra.mxu0 %v2534
    %2572 = vmatprep.subr.mxu0 0.0
    %2573 = vmatpush2.xpose.msra.mxu0 0.0
    %2574 = vmatprep.subr.mxu0 0.0
    %2575 = vmatpush2.xpose.msra.mxu0 0.0
    %2576 = vmatprep.subr.mxu0 0.0
    %2577 = vmatpush2.xpose.msra.mxu0 0.0
    %2578 = vmatprep.subr.mxu0 0.0
    %2579 = vmatpush2.xpose.msra.mxu0 0.0
    %2580 = vmatprep.subr.mxu0 0.0
    %2581 = vmatpush2.xpose.msra.mxu0 0.0
    %2582 = vmatprep.subr.mxu0 0.0
    %2583 = vmatpush2.xpose.msra.mxu0 0.0
    %2584 = vmatprep.subr.mxu0 0.0
    %2585 = vmatpush2.xpose.msra.mxu0 0.0
    %2586 = vmatprep.subr.mxu0 0.0
    %2587 = vmatpush2.xpose.msra.mxu0 0.0
    %2588 = vmatprep.subr.mxu0 0.0
    %2589 = vmatpush2.xpose.msra.mxu0 0.0
    %2590 = vmatprep.subr.mxu0 0.0
    %2591 = vmatpush2.xpose.msra.mxu0 0.0
    %2592 = vmatprep.subr.mxu0 0.0
    %2593 = vmatpush2.xpose.msra.mxu0 0.0
    %2594 = vmatprep.subr.mxu0 0.0
    %2595 = vmatpush2.xpose.msra.mxu0 0.0
    %2596 = vmatprep.subr.mxu0 0.0
    %2597 = vmatpush2.xpose.msra.mxu0 0.0
    %2598 = vmatprep.subr.mxu0 0.0
    %2599 = vmatpush2.xpose.msra.mxu0 0.0
    %2600 = vmatprep.subr.mxu0 0.0
    %2601 = vmatpush2.xpose.msra.mxu0 0.0
    %2602 = vmatprep.subr.mxu0 0.0
    %2603 = vmatpush2.xpose.msra.mxu0 0.0
    %2604 = vmatprep.mubr.f32.mxu0 0.0
    %2605 = vmatmul.mubr.f32.gmra.mxu0 %v2528
    %v2606 = vpop.f32.mrf.mxu0
    %v2607 = vadd.f32 %v869, %v2606
    %v2608 = vpop.f32.mrf.mxu0
    %2609 = vmatprep.mubr.f32.mxu0 0.0
    %2610 = vmatmul.mubr.f32.gmra.mxu0 %v2530
    %v2611 = vpop.f32.mrf.mxu0
    %v2612 = vadd.f32 %v870, %v2611
    %v2613 = vpop.f32.mrf.mxu0
    %2614 = vmatprep.mubr.f32.mxu0 0.0
    %2615 = vmatmul.mubr.f32.gmra.mxu0 %v2532
    %v2616 = vpop.f32.mrf.mxu0
    %v2617 = vadd.f32 %v871, %v2616
    %v2618 = vpop.f32.mrf.mxu0
    %2619 = vdwg.mxu0
    %v2620 = vsel %vm988, %v2607, -inf
    %2621 = vmax.xlane.f32.xlu0 %v2620
    %v2622 = vpop.xlane.xlu0 %2621
    %v2623 = vsel %vm988, %v2612, -inf
    %2624 = vmax.xlane.f32.xlu0 %v2623
    %v2625 = vpop.xlane.xlu0 %2624
    %v2626 = vsel %vm995, %v2617, -inf
    %2627 = vmax.xlane.f32.xlu0 %v2626
    %v2628 = vpop.xlane.xlu0 %2627
    %v2629 = vsub.f32 %v2607, %v2622
    %v2630 = vsub.f32 %v2612, %v2625
    %v2631 = vsub.f32 %v2617, %v2628
    %v2632 = vmul.f32 %v2629, 1.442695
    %v2633 = vpow.pop %v2632
    %v2634 = vmul.f32 %v2630, 1.442695
    %v2635 = vpow.pop %v2634
    %v2636 = vmul.f32 %v2631, 1.442695
    %v2637 = vpow.pop %v2636
    %v2638 = vsel %vm988, %v2633, 0.0
    %2639 = vadd.xlane.f32.xlu0 %v2638
    %v2640 = vpop.xlane.xlu0 %2639
    %v2641 = vsel %vm988, %v2635, 0.0
    %2642 = vadd.xlane.f32.xlu0 %v2641
    %v2643 = vpop.xlane.xlu0 %2642
    %v2644 = vsel %vm995, %v2637, 0.0
    %2645 = vadd.xlane.f32.xlu0 %v2644
    %v2646 = vpop.xlane.xlu0 %2645
    %v2647 = vrcp.pop %v2640
    %v2648 = vrcp.pop %v2643
    %v2649 = vrcp.pop %v2646
    %v2650 = vmul.f32 %v2633, %v2647
    %v2651 = vmul.f32 %v2635, %v2648
    %v2652 = vmul.f32 %v2637, %v2649
    %2653 = vrot.lane.b32.xlu0 %v855, 88
    %v2654 = vpop.permute.xlu0 %2653
    %2655 = vrot.lane.b32.xlu0 %v861, 88
    %v2656 = vpop.permute.xlu0 %2655
    %2657 = vrot.lane.b32.xlu0 %v867, 88
    %v2658 = vpop.permute.xlu0 %2657
    %v2662 = vsel %vm988, %v2650, 0
    %v2665 = vsel %vm988, %v2651, 0
    %v2668 = vsel %vm988, %v2652, 0
    %v2670 = vsel %vm1032, %v2658, 0
    %2672 = vmatprep.subr.mxu0 0.0
    %2673 = vmatpush1.msra.mxu0 0.0
    %2674 = vmatprep.subr.mxu0 0.0
    %2675 = vmatpush1.msra.mxu0 0.0
    %2676 = vmatprep.subr.mxu0 0.0
    %2677 = vmatpush1.msra.mxu0 0.0
    %2678 = vmatprep.subr.mxu0 0.0
    %2679 = vmatpush1.msra.mxu0 0.0
    %2680 = vmatprep.subr.mxu0 0.0
    %2681 = vmatpush1.msra.mxu0 0.0
    %2682 = vmatprep.subr.mxu0 0.0
    %2683 = vmatpush1.msra.mxu0 0.0
    %2684 = vmatprep.subr.mxu0 0.0
    %2685 = vmatpush1.msra.mxu0 0.0
    %2686 = vmatprep.subr.mxu0 0.0
    %2687 = vmatpush1.msra.mxu0 0.0
    %2688 = vmatprep.subr.mxu0 0.0
    %2689 = vmatpush1.msra.mxu0 0.0
    %2690 = vmatprep.subr.mxu0 0.0
    %2691 = vmatpush1.msra.mxu0 0.0
    %2692 = vmatprep.subr.mxu0 0.0
    %2693 = vmatpush1.msra.mxu0 0.0
    %2694 = vmatprep.subr.mxu0 0.0
    %2695 = vmatpush1.msra.mxu0 0.0
    %2696 = vmatprep.subr.mxu0 0.0
    %2697 = vmatpush1.msra.mxu0 0.0
    %2698 = vmatprep.subr.mxu0 0.0
    %2699 = vmatpush1.msra.mxu0 %v2670
    %2700 = vmatprep.subr.mxu0 0.0
    %2701 = vmatpush1.msra.mxu0 %v2656
    %2702 = vmatprep.subr.mxu0 0.0
    %2703 = vmatpush1.msra.mxu0 %v2654
    %2704 = vmatprep.subr.mxu0 0.0
    %2705 = vmatpush2.msra.mxu0 0.0
    %2706 = vmatprep.subr.mxu0 0.0
    %2707 = vmatpush2.msra.mxu0 0.0
    %2708 = vmatprep.subr.mxu0 0.0
    %2709 = vmatpush2.msra.mxu0 0.0
    %2710 = vmatprep.subr.mxu0 0.0
    %2711 = vmatpush2.msra.mxu0 0.0
    %2712 = vmatprep.subr.mxu0 0.0
    %2713 = vmatpush2.msra.mxu0 0.0
    %2714 = vmatprep.subr.mxu0 0.0
    %2715 = vmatpush2.msra.mxu0 0.0
    %2716 = vmatprep.subr.mxu0 0.0
    %2717 = vmatpush2.msra.mxu0 0.0
    %2718 = vmatprep.subr.mxu0 0.0
    %2719 = vmatpush2.msra.mxu0 0.0
    %2720 = vmatprep.subr.mxu0 0.0
    %2721 = vmatpush2.msra.mxu0 0.0
    %2722 = vmatprep.subr.mxu0 0.0
    %2723 = vmatpush2.msra.mxu0 0.0
    %2724 = vmatprep.subr.mxu0 0.0
    %2725 = vmatpush2.msra.mxu0 0.0
    %2726 = vmatprep.subr.mxu0 0.0
    %2727 = vmatpush2.msra.mxu0 0.0
    %2728 = vmatprep.subr.mxu0 0.0
    %2729 = vmatpush2.msra.mxu0 0.0
    %2730 = vmatprep.subr.mxu0 0.0
    %2731 = vmatpush2.msra.mxu0 0.0
    %2732 = vmatprep.subr.mxu0 0.0
    %2733 = vmatpush2.msra.mxu0 0.0
    %2734 = vmatprep.subr.mxu0 0.0
    %2735 = vmatpush2.msra.mxu0 0.0
    %2736 = vmatprep.mubr.f32.mxu0 0.0
    %2737 = vmatmul.mubr.f32.gmra.mxu0 %v2662
    %v2738 = vpop.f32.mrf.mxu0
    %v2739 = vadd.f32 0.0, %v2738
    %v2740 = vpop.f32.mrf.mxu0
    %2741 = vmatprep.mubr.f32.mxu0 0.0
    %2742 = vmatmul.mubr.f32.gmra.mxu0 %v2665
    %v2743 = vpop.f32.mrf.mxu0
    %v2744 = vadd.f32 0.0, %v2743
    %v2745 = vpop.f32.mrf.mxu0
    %2746 = vmatprep.mubr.f32.mxu0 0.0
    %2747 = vmatmul.mubr.f32.gmra.mxu0 %v2668
    %v2748 = vpop.f32.mrf.mxu0
    %v2749 = vadd.f32 0.0, %v2748
    %v2750 = vpop.f32.mrf.mxu0
    %2751 = vdwg.mxu0
    %v2753 = vsel %vm892, %v2739, 0
    %v2756 = vsel %vm892, %v2744, 0
    %v2759 = vsel %vm892, %v2749, 0
    %2761 = vmatprep.subr.mxu0 0.0
    %2762 = vmatpush1.msra.mxu0 0.0
    %2763 = vmatprep.subr.mxu0 0.0
    %2764 = vmatpush1.msra.mxu0 0.0
    %2765 = vmatprep.subr.mxu0 0.0
    %2766 = vmatpush1.msra.mxu0 0.0
    %2767 = vmatprep.subr.mxu0 0.0
    %2768 = vmatpush1.msra.mxu0 0.0
    %2769 = vmatprep.subr.mxu0 0.0
    %2770 = vmatpush1.msra.mxu0 0.0
    %2771 = vmatprep.subr.mxu0 0.0
    %2772 = vmatpush1.msra.mxu0 0.0
    %2773 = vmatprep.subr.mxu0 0.0
    %2774 = vmatpush1.msra.mxu0 0.0
    %2775 = vmatprep.subr.mxu0 0.0
    %2776 = vmatpush1.msra.mxu0 0.0
    %2777 = vmatprep.subr.mxu0 0.0
    %2778 = vmatpush1.msra.mxu0 0.0
    %2779 = vmatprep.subr.mxu0 0.0
    %2780 = vmatpush1.msra.mxu0 0.0
    %2781 = vmatprep.subr.mxu0 0.0
    %2782 = vmatpush1.msra.mxu0 0.0
    %2783 = vmatprep.subr.mxu0 0.0
    %2784 = vmatpush1.msra.mxu0 0.0
    %2785 = vmatprep.subr.mxu0 0.0
    %2786 = vmatpush1.msra.mxu0 0.0
    %2787 = vmatprep.subr.mxu0 0.0
    %2788 = vmatpush1.msra.mxu0 0.0
    %2789 = vmatprep.subr.mxu0 0.0
    %2790 = vmatpush1.msra.mxu0 0.0
    %2791 = vmatprep.subr.mxu0 0.0
    %2792 = vmatpush1.msra.mxu0 %v877
    %2793 = vmatprep.subr.mxu0 0.0
    %2794 = vmatpush2.msra.mxu0 0.0
    %2795 = vmatprep.subr.mxu0 0.0
    %2796 = vmatpush2.msra.mxu0 0.0
    %2797 = vmatprep.subr.mxu0 0.0
    %2798 = vmatpush2.msra.mxu0 0.0
    %2799 = vmatprep.subr.mxu0 0.0
    %2800 = vmatpush2.msra.mxu0 0.0
    %2801 = vmatprep.subr.mxu0 0.0
    %2802 = vmatpush2.msra.mxu0 0.0
    %2803 = vmatprep.subr.mxu0 0.0
    %2804 = vmatpush2.msra.mxu0 0.0
    %2805 = vmatprep.subr.mxu0 0.0
    %2806 = vmatpush2.msra.mxu0 0.0
    %2807 = vmatprep.subr.mxu0 0.0
    %2808 = vmatpush2.msra.mxu0 0.0
    %2809 = vmatprep.subr.mxu0 0.0
    %2810 = vmatpush2.msra.mxu0 0.0
    %2811 = vmatprep.subr.mxu0 0.0
    %2812 = vmatpush2.msra.mxu0 0.0
    %2813 = vmatprep.subr.mxu0 0.0
    %2814 = vmatpush2.msra.mxu0 0.0
    %2815 = vmatprep.subr.mxu0 0.0
    %2816 = vmatpush2.msra.mxu0 0.0
    %2817 = vmatprep.subr.mxu0 0.0
    %2818 = vmatpush2.msra.mxu0 0.0
    %2819 = vmatprep.subr.mxu0 0.0
    %2820 = vmatpush2.msra.mxu0 0.0
    %2821 = vmatprep.subr.mxu0 0.0
    %2822 = vmatpush2.msra.mxu0 0.0
    %2823 = vmatprep.subr.mxu0 0.0
    %2824 = vmatpush2.msra.mxu0 0.0
    %2825 = vmatprep.mubr.f32.mxu0 0.0
    %2826 = vmatmul.mubr.f32.gmra.mxu0 %v2753
    %v2827 = vpop.f32.mrf.mxu0
    %v2828 = vadd.f32 0.0, %v2827
    %v2829 = vpop.f32.mrf.mxu0
    %2830 = vmatprep.mubr.f32.mxu0 0.0
    %2831 = vmatmul.mubr.f32.gmra.mxu0 %v2756
    %v2832 = vpop.f32.mrf.mxu0
    %v2833 = vadd.f32 0.0, %v2832
    %v2834 = vpop.f32.mrf.mxu0
    %2835 = vmatprep.mubr.f32.mxu0 0.0
    %2836 = vmatmul.mubr.f32.gmra.mxu0 %v2759
    %v2837 = vpop.f32.mrf.mxu0
    %v2838 = vadd.f32 0.0, %v2837
    %v2839 = vpop.f32.mrf.mxu0
    %2840 = vdwg.mxu0
    %v2841 = vadd.f32 %v2513, %v2828
    %v2842 = vadd.f32 %v2514, %v2833
    %v2843 = vadd.f32 %v2515, %v2838
    %2844 = vrot.lane.b32.xlu0 %v880, 80
    %v2845 = vpop.permute.xlu0 %2844
    %2846 = vrot.lane.b32.xlu0 %v881, 80
    %v2847 = vpop.permute.xlu0 %2846
    %2848 = vrot.lane.b32.xlu0 %v882, 80
    %v2849 = vpop.permute.xlu0 %2848
    %2850 = vrot.lane.b32.xlu0 %v853, 16
    %v2851 = vpop.permute.xlu0 %2850
    %2852 = vrot.lane.b32.xlu0 %v859, 16
    %v2853 = vpop.permute.xlu0 %2852
    %2854 = vrot.lane.b32.xlu0 %v865, 16
    %v2855 = vpop.permute.xlu0 %2854
    %v2856 = vsel %vm892, %v2845, 0
    %v2858 = vsel %vm892, %v2847, 0
    %v2860 = vsel %vm892, %v2849, 0
    %v2862 = vsel %vm892, %v2851, 0
    %v2864 = vsel %vm892, %v2853, 0
    %v2866 = vsel %vm892, %v2855, 0
    %2868 = vmatprep.subr.mxu0 0.0
    %2869 = vmatpush1.xpose.msra.mxu0 0.0
    %2870 = vmatprep.subr.mxu0 0.0
    %2871 = vmatpush1.xpose.msra.mxu0 0.0
    %2872 = vmatprep.subr.mxu0 0.0
    %2873 = vmatpush1.xpose.msra.mxu0 0.0
    %2874 = vmatprep.subr.mxu0 0.0
    %2875 = vmatpush1.xpose.msra.mxu0 0.0
    %2876 = vmatprep.subr.mxu0 0.0
    %2877 = vmatpush1.xpose.msra.mxu0 0.0
    %2878 = vmatprep.subr.mxu0 0.0
    %2879 = vmatpush1.xpose.msra.mxu0 0.0
    %2880 = vmatprep.subr.mxu0 0.0
    %2881 = vmatpush1.xpose.msra.mxu0 0.0
    %2882 = vmatprep.subr.mxu0 0.0
    %2883 = vmatpush1.xpose.msra.mxu0 0.0
    %2884 = vmatprep.subr.mxu0 0.0
    %2885 = vmatpush1.xpose.msra.mxu0 0.0
    %2886 = vmatprep.subr.mxu0 0.0
    %2887 = vmatpush1.xpose.msra.mxu0 0.0
    %2888 = vmatprep.subr.mxu0 0.0
    %2889 = vmatpush1.xpose.msra.mxu0 0.0
    %2890 = vmatprep.subr.mxu0 0.0
    %2891 = vmatpush1.xpose.msra.mxu0 0.0
    %2892 = vmatprep.subr.mxu0 0.0
    %2893 = vmatpush1.xpose.msra.mxu0 0.0
    %2894 = vmatprep.subr.mxu0 0.0
    %2895 = vmatpush1.xpose.msra.mxu0 %v2866
    %2896 = vmatprep.subr.mxu0 0.0
    %2897 = vmatpush1.xpose.msra.mxu0 %v2864
    %2898 = vmatprep.subr.mxu0 0.0
    %2899 = vmatpush1.xpose.msra.mxu0 %v2862
    %2900 = vmatprep.subr.mxu0 0.0
    %2901 = vmatpush2.xpose.msra.mxu0 0.0
    %2902 = vmatprep.subr.mxu0 0.0
    %2903 = vmatpush2.xpose.msra.mxu0 0.0
    %2904 = vmatprep.subr.mxu0 0.0
    %2905 = vmatpush2.xpose.msra.mxu0 0.0
    %2906 = vmatprep.subr.mxu0 0.0
    %2907 = vmatpush2.xpose.msra.mxu0 0.0
    %2908 = vmatprep.subr.mxu0 0.0
    %2909 = vmatpush2.xpose.msra.mxu0 0.0
    %2910 = vmatprep.subr.mxu0 0.0
    %2911 = vmatpush2.xpose.msra.mxu0 0.0
    %2912 = vmatprep.subr.mxu0 0.0
    %2913 = vmatpush2.xpose.msra.mxu0 0.0
    %2914 = vmatprep.subr.mxu0 0.0
    %2915 = vmatpush2.xpose.msra.mxu0 0.0
    %2916 = vmatprep.subr.mxu0 0.0
    %2917 = vmatpush2.xpose.msra.mxu0 0.0
    %2918 = vmatprep.subr.mxu0 0.0
    %2919 = vmatpush2.xpose.msra.mxu0 0.0
    %2920 = vmatprep.subr.mxu0 0.0
    %2921 = vmatpush2.xpose.msra.mxu0 0.0
    %2922 = vmatprep.subr.mxu0 0.0
    %2923 = vmatpush2.xpose.msra.mxu0 0.0
    %2924 = vmatprep.subr.mxu0 0.0
    %2925 = vmatpush2.xpose.msra.mxu0 0.0
    %2926 = vmatprep.subr.mxu0 0.0
    %2927 = vmatpush2.xpose.msra.mxu0 0.0
    %2928 = vmatprep.subr.mxu0 0.0
    %2929 = vmatpush2.xpose.msra.mxu0 0.0
    %2930 = vmatprep.subr.mxu0 0.0
    %2931 = vmatpush2.xpose.msra.mxu0 0.0
    %2932 = vmatprep.mubr.f32.mxu0 0.0
    %2933 = vmatmul.mubr.f32.gmra.mxu0 %v2856
    %v2934 = vpop.f32.mrf.mxu0
    %v2935 = vadd.f32 %v869, %v2934
    %v2936 = vpop.f32.mrf.mxu0
    %2937 = vmatprep.mubr.f32.mxu0 0.0
    %2938 = vmatmul.mubr.f32.gmra.mxu0 %v2858
    %v2939 = vpop.f32.mrf.mxu0
    %v2940 = vadd.f32 %v870, %v2939
    %v2941 = vpop.f32.mrf.mxu0
    %2942 = vmatprep.mubr.f32.mxu0 0.0
    %2943 = vmatmul.mubr.f32.gmra.mxu0 %v2860
    %v2944 = vpop.f32.mrf.mxu0
    %v2945 = vadd.f32 %v871, %v2944
    %v2946 = vpop.f32.mrf.mxu0
    %2947 = vdwg.mxu0
    %v2948 = vsel %vm988, %v2935, -inf
    %2949 = vmax.xlane.f32.xlu0 %v2948
    %v2950 = vpop.xlane.xlu0 %2949
    %v2951 = vsel %vm988, %v2940, -inf
    %2952 = vmax.xlane.f32.xlu0 %v2951
    %v2953 = vpop.xlane.xlu0 %2952
    %v2954 = vsel %vm995, %v2945, -inf
    %2955 = vmax.xlane.f32.xlu0 %v2954
    %v2956 = vpop.xlane.xlu0 %2955
    %v2957 = vsub.f32 %v2935, %v2950
    %v2958 = vsub.f32 %v2940, %v2953
    %v2959 = vsub.f32 %v2945, %v2956
    %v2960 = vmul.f32 %v2957, 1.442695
    %v2961 = vpow.pop %v2960
    %v2962 = vmul.f32 %v2958, 1.442695
    %v2963 = vpow.pop %v2962
    %v2964 = vmul.f32 %v2959, 1.442695
    %v2965 = vpow.pop %v2964
    %v2966 = vsel %vm988, %v2961, 0.0
    %2967 = vadd.xlane.f32.xlu0 %v2966
    %v2968 = vpop.xlane.xlu0 %2967
    %v2969 = vsel %vm988, %v2963, 0.0
    %2970 = vadd.xlane.f32.xlu0 %v2969
    %v2971 = vpop.xlane.xlu0 %2970
    %v2972 = vsel %vm995, %v2965, 0.0
    %2973 = vadd.xlane.f32.xlu0 %v2972
    %v2974 = vpop.xlane.xlu0 %2973
    %v2975 = vrcp.pop %v2968
    %v2976 = vrcp.pop %v2971
    %v2977 = vrcp.pop %v2974
    %v2978 = vmul.f32 %v2961, %v2975
    %v2979 = vmul.f32 %v2963, %v2976
    %v2980 = vmul.f32 %v2965, %v2977
    %2981 = vrot.lane.b32.xlu0 %v855, 80
    %v2982 = vpop.permute.xlu0 %2981
    %2983 = vrot.lane.b32.xlu0 %v861, 80
    %v2984 = vpop.permute.xlu0 %2983
    %2985 = vrot.lane.b32.xlu0 %v867, 80
    %v2986 = vpop.permute.xlu0 %2985
    %v2990 = vsel %vm988, %v2978, 0
    %v2993 = vsel %vm988, %v2979, 0
    %v2996 = vsel %vm988, %v2980, 0
    %v2998 = vsel %vm1032, %v2986, 0
    %3000 = vmatprep.subr.mxu0 0.0
    %3001 = vmatpush1.msra.mxu0 0.0
    %3002 = vmatprep.subr.mxu0 0.0
    %3003 = vmatpush1.msra.mxu0 0.0
    %3004 = vmatprep.subr.mxu0 0.0
    %3005 = vmatpush1.msra.mxu0 0.0
    %3006 = vmatprep.subr.mxu0 0.0
    %3007 = vmatpush1.msra.mxu0 0.0
    %3008 = vmatprep.subr.mxu0 0.0
    %3009 = vmatpush1.msra.mxu0 0.0
    %3010 = vmatprep.subr.mxu0 0.0
    %3011 = vmatpush1.msra.mxu0 0.0
    %3012 = vmatprep.subr.mxu0 0.0
    %3013 = vmatpush1.msra.mxu0 0.0
    %3014 = vmatprep.subr.mxu0 0.0
    %3015 = vmatpush1.msra.mxu0 0.0
    %3016 = vmatprep.subr.mxu0 0.0
    %3017 = vmatpush1.msra.mxu0 0.0
    %3018 = vmatprep.subr.mxu0 0.0
    %3019 = vmatpush1.msra.mxu0 0.0
    %3020 = vmatprep.subr.mxu0 0.0
    %3021 = vmatpush1.msra.mxu0 0.0
    %3022 = vmatprep.subr.mxu0 0.0
    %3023 = vmatpush1.msra.mxu0 0.0
    %3024 = vmatprep.subr.mxu0 0.0
    %3025 = vmatpush1.msra.mxu0 0.0
    %3026 = vmatprep.subr.mxu0 0.0
    %3027 = vmatpush1.msra.mxu0 %v2998
    %3028 = vmatprep.subr.mxu0 0.0
    %3029 = vmatpush1.msra.mxu0 %v2984
    %3030 = vmatprep.subr.mxu0 0.0
    %3031 = vmatpush1.msra.mxu0 %v2982
    %3032 = vmatprep.subr.mxu0 0.0
    %3033 = vmatpush2.msra.mxu0 0.0
    %3034 = vmatprep.subr.mxu0 0.0
    %3035 = vmatpush2.msra.mxu0 0.0
    %3036 = vmatprep.subr.mxu0 0.0
    %3037 = vmatpush2.msra.mxu0 0.0
    %3038 = vmatprep.subr.mxu0 0.0
    %3039 = vmatpush2.msra.mxu0 0.0
    %3040 = vmatprep.subr.mxu0 0.0
    %3041 = vmatpush2.msra.mxu0 0.0
    %3042 = vmatprep.subr.mxu0 0.0
    %3043 = vmatpush2.msra.mxu0 0.0
    %3044 = vmatprep.subr.mxu0 0.0
    %3045 = vmatpush2.msra.mxu0 0.0
    %3046 = vmatprep.subr.mxu0 0.0
    %3047 = vmatpush2.msra.mxu0 0.0
    %3048 = vmatprep.subr.mxu0 0.0
    %3049 = vmatpush2.msra.mxu0 0.0
    %3050 = vmatprep.subr.mxu0 0.0
    %3051 = vmatpush2.msra.mxu0 0.0
    %3052 = vmatprep.subr.mxu0 0.0
    %3053 = vmatpush2.msra.mxu0 0.0
    %3054 = vmatprep.subr.mxu0 0.0
    %3055 = vmatpush2.msra.mxu0 0.0
    %3056 = vmatprep.subr.mxu0 0.0
    %3057 = vmatpush2.msra.mxu0 0.0
    %3058 = vmatprep.subr.mxu0 0.0
    %3059 = vmatpush2.msra.mxu0 0.0
    %3060 = vmatprep.subr.mxu0 0.0
    %3061 = vmatpush2.msra.mxu0 0.0
    %3062 = vmatprep.subr.mxu0 0.0
    %3063 = vmatpush2.msra.mxu0 0.0
    %3064 = vmatprep.mubr.f32.mxu0 0.0
    %3065 = vmatmul.mubr.f32.gmra.mxu0 %v2990
    %v3066 = vpop.f32.mrf.mxu0
    %v3067 = vadd.f32 0.0, %v3066
    %v3068 = vpop.f32.mrf.mxu0
    %3069 = vmatprep.mubr.f32.mxu0 0.0
    %3070 = vmatmul.mubr.f32.gmra.mxu0 %v2993
    %v3071 = vpop.f32.mrf.mxu0
    %v3072 = vadd.f32 0.0, %v3071
    %v3073 = vpop.f32.mrf.mxu0
    %3074 = vmatprep.mubr.f32.mxu0 0.0
    %3075 = vmatmul.mubr.f32.gmra.mxu0 %v2996
    %v3076 = vpop.f32.mrf.mxu0
    %v3077 = vadd.f32 0.0, %v3076
    %v3078 = vpop.f32.mrf.mxu0
    %3079 = vdwg.mxu0
    %v3081 = vsel %vm892, %v3067, 0
    %v3084 = vsel %vm892, %v3072, 0
    %v3087 = vsel %vm892, %v3077, 0
    %3089 = vmatprep.subr.mxu0 0.0
    %3090 = vmatpush1.msra.mxu0 0.0
    %3091 = vmatprep.subr.mxu0 0.0
    %3092 = vmatpush1.msra.mxu0 0.0
    %3093 = vmatprep.subr.mxu0 0.0
    %3094 = vmatpush1.msra.mxu0 0.0
    %3095 = vmatprep.subr.mxu0 0.0
    %3096 = vmatpush1.msra.mxu0 0.0
    %3097 = vmatprep.subr.mxu0 0.0
    %3098 = vmatpush1.msra.mxu0 0.0
    %3099 = vmatprep.subr.mxu0 0.0
    %3100 = vmatpush1.msra.mxu0 0.0
    %3101 = vmatprep.subr.mxu0 0.0
    %3102 = vmatpush1.msra.mxu0 0.0
    %3103 = vmatprep.subr.mxu0 0.0
    %3104 = vmatpush1.msra.mxu0 0.0
    %3105 = vmatprep.subr.mxu0 0.0
    %3106 = vmatpush1.msra.mxu0 0.0
    %3107 = vmatprep.subr.mxu0 0.0
    %3108 = vmatpush1.msra.mxu0 0.0
    %3109 = vmatprep.subr.mxu0 0.0
    %3110 = vmatpush1.msra.mxu0 0.0
    %3111 = vmatprep.subr.mxu0 0.0
    %3112 = vmatpush1.msra.mxu0 0.0
    %3113 = vmatprep.subr.mxu0 0.0
    %3114 = vmatpush1.msra.mxu0 0.0
    %3115 = vmatprep.subr.mxu0 0.0
    %3116 = vmatpush1.msra.mxu0 0.0
    %3117 = vmatprep.subr.mxu0 0.0
    %3118 = vmatpush1.msra.mxu0 0.0
    %3119 = vmatprep.subr.mxu0 0.0
    %3120 = vmatpush1.msra.mxu0 %v878
    %3121 = vmatprep.subr.mxu0 0.0
    %3122 = vmatpush2.msra.mxu0 0.0
    %3123 = vmatprep.subr.mxu0 0.0
    %3124 = vmatpush2.msra.mxu0 0.0
    %3125 = vmatprep.subr.mxu0 0.0
    %3126 = vmatpush2.msra.mxu0 0.0
    %3127 = vmatprep.subr.mxu0 0.0
    %3128 = vmatpush2.msra.mxu0 0.0
    %3129 = vmatprep.subr.mxu0 0.0
    %3130 = vmatpush2.msra.mxu0 0.0
    %3131 = vmatprep.subr.mxu0 0.0
    %3132 = vmatpush2.msra.mxu0 0.0
    %3133 = vmatprep.subr.mxu0 0.0
    %3134 = vmatpush2.msra.mxu0 0.0
    %3135 = vmatprep.subr.mxu0 0.0
    %3136 = vmatpush2.msra.mxu0 0.0
    %3137 = vmatprep.subr.mxu0 0.0
    %3138 = vmatpush2.msra.mxu0 0.0
    %3139 = vmatprep.subr.mxu0 0.0
    %3140 = vmatpush2.msra.mxu0 0.0
    %3141 = vmatprep.subr.mxu0 0.0
    %3142 = vmatpush2.msra.mxu0 0.0
    %3143 = vmatprep.subr.mxu0 0.0
    %3144 = vmatpush2.msra.mxu0 0.0
    %3145 = vmatprep.subr.mxu0 0.0
    %3146 = vmatpush2.msra.mxu0 0.0
    %3147 = vmatprep.subr.mxu0 0.0
    %3148 = vmatpush2.msra.mxu0 0.0
    %3149 = vmatprep.subr.mxu0 0.0
    %3150 = vmatpush2.msra.mxu0 0.0
    %3151 = vmatprep.subr.mxu0 0.0
    %3152 = vmatpush2.msra.mxu0 0.0
    %3153 = vmatprep.mubr.f32.mxu0 0.0
    %3154 = vmatmul.mubr.f32.gmra.mxu0 %v3081
    %v3155 = vpop.f32.mrf.mxu0
    %v3156 = vadd.f32 0.0, %v3155
    %v3157 = vpop.f32.mrf.mxu0
    %3158 = vmatprep.mubr.f32.mxu0 0.0
    %3159 = vmatmul.mubr.f32.gmra.mxu0 %v3084
    %v3160 = vpop.f32.mrf.mxu0
    %v3161 = vadd.f32 0.0, %v3160
    %v3162 = vpop.f32.mrf.mxu0
    %3163 = vmatprep.mubr.f32.mxu0 0.0
    %3164 = vmatmul.mubr.f32.gmra.mxu0 %v3087
    %v3165 = vpop.f32.mrf.mxu0
    %v3166 = vadd.f32 0.0, %v3165
    %v3167 = vpop.f32.mrf.mxu0
    %3168 = vdwg.mxu0
    %v3169 = vadd.f32 %v2841, %v3156
    %v3170 = vadd.f32 %v2842, %v3161
    %v3171 = vadd.f32 %v2843, %v3166
    %3172 = vrot.lane.b32.xlu0 %v880, 72
    %v3173 = vpop.permute.xlu0 %3172
    %3174 = vrot.lane.b32.xlu0 %v881, 72
    %v3175 = vpop.permute.xlu0 %3174
    %3176 = vrot.lane.b32.xlu0 %v882, 72
    %v3177 = vpop.permute.xlu0 %3176
    %3178 = vrot.lane.b32.xlu0 %v853, 8
    %v3179 = vpop.permute.xlu0 %3178
    %3180 = vrot.lane.b32.xlu0 %v859, 8
    %v3181 = vpop.permute.xlu0 %3180
    %3182 = vrot.lane.b32.xlu0 %v865, 8
    %v3183 = vpop.permute.xlu0 %3182
    %v3184 = vsel %vm892, %v3173, 0
    %v3186 = vsel %vm892, %v3175, 0
    %v3188 = vsel %vm892, %v3177, 0
    %v3190 = vsel %vm892, %v3179, 0
    %v3192 = vsel %vm892, %v3181, 0
    %v3194 = vsel %vm892, %v3183, 0
    %3196 = vmatprep.subr.mxu0 0.0
    %3197 = vmatpush1.xpose.msra.mxu0 0.0
    %3198 = vmatprep.subr.mxu0 0.0
    %3199 = vmatpush1.xpose.msra.mxu0 0.0
    %3200 = vmatprep.subr.mxu0 0.0
    %3201 = vmatpush1.xpose.msra.mxu0 0.0
    %3202 = vmatprep.subr.mxu0 0.0
    %3203 = vmatpush1.xpose.msra.mxu0 0.0
    %3204 = vmatprep.subr.mxu0 0.0
    %3205 = vmatpush1.xpose.msra.mxu0 0.0
    %3206 = vmatprep.subr.mxu0 0.0
    %3207 = vmatpush1.xpose.msra.mxu0 0.0
    %3208 = vmatprep.subr.mxu0 0.0
    %3209 = vmatpush1.xpose.msra.mxu0 0.0
    %3210 = vmatprep.subr.mxu0 0.0
    %3211 = vmatpush1.xpose.msra.mxu0 0.0
    %3212 = vmatprep.subr.mxu0 0.0
    %3213 = vmatpush1.xpose.msra.mxu0 0.0
    %3214 = vmatprep.subr.mxu0 0.0
    %3215 = vmatpush1.xpose.msra.mxu0 0.0
    %3216 = vmatprep.subr.mxu0 0.0
    %3217 = vmatpush1.xpose.msra.mxu0 0.0
    %3218 = vmatprep.subr.mxu0 0.0
    %3219 = vmatpush1.xpose.msra.mxu0 0.0
    %3220 = vmatprep.subr.mxu0 0.0
    %3221 = vmatpush1.xpose.msra.mxu0 0.0
    %3222 = vmatprep.subr.mxu0 0.0
    %3223 = vmatpush1.xpose.msra.mxu0 %v3194
    %3224 = vmatprep.subr.mxu0 0.0
    %3225 = vmatpush1.xpose.msra.mxu0 %v3192
    %3226 = vmatprep.subr.mxu0 0.0
    %3227 = vmatpush1.xpose.msra.mxu0 %v3190
    %3228 = vmatprep.subr.mxu0 0.0
    %3229 = vmatpush2.xpose.msra.mxu0 0.0
    %3230 = vmatprep.subr.mxu0 0.0
    %3231 = vmatpush2.xpose.msra.mxu0 0.0
    %3232 = vmatprep.subr.mxu0 0.0
    %3233 = vmatpush2.xpose.msra.mxu0 0.0
    %3234 = vmatprep.subr.mxu0 0.0
    %3235 = vmatpush2.xpose.msra.mxu0 0.0
    %3236 = vmatprep.subr.mxu0 0.0
    %3237 = vmatpush2.xpose.msra.mxu0 0.0
    %3238 = vmatprep.subr.mxu0 0.0
    %3239 = vmatpush2.xpose.msra.mxu0 0.0
    %3240 = vmatprep.subr.mxu0 0.0
    %3241 = vmatpush2.xpose.msra.mxu0 0.0
    %3242 = vmatprep.subr.mxu0 0.0
    %3243 = vmatpush2.xpose.msra.mxu0 0.0
    %3244 = vmatprep.subr.mxu0 0.0
    %3245 = vmatpush2.xpose.msra.mxu0 0.0
    %3246 = vmatprep.subr.mxu0 0.0
    %3247 = vmatpush2.xpose.msra.mxu0 0.0
    %3248 = vmatprep.subr.mxu0 0.0
    %3249 = vmatpush2.xpose.msra.mxu0 0.0
    %3250 = vmatprep.subr.mxu0 0.0
    %3251 = vmatpush2.xpose.msra.mxu0 0.0
    %3252 = vmatprep.subr.mxu0 0.0
    %3253 = vmatpush2.xpose.msra.mxu0 0.0
    %3254 = vmatprep.subr.mxu0 0.0
    %3255 = vmatpush2.xpose.msra.mxu0 0.0
    %3256 = vmatprep.subr.mxu0 0.0
    %3257 = vmatpush2.xpose.msra.mxu0 0.0
    %3258 = vmatprep.subr.mxu0 0.0
    %3259 = vmatpush2.xpose.msra.mxu0 0.0
    %3260 = vmatprep.mubr.f32.mxu0 0.0
    %3261 = vmatmul.mubr.f32.gmra.mxu0 %v3184
    %v3262 = vpop.f32.mrf.mxu0
    %v3263 = vadd.f32 %v869, %v3262
    %v3264 = vpop.f32.mrf.mxu0
    %3265 = vmatprep.mubr.f32.mxu0 0.0
    %3266 = vmatmul.mubr.f32.gmra.mxu0 %v3186
    %v3267 = vpop.f32.mrf.mxu0
    %v3268 = vadd.f32 %v870, %v3267
    %v3269 = vpop.f32.mrf.mxu0
    %3270 = vmatprep.mubr.f32.mxu0 0.0
    %3271 = vmatmul.mubr.f32.gmra.mxu0 %v3188
    %v3272 = vpop.f32.mrf.mxu0
    %v3273 = vadd.f32 %v871, %v3272
    %v3274 = vpop.f32.mrf.mxu0
    %3275 = vdwg.mxu0
    %v3276 = vsel %vm988, %v3263, -inf
    %3277 = vmax.xlane.f32.xlu0 %v3276
    %v3278 = vpop.xlane.xlu0 %3277
    %v3279 = vsel %vm988, %v3268, -inf
    %3280 = vmax.xlane.f32.xlu0 %v3279
    %v3281 = vpop.xlane.xlu0 %3280
    %v3282 = vsel %vm995, %v3273, -inf
    %3283 = vmax.xlane.f32.xlu0 %v3282
    %v3284 = vpop.xlane.xlu0 %3283
    %v3285 = vsub.f32 %v3263, %v3278
    %v3286 = vsub.f32 %v3268, %v3281
    %v3287 = vsub.f32 %v3273, %v3284
    %v3288 = vmul.f32 %v3285, 1.442695
    %v3289 = vpow.pop %v3288
    %v3290 = vmul.f32 %v3286, 1.442695
    %v3291 = vpow.pop %v3290
    %v3292 = vmul.f32 %v3287, 1.442695
    %v3293 = vpow.pop %v3292
    %v3294 = vsel %vm988, %v3289, 0.0
    %3295 = vadd.xlane.f32.xlu0 %v3294
    %v3296 = vpop.xlane.xlu0 %3295
    %v3297 = vsel %vm988, %v3291, 0.0
    %3298 = vadd.xlane.f32.xlu0 %v3297
    %v3299 = vpop.xlane.xlu0 %3298
    %v3300 = vsel %vm995, %v3293, 0.0
    %3301 = vadd.xlane.f32.xlu0 %v3300
    %v3302 = vpop.xlane.xlu0 %3301
    %v3303 = vrcp.pop %v3296
    %v3304 = vrcp.pop %v3299
    %v3305 = vrcp.pop %v3302
    %v3306 = vmul.f32 %v3289, %v3303
    %v3307 = vmul.f32 %v3291, %v3304
    %v3308 = vmul.f32 %v3293, %v3305
    %3309 = vrot.lane.b32.xlu0 %v855, 72
    %v3310 = vpop.permute.xlu0 %3309
    %3311 = vrot.lane.b32.xlu0 %v861, 72
    %v3312 = vpop.permute.xlu0 %3311
    %3313 = vrot.lane.b32.xlu0 %v867, 72
    %v3314 = vpop.permute.xlu0 %3313
    %v3318 = vsel %vm988, %v3306, 0
    %v3321 = vsel %vm988, %v3307, 0
    %v3324 = vsel %vm988, %v3308, 0
    %v3326 = vsel %vm1032, %v3314, 0
    %3328 = vmatprep.subr.mxu0 0.0
    %3329 = vmatpush1.msra.mxu0 0.0
    %3330 = vmatprep.subr.mxu0 0.0
    %3331 = vmatpush1.msra.mxu0 0.0
    %3332 = vmatprep.subr.mxu0 0.0
    %3333 = vmatpush1.msra.mxu0 0.0
    %3334 = vmatprep.subr.mxu0 0.0
    %3335 = vmatpush1.msra.mxu0 0.0
    %3336 = vmatprep.subr.mxu0 0.0
    %3337 = vmatpush1.msra.mxu0 0.0
    %3338 = vmatprep.subr.mxu0 0.0
    %3339 = vmatpush1.msra.mxu0 0.0
    %3340 = vmatprep.subr.mxu0 0.0
    %3341 = vmatpush1.msra.mxu0 0.0
    %3342 = vmatprep.subr.mxu0 0.0
    %3343 = vmatpush1.msra.mxu0 0.0
    %3344 = vmatprep.subr.mxu0 0.0
    %3345 = vmatpush1.msra.mxu0 0.0
    %3346 = vmatprep.subr.mxu0 0.0
    %3347 = vmatpush1.msra.mxu0 0.0
    %3348 = vmatprep.subr.mxu0 0.0
    %3349 = vmatpush1.msra.mxu0 0.0
    %3350 = vmatprep.subr.mxu0 0.0
    %3351 = vmatpush1.msra.mxu0 0.0
    %3352 = vmatprep.subr.mxu0 0.0
    %3353 = vmatpush1.msra.mxu0 0.0
    %3354 = vmatprep.subr.mxu0 0.0
    %3355 = vmatpush1.msra.mxu0 %v3326
    %3356 = vmatprep.subr.mxu0 0.0
    %3357 = vmatpush1.msra.mxu0 %v3312
    %3358 = vmatprep.subr.mxu0 0.0
    %3359 = vmatpush1.msra.mxu0 %v3310
    %3360 = vmatprep.subr.mxu0 0.0
    %3361 = vmatpush2.msra.mxu0 0.0
    %3362 = vmatprep.subr.mxu0 0.0
    %3363 = vmatpush2.msra.mxu0 0.0
    %3364 = vmatprep.subr.mxu0 0.0
    %3365 = vmatpush2.msra.mxu0 0.0
    %3366 = vmatprep.subr.mxu0 0.0
    %3367 = vmatpush2.msra.mxu0 0.0
    %3368 = vmatprep.subr.mxu0 0.0
    %3369 = vmatpush2.msra.mxu0 0.0
    %3370 = vmatprep.subr.mxu0 0.0
    %3371 = vmatpush2.msra.mxu0 0.0
    %3372 = vmatprep.subr.mxu0 0.0
    %3373 = vmatpush2.msra.mxu0 0.0
    %3374 = vmatprep.subr.mxu0 0.0
    %3375 = vmatpush2.msra.mxu0 0.0
    %3376 = vmatprep.subr.mxu0 0.0
    %3377 = vmatpush2.msra.mxu0 0.0
    %3378 = vmatprep.subr.mxu0 0.0
    %3379 = vmatpush2.msra.mxu0 0.0
    %3380 = vmatprep.subr.mxu0 0.0
    %3381 = vmatpush2.msra.mxu0 0.0
    %3382 = vmatprep.subr.mxu0 0.0
    %3383 = vmatpush2.msra.mxu0 0.0
    %3384 = vmatprep.subr.mxu0 0.0
    %3385 = vmatpush2.msra.mxu0 0.0
    %3386 = vmatprep.subr.mxu0 0.0
    %3387 = vmatpush2.msra.mxu0 0.0
    %3388 = vmatprep.subr.mxu0 0.0
    %3389 = vmatpush2.msra.mxu0 0.0
    %3390 = vmatprep.subr.mxu0 0.0
    %3391 = vmatpush2.msra.mxu0 0.0
    %3392 = vmatprep.mubr.f32.mxu0 0.0
    %3393 = vmatmul.mubr.f32.gmra.mxu0 %v3318
    %v3394 = vpop.f32.mrf.mxu0
    %v3395 = vadd.f32 0.0, %v3394
    %v3396 = vpop.f32.mrf.mxu0
    %3397 = vmatprep.mubr.f32.mxu0 0.0
    %3398 = vmatmul.mubr.f32.gmra.mxu0 %v3321
    %v3399 = vpop.f32.mrf.mxu0
    %v3400 = vadd.f32 0.0, %v3399
    %v3401 = vpop.f32.mrf.mxu0
    %3402 = vmatprep.mubr.f32.mxu0 0.0
    %3403 = vmatmul.mubr.f32.gmra.mxu0 %v3324
    %v3404 = vpop.f32.mrf.mxu0
    %v3405 = vadd.f32 0.0, %v3404
    %v3406 = vpop.f32.mrf.mxu0
    %3407 = vdwg.mxu0
    %v3409 = vsel %vm892, %v3395, 0
    %v3412 = vsel %vm892, %v3400, 0
    %v3415 = vsel %vm892, %v3405, 0
    %3417 = vmatprep.subr.mxu0 0.0
    %3418 = vmatpush1.msra.mxu0 0.0
    %3419 = vmatprep.subr.mxu0 0.0
    %3420 = vmatpush1.msra.mxu0 0.0
    %3421 = vmatprep.subr.mxu0 0.0
    %3422 = vmatpush1.msra.mxu0 0.0
    %3423 = vmatprep.subr.mxu0 0.0
    %3424 = vmatpush1.msra.mxu0 0.0
    %3425 = vmatprep.subr.mxu0 0.0
    %3426 = vmatpush1.msra.mxu0 0.0
    %3427 = vmatprep.subr.mxu0 0.0
    %3428 = vmatpush1.msra.mxu0 0.0
    %3429 = vmatprep.subr.mxu0 0.0
    %3430 = vmatpush1.msra.mxu0 0.0
    %3431 = vmatprep.subr.mxu0 0.0
    %3432 = vmatpush1.msra.mxu0 0.0
    %3433 = vmatprep.subr.mxu0 0.0
    %3434 = vmatpush1.msra.mxu0 0.0
    %3435 = vmatprep.subr.mxu0 0.0
    %3436 = vmatpush1.msra.mxu0 0.0
    %3437 = vmatprep.subr.mxu0 0.0
    %3438 = vmatpush1.msra.mxu0 0.0
    %3439 = vmatprep.subr.mxu0 0.0
    %3440 = vmatpush1.msra.mxu0 0.0
    %3441 = vmatprep.subr.mxu0 0.0
    %3442 = vmatpush1.msra.mxu0 0.0
    %3443 = vmatprep.subr.mxu0 0.0
    %3444 = vmatpush1.msra.mxu0 0.0
    %3445 = vmatprep.subr.mxu0 0.0
    %3446 = vmatpush1.msra.mxu0 0.0
    %3447 = vmatprep.subr.mxu0 0.0
    %3448 = vmatpush1.msra.mxu0 %v879
    %3449 = vmatprep.subr.mxu0 0.0
    %3450 = vmatpush2.msra.mxu0 0.0
    %3451 = vmatprep.subr.mxu0 0.0
    %3452 = vmatpush2.msra.mxu0 0.0
    %3453 = vmatprep.subr.mxu0 0.0
    %3454 = vmatpush2.msra.mxu0 0.0
    %3455 = vmatprep.subr.mxu0 0.0
    %3456 = vmatpush2.msra.mxu0 0.0
    %3457 = vmatprep.subr.mxu0 0.0
    %3458 = vmatpush2.msra.mxu0 0.0
    %3459 = vmatprep.subr.mxu0 0.0
    %3460 = vmatpush2.msra.mxu0 0.0
    %3461 = vmatprep.subr.mxu0 0.0
    %3462 = vmatpush2.msra.mxu0 0.0
    %3463 = vmatprep.subr.mxu0 0.0
    %3464 = vmatpush2.msra.mxu0 0.0
    %3465 = vmatprep.subr.mxu0 0.0
    %3466 = vmatpush2.msra.mxu0 0.0
    %3467 = vmatprep.subr.mxu0 0.0
    %3468 = vmatpush2.msra.mxu0 0.0
    %3469 = vmatprep.subr.mxu0 0.0
    %3470 = vmatpush2.msra.mxu0 0.0
    %3471 = vmatprep.subr.mxu0 0.0
    %3472 = vmatpush2.msra.mxu0 0.0
    %3473 = vmatprep.subr.mxu0 0.0
    %3474 = vmatpush2.msra.mxu0 0.0
    %3475 = vmatprep.subr.mxu0 0.0
    %3476 = vmatpush2.msra.mxu0 0.0
    %3477 = vmatprep.subr.mxu0 0.0
    %3478 = vmatpush2.msra.mxu0 0.0
    %3479 = vmatprep.subr.mxu0 0.0
    %3480 = vmatpush2.msra.mxu0 0.0
    %3481 = vmatprep.mubr.f32.mxu0 0.0
    %3482 = vmatmul.mubr.f32.gmra.mxu0 %v3409
    %v3483 = vpop.f32.mrf.mxu0
    %v3484 = vadd.f32 0.0, %v3483
    %v3485 = vpop.f32.mrf.mxu0
    %3486 = vmatprep.mubr.f32.mxu0 0.0
    %3487 = vmatmul.mubr.f32.gmra.mxu0 %v3412
    %v3488 = vpop.f32.mrf.mxu0
    %v3489 = vadd.f32 0.0, %v3488
    %v3490 = vpop.f32.mrf.mxu0
    %3491 = vmatprep.mubr.f32.mxu0 0.0
    %3492 = vmatmul.mubr.f32.gmra.mxu0 %v3415
    %v3493 = vpop.f32.mrf.mxu0
    %v3494 = vadd.f32 0.0, %v3493
    %v3495 = vpop.f32.mrf.mxu0
    %3496 = vdwg.mxu0
    %v3497 = vadd.f32 %v3169, %v3484
    %v3498 = vadd.f32 %v3170, %v3489
    %v3499 = vadd.f32 %v3171, %v3494
    %v3500 = vld [vmem:[%s31] sm:$0x1]
    %v3502 = vlaneseq
    %v3503 = vshrl.u32 %v3502, 7
    %v3504 = vsub.s32 0, %v3503
    %v3505 = vrot.slane %v3500, %v3504
    %v3507 = vadd.f32 %v3497, %v3505
    %v3508 = vadd.f32 %v3498, %v3505
    %v3509 = vadd.f32 %v3499, %v3505
    %v3510 = vadd.f32 %v746, %v3507
    %v3511 = vadd.f32 %v747, %v3508
    %v3512 = vadd.f32 %v748, %v3509
    %v3513 = vld [vmem:[%s33] sm:$0x1]
    %v3514 = vld [vmem:[%s35] sm:$0x1]
    %v3515 = vsel %vm735, %v3510, 0.0
    %3516 = vadd.xlane.f32.xlu0 %v3515
    %v3517 = vpop.xlane.xlu0 %3516
    %v3518 = vsel %vm735, %v3511, 0.0
    %3519 = vadd.xlane.f32.xlu0 %v3518
    %v3520 = vpop.xlane.xlu0 %3519
    %v3521 = vsel %vm738, %v3512, 0.0
    %3522 = vadd.xlane.f32.xlu0 %v3521
    %v3523 = vpop.xlane.xlu0 %3522
    %v3524 = vrcp.pop 64.0
    %v3525 = vmul.f32 %v3517, %v3524
    %v3526 = vmul.f32 %v3520, %v3524
    %v3527 = vmul.f32 %v3523, %v3524
    %v3528 = vsub.f32 %v3510, %v3525
    %v3529 = vsub.f32 %v3511, %v3526
    %v3530 = vsub.f32 %v3512, %v3527
    %v3531 = vmul.f32 %v3528, %v3528
    %v3532 = vmul.f32 %v3529, %v3529
    %v3533 = vmul.f32 %v3530, %v3530
    %v3534 = vsel %vm735, %v3531, 0.0
    %3535 = vadd.xlane.f32.xlu0 %v3534
    %v3536 = vpop.xlane.xlu0 %3535
    %v3537 = vsel %vm735, %v3532, 0.0
    %3538 = vadd.xlane.f32.xlu0 %v3537
    %v3539 = vpop.xlane.xlu0 %3538
    %v3540 = vsel %vm738, %v3533, 0.0
    %3541 = vadd.xlane.f32.xlu0 %v3540
    %v3542 = vpop.xlane.xlu0 %3541
    %v3543 = vmul.f32 %v3536, %v3524
    %v3544 = vmul.f32 %v3539, %v3524
    %v3545 = vmul.f32 %v3542, %v3524
    %v3546 = vadd.f32 %v3543, 1e-05
    %v3547 = vadd.f32 %v3544, 1e-05
    %v3548 = vadd.f32 %v3545, 1e-05
    %v3549 = vrsqrt.pop %v3546
    %v3550 = vrsqrt.pop %v3547
    %v3551 = vrsqrt.pop %v3548
    %v3552 = vmul.f32 %v3528, %v3549
    %v3553 = vmul.f32 %v3529, %v3550
    %v3554 = vmul.f32 %v3530, %v3551
    %v3556 = vlaneseq
    %v3557 = vshrl.u32 %v3556, 7
    %v3558 = vsub.s32 0, %v3557
    %v3559 = vrot.slane %v3513, %v3558
    %v3561 = vmul.f32 %v3552, %v3559
    %v3562 = vmul.f32 %v3553, %v3559
    %v3563 = vmul.f32 %v3554, %v3559
    %v3565 = vlaneseq
    %v3566 = vshrl.u32 %v3565, 7
    %v3567 = vsub.s32 0, %v3566
    %v3568 = vrot.slane %v3514, %v3567
    %v3570 = vadd.f32 %v3561, %v3568
    %v3571 = vadd.f32 %v3562, %v3568
    %v3572 = vadd.f32 %v3563, %v3568
    %v3573 = vld [vmem:[%s37] sm:$0xff]
    %v3574 = vld [vmem:[%s37 + $0x8] sm:$0xff]
    %v3575 = vld [vmem:[%s37 + $0x10] sm:$0xff]
    %v3576 = vld [vmem:[%s37 + $0x18] sm:$0xff]
    %v3577 = vld [vmem:[%s37 + $0x20] sm:$0xff]
    %v3578 = vld [vmem:[%s37 + $0x28] sm:$0xff]
    %v3579 = vld [vmem:[%s37 + $0x30] sm:$0xff]
    %v3580 = vld [vmem:[%s37 + $0x38] sm:$0xff]
    %v3581 = vld [vmem:[%s37 + $0x40] sm:$0xff]
    %v3582 = vld [vmem:[%s37 + $0x48] sm:$0xff]
    %v3583 = vld [vmem:[%s37 + $0x50] sm:$0xff]
    %v3584 = vld [vmem:[%s37 + $0x58] sm:$0xff]
    %v3585 = vld [vmem:[%s37 + $0x60] sm:$0xff]
    %v3586 = vld [vmem:[%s37 + $0x68] sm:$0xff]
    %v3587 = vld [vmem:[%s37 + $0x70] sm:$0xff]
    %v3588 = vld [vmem:[%s37 + $0x78] sm:$0xff]
    %v3589 = vld [vmem:[%s37 + $0x80] sm:$0xff]
    %v3590 = vld [vmem:[%s37 + $0x88] sm:$0xff]
    %v3591 = vld [vmem:[%s37 + $0x90] sm:$0xff]
    %v3592 = vld [vmem:[%s37 + $0x98] sm:$0xff]
    %v3593 = vld [vmem:[%s37 + $0xa0] sm:$0xff]
    %v3594 = vld [vmem:[%s37 + $0xa8] sm:$0xff]
    %v3595 = vld [vmem:[%s37 + $0xb0] sm:$0xff]
    %v3596 = vld [vmem:[%s37 + $0xb8] sm:$0xff]
    %v3597 = vld [vmem:[%s37 + $0xc0] sm:$0xff]
    %v3598 = vld [vmem:[%s37 + $0xc8] sm:$0xff]
    %v3599 = vld [vmem:[%s37 + $0xd0] sm:$0xff]
    %v3600 = vld [vmem:[%s37 + $0xd8] sm:$0xff]
    %v3601 = vld [vmem:[%s37 + $0xe0] sm:$0xff]
    %v3602 = vld [vmem:[%s37 + $0xe8] sm:$0xff]
    %v3603 = vld [vmem:[%s37 + $0xf0] sm:$0xff]
    %v3604 = vld [vmem:[%s37 + $0xf8] sm:$0xff]
    %v3605 = vld [vmem:[%s39] sm:$0xf]
    %v3607 = vlaneseq
    %v3608 = vshrl.u32 %v3607, 7
    %v3609 = vsub.s32 0, %v3608
    %v3610 = vrot.slane %v3605, %v3609
    %v3611 = vlaneseq
    %v3612 = vshrl.u32 %v3611, 7
    %v3613 = vsub.s32 1, %v3612
    %v3614 = vrot.slane %v3605, %v3613
    %v3615 = vlaneseq
    %v3616 = vshrl.u32 %v3615, 7
    %v3617 = vsub.s32 2, %v3616
    %v3618 = vrot.slane %v3605, %v3617
    %v3619 = vlaneseq
    %v3620 = vshrl.u32 %v3619, 7
    %v3621 = vsub.s32 3, %v3620
    %v3622 = vrot.slane %v3605, %v3621
    %v3628 = vsel %vm735, %v3570, 0
    %v3631 = vsel %vm735, %v3571, 0
    %v3634 = vsel %vm735, %v3572, 0
    %3636 = vmatprep.subr.mxu0 0.0
    %3637 = vmatpush1.msra.mxu0 0.0
    %3638 = vmatprep.subr.mxu0 0.0
    %3639 = vmatpush1.msra.mxu0 0.0
    %3640 = vmatprep.subr.mxu0 0.0
    %3641 = vmatpush1.msra.mxu0 0.0
    %3642 = vmatprep.subr.mxu0 0.0
    %3643 = vmatpush1.msra.mxu0 0.0
    %3644 = vmatprep.subr.mxu0 0.0
    %3645 = vmatpush1.msra.mxu0 0.0
    %3646 = vmatprep.subr.mxu0 0.0
    %3647 = vmatpush1.msra.mxu0 0.0
    %3648 = vmatprep.subr.mxu0 0.0
    %3649 = vmatpush1.msra.mxu0 0.0
    %3650 = vmatprep.subr.mxu0 0.0
    %3651 = vmatpush1.msra.mxu0 0.0
    %3652 = vmatprep.subr.mxu0 %v3602
    %3653 = vmatpush1.msra.mxu0 %v3601
    %3654 = vmatprep.subr.mxu0 %v3598
    %3655 = vmatpush1.msra.mxu0 %v3597
    %3656 = vmatprep.subr.mxu0 %v3594
    %3657 = vmatpush1.msra.mxu0 %v3593
    %3658 = vmatprep.subr.mxu0 %v3590
    %3659 = vmatpush1.msra.mxu0 %v3589
    %3660 = vmatprep.subr.mxu0 %v3586
    %3661 = vmatpush1.msra.mxu0 %v3585
    %3662 = vmatprep.subr.mxu0 %v3582
    %3663 = vmatpush1.msra.mxu0 %v3581
    %3664 = vmatprep.subr.mxu0 %v3578
    %3665 = vmatpush1.msra.mxu0 %v3577
    %3666 = vmatprep.subr.mxu0 %v3574
    %3667 = vmatpush1.msra.mxu0 %v3573
    %3668 = vmatprep.subr.mxu0 0.0
    %3669 = vmatpush2.msra.mxu0 0.0
    %3670 = vmatprep.subr.mxu0 0.0
    %3671 = vmatpush2.msra.mxu0 0.0
    %3672 = vmatprep.subr.mxu0 0.0
    %3673 = vmatpush2.msra.mxu0 0.0
    %3674 = vmatprep.subr.mxu0 0.0
    %3675 = vmatpush2.msra.mxu0 0.0
    %3676 = vmatprep.subr.mxu0 0.0
    %3677 = vmatpush2.msra.mxu0 0.0
    %3678 = vmatprep.subr.mxu0 0.0
    %3679 = vmatpush2.msra.mxu0 0.0
    %3680 = vmatprep.subr.mxu0 0.0
    %3681 = vmatpush2.msra.mxu0 0.0
    %3682 = vmatprep.subr.mxu0 0.0
    %3683 = vmatpush2.msra.mxu0 0.0
    %3684 = vmatprep.subr.mxu0 0.0
    %3685 = vmatpush2.msra.mxu0 0.0
    %3686 = vmatprep.subr.mxu0 0.0
    %3687 = vmatpush2.msra.mxu0 0.0
    %3688 = vmatprep.subr.mxu0 0.0
    %3689 = vmatpush2.msra.mxu0 0.0
    %3690 = vmatprep.subr.mxu0 0.0
    %3691 = vmatpush2.msra.mxu0 0.0
    %3692 = vmatprep.subr.mxu0 0.0
    %3693 = vmatpush2.msra.mxu0 0.0
    %3694 = vmatprep.subr.mxu0 0.0
    %3695 = vmatpush2.msra.mxu0 0.0
    %3696 = vmatprep.subr.mxu0 0.0
    %3697 = vmatpush2.msra.mxu0 0.0
    %3698 = vmatprep.subr.mxu0 0.0
    %3699 = vmatpush2.msra.mxu0 0.0
    %3700 = vmatprep.mubr.f32.mxu0 0.0
    %3701 = vmatmul.mubr.f32.gmra.mxu0 %v3628
    %v3702 = vpop.f32.mrf.mxu0
    %v3703 = vadd.f32 %v3610, %v3702
    %v3704 = vpop.f32.mrf.mxu0
    %v3705 = vadd.f32 %v3614, %v3704
    %3706 = vmatprep.mubr.f32.mxu0 0.0
    %3707 = vmatmul.mubr.f32.gmra.mxu0 %v3631
    %v3708 = vpop.f32.mrf.mxu0
    %v3709 = vadd.f32 %v3610, %v3708
    %v3710 = vpop.f32.mrf.mxu0
    %v3711 = vadd.f32 %v3614, %v3710
    %3712 = vmatprep.mubr.f32.mxu0 0.0
    %3713 = vmatmul.mubr.f32.gmra.mxu0 %v3634
    %v3714 = vpop.f32.mrf.mxu0
    %v3715 = vadd.f32 %v3610, %v3714
    %v3716 = vpop.f32.mrf.mxu0
    %v3717 = vadd.f32 %v3614, %v3716
    %3718 = vdwg.mxu0
    %3719 = vmatprep.subr.mxu0 0.0
    %3720 = vmatpush1.msra.mxu0 0.0
    %3721 = vmatprep.subr.mxu0 0.0
    %3722 = vmatpush1.msra.mxu0 0.0
    %3723 = vmatprep.subr.mxu0 0.0
    %3724 = vmatpush1.msra.mxu0 0.0
    %3725 = vmatprep.subr.mxu0 0.0
    %3726 = vmatpush1.msra.mxu0 0.0
    %3727 = vmatprep.subr.mxu0 0.0
    %3728 = vmatpush1.msra.mxu0 0.0
    %3729 = vmatprep.subr.mxu0 0.0
    %3730 = vmatpush1.msra.mxu0 0.0
    %3731 = vmatprep.subr.mxu0 0.0
    %3732 = vmatpush1.msra.mxu0 0.0
    %3733 = vmatprep.subr.mxu0 0.0
    %3734 = vmatpush1.msra.mxu0 0.0
    %3735 = vmatprep.subr.mxu0 %v3604
    %3736 = vmatpush1.msra.mxu0 %v3603
    %3737 = vmatprep.subr.mxu0 %v3600
    %3738 = vmatpush1.msra.mxu0 %v3599
    %3739 = vmatprep.subr.mxu0 %v3596
    %3740 = vmatpush1.msra.mxu0 %v3595
    %3741 = vmatprep.subr.mxu0 %v3592
    %3742 = vmatpush1.msra.mxu0 %v3591
    %3743 = vmatprep.subr.mxu0 %v3588
    %3744 = vmatpush1.msra.mxu0 %v3587
    %3745 = vmatprep.subr.mxu0 %v3584
    %3746 = vmatpush1.msra.mxu0 %v3583
    %3747 = vmatprep.subr.mxu0 %v3580
    %3748 = vmatpush1.msra.mxu0 %v3579
    %3749 = vmatprep.subr.mxu0 %v3576
    %3750 = vmatpush1.msra.mxu0 %v3575
    %3751 = vmatprep.subr.mxu0 0.0
    %3752 = vmatpush2.msra.mxu0 0.0
    %3753 = vmatprep.subr.mxu0 0.0
    %3754 = vmatpush2.msra.mxu0 0.0
    %3755 = vmatprep.subr.mxu0 0.0
    %3756 = vmatpush2.msra.mxu0 0.0
    %3757 = vmatprep.subr.mxu0 0.0
    %3758 = vmatpush2.msra.mxu0 0.0
    %3759 = vmatprep.subr.mxu0 0.0
    %3760 = vmatpush2.msra.mxu0 0.0
    %3761 = vmatprep.subr.mxu0 0.0
    %3762 = vmatpush2.msra.mxu0 0.0
    %3763 = vmatprep.subr.mxu0 0.0
    %3764 = vmatpush2.msra.mxu0 0.0
    %3765 = vmatprep.subr.mxu0 0.0
    %3766 = vmatpush2.msra.mxu0 0.0
    %3767 = vmatprep.subr.mxu0 0.0
    %3768 = vmatpush2.msra.mxu0 0.0
    %3769 = vmatprep.subr.mxu0 0.0
    %3770 = vmatpush2.msra.mxu0 0.0
    %3771 = vmatprep.subr.mxu0 0.0
    %3772 = vmatpush2.msra.mxu0 0.0
    %3773 = vmatprep.subr.mxu0 0.0
    %3774 = vmatpush2.msra.mxu0 0.0
    %3775 = vmatprep.subr.mxu0 0.0
    %3776 = vmatpush2.msra.mxu0 0.0
    %3777 = vmatprep.subr.mxu0 0.0
    %3778 = vmatpush2.msra.mxu0 0.0
    %3779 = vmatprep.subr.mxu0 0.0
    %3780 = vmatpush2.msra.mxu0 0.0
    %3781 = vmatprep.subr.mxu0 0.0
    %3782 = vmatpush2.msra.mxu0 0.0
    %3783 = vmatprep.mubr.f32.mxu0 0.0
    %3784 = vmatmul.mubr.f32.gmra.mxu0 %v3628
    %v3785 = vpop.f32.mrf.mxu0
    %v3786 = vadd.f32 %v3618, %v3785
    %v3787 = vpop.f32.mrf.mxu0
    %v3788 = vadd.f32 %v3622, %v3787
    %3789 = vmatprep.mubr.f32.mxu0 0.0
    %3790 = vmatmul.mubr.f32.gmra.mxu0 %v3631
    %v3791 = vpop.f32.mrf.mxu0
    %v3792 = vadd.f32 %v3618, %v3791
    %v3793 = vpop.f32.mrf.mxu0
    %v3794 = vadd.f32 %v3622, %v3793
    %3795 = vmatprep.mubr.f32.mxu0 0.0
    %3796 = vmatmul.mubr.f32.gmra.mxu0 %v3634
    %v3797 = vpop.f32.mrf.mxu0
    %v3798 = vadd.f32 %v3618, %v3797
    %v3799 = vpop.f32.mrf.mxu0
    %v3800 = vadd.f32 %v3622, %v3799
    %3801 = vdwg.mxu0
    %v3802 = vmax.f32 %v3703, 0.0
    %v3803 = vmax.f32 %v3705, 0.0
    %v3804 = vmax.f32 %v3786, 0.0
    %v3805 = vmax.f32 %v3788, 0.0
    %v3806 = vmax.f32 %v3709, 0.0
    %v3807 = vmax.f32 %v3711, 0.0
    %v3808 = vmax.f32 %v3792, 0.0
    %v3809 = vmax.f32 %v3794, 0.0
    %v3810 = vmax.f32 %v3715, 0.0
    %v3811 = vmax.f32 %v3717, 0.0
    %v3812 = vmax.f32 %v3798, 0.0
    %v3813 = vmax.f32 %v3800, 0.0
    %v3814 = vld [vmem:[%s41] sm:$0xff]
    %v3815 = vld [vmem:[%s41 + $0x8] sm:$0xff]
    %v3816 = vld [vmem:[%s41 + $0x10] sm:$0xff]
    %v3817 = vld [vmem:[%s41 + $0x18] sm:$0xff]
    %v3818 = vld [vmem:[%s41 + $0x20] sm:$0xff]
    %v3819 = vld [vmem:[%s41 + $0x28] sm:$0xff]
    %v3820 = vld [vmem:[%s41 + $0x30] sm:$0xff]
    %v3821 = vld [vmem:[%s41 + $0x38] sm:$0xff]
    %v3822 = vld [vmem:[%s41 + $0x40] sm:$0xff]
    %v3823 = vld [vmem:[%s41 + $0x48] sm:$0xff]
    %v3824 = vld [vmem:[%s41 + $0x50] sm:$0xff]
    %v3825 = vld [vmem:[%s41 + $0x58] sm:$0xff]
    %v3826 = vld [vmem:[%s41 + $0x60] sm:$0xff]
    %v3827 = vld [vmem:[%s41 + $0x68] sm:$0xff]
    %v3828 = vld [vmem:[%s41 + $0x70] sm:$0xff]
    %v3829 = vld [vmem:[%s41 + $0x78] sm:$0xff]
    %v3830 = vld [vmem:[%s41 + $0x80] sm:$0xff]
    %v3831 = vld [vmem:[%s41 + $0x88] sm:$0xff]
    %v3832 = vld [vmem:[%s41 + $0x90] sm:$0xff]
    %v3833 = vld [vmem:[%s41 + $0x98] sm:$0xff]
    %v3834 = vld [vmem:[%s41 + $0xa0] sm:$0xff]
    %v3835 = vld [vmem:[%s41 + $0xa8] sm:$0xff]
    %v3836 = vld [vmem:[%s41 + $0xb0] sm:$0xff]
    %v3837 = vld [vmem:[%s41 + $0xb8] sm:$0xff]
    %v3838 = vld [vmem:[%s41 + $0xc0] sm:$0xff]
    %v3839 = vld [vmem:[%s41 + $0xc8] sm:$0xff]
    %v3840 = vld [vmem:[%s41 + $0xd0] sm:$0xff]
    %v3841 = vld [vmem:[%s41 + $0xd8] sm:$0xff]
    %v3842 = vld [vmem:[%s41 + $0xe0] sm:$0xff]
    %v3843 = vld [vmem:[%s41 + $0xe8] sm:$0xff]
    %v3844 = vld [vmem:[%s41 + $0xf0] sm:$0xff]
    %v3845 = vld [vmem:[%s41 + $0xf8] sm:$0xff]
    %v3846 = vld [vmem:[%s41 + $0x100] sm:$0xff]
    %v3847 = vld [vmem:[%s41 + $0x108] sm:$0xff]
    %v3848 = vld [vmem:[%s41 + $0x110] sm:$0xff]
    %v3849 = vld [vmem:[%s41 + $0x118] sm:$0xff]
    %v3850 = vld [vmem:[%s41 + $0x120] sm:$0xff]
    %v3851 = vld [vmem:[%s41 + $0x128] sm:$0xff]
    %v3852 = vld [vmem:[%s41 + $0x130] sm:$0xff]
    %v3853 = vld [vmem:[%s41 + $0x138] sm:$0xff]
    %v3854 = vld [vmem:[%s41 + $0x140] sm:$0xff]
    %v3855 = vld [vmem:[%s41 + $0x148] sm:$0xff]
    %v3856 = vld [vmem:[%s41 + $0x150] sm:$0xff]
    %v3857 = vld [vmem:[%s41 + $0x158] sm:$0xff]
    %v3858 = vld [vmem:[%s41 + $0x160] sm:$0xff]
    %v3859 = vld [vmem:[%s41 + $0x168] sm:$0xff]
    %v3860 = vld [vmem:[%s41 + $0x170] sm:$0xff]
    %v3861 = vld [vmem:[%s41 + $0x178] sm:$0xff]
    %v3862 = vld [vmem:[%s41 + $0x180] sm:$0xff]
    %v3863 = vld [vmem:[%s41 + $0x188] sm:$0xff]
    %v3864 = vld [vmem:[%s41 + $0x190] sm:$0xff]
    %v3865 = vld [vmem:[%s41 + $0x198] sm:$0xff]
    %v3866 = vld [vmem:[%s41 + $0x1a0] sm:$0xff]
    %v3867 = vld [vmem:[%s41 + $0x1a8] sm:$0xff]
    %v3868 = vld [vmem:[%s41 + $0x1b0] sm:$0xff]
    %v3869 = vld [vmem:[%s41 + $0x1b8] sm:$0xff]
    %v3870 = vld [vmem:[%s41 + $0x1c0] sm:$0xff]
    %v3871 = vld [vmem:[%s41 + $0x1c8] sm:$0xff]
    %v3872 = vld [vmem:[%s41 + $0x1d0] sm:$0xff]
    %v3873 = vld [vmem:[%s41 + $0x1d8] sm:$0xff]
    %v3874 = vld [vmem:[%s41 + $0x1e0] sm:$0xff]
    %v3875 = vld [vmem:[%s41 + $0x1e8] sm:$0xff]
    %v3876 = vld [vmem:[%s41 + $0x1f0] sm:$0xff]
    %v3877 = vld [vmem:[%s41 + $0x1f8] sm:$0xff]
    %v3878 = vld [vmem:[%s43] sm:$0x1]
    %v3880 = vlaneseq
    %v3881 = vshrl.u32 %v3880, 7
    %v3882 = vsub.s32 0, %v3881
    %v3883 = vrot.slane %v3878, %v3882
    %3885 = vmatprep.subr.mxu0 0.0
    %3886 = vmatpush1.msra.mxu0 %v3829
    %3887 = vmatprep.subr.mxu0 0.0
    %3888 = vmatpush1.msra.mxu0 %v3828
    %3889 = vmatprep.subr.mxu0 0.0
    %3890 = vmatpush1.msra.mxu0 %v3827
    %3891 = vmatprep.subr.mxu0 0.0
    %3892 = vmatpush1.msra.mxu0 %v3826
    %3893 = vmatprep.subr.mxu0 0.0
    %3894 = vmatpush1.msra.mxu0 %v3825
    %3895 = vmatprep.subr.mxu0 0.0
    %3896 = vmatpush1.msra.mxu0 %v3824
    %3897 = vmatprep.subr.mxu0 0.0
    %3898 = vmatpush1.msra.mxu0 %v3823
    %3899 = vmatprep.subr.mxu0 0.0
    %3900 = vmatpush1.msra.mxu0 %v3822
    %3901 = vmatprep.subr.mxu0 0.0
    %3902 = vmatpush1.msra.mxu0 %v3821
    %3903 = vmatprep.subr.mxu0 0.0
    %3904 = vmatpush1.msra.mxu0 %v3820
    %3905 = vmatprep.subr.mxu0 0.0
    %3906 = vmatpush1.msra.mxu0 %v3819
    %3907 = vmatprep.subr.mxu0 0.0
    %3908 = vmatpush1.msra.mxu0 %v3818
    %3909 = vmatprep.subr.mxu0 0.0
    %3910 = vmatpush1.msra.mxu0 %v3817
    %3911 = vmatprep.subr.mxu0 0.0
    %3912 = vmatpush1.msra.mxu0 %v3816
    %3913 = vmatprep.subr.mxu0 0.0
    %3914 = vmatpush1.msra.mxu0 %v3815
    %3915 = vmatprep.subr.mxu0 0.0
    %3916 = vmatpush1.msra.mxu0 %v3814
    %3917 = vmatprep.subr.mxu0 0.0
    %3918 = vmatpush2.msra.mxu0 %v3845
    %3919 = vmatprep.subr.mxu0 0.0
    %3920 = vmatpush2.msra.mxu0 %v3844
    %3921 = vmatprep.subr.mxu0 0.0
    %3922 = vmatpush2.msra.mxu0 %v3843
    %3923 = vmatprep.subr.mxu0 0.0
    %3924 = vmatpush2.msra.mxu0 %v3842
    %3925 = vmatprep.subr.mxu0 0.0
    %3926 = vmatpush2.msra.mxu0 %v3841
    %3927 = vmatprep.subr.mxu0 0.0
    %3928 = vmatpush2.msra.mxu0 %v3840
    %3929 = vmatprep.subr.mxu0 0.0
    %3930 = vmatpush2.msra.mxu0 %v3839
    %3931 = vmatprep.subr.mxu0 0.0
    %3932 = vmatpush2.msra.mxu0 %v3838
    %3933 = vmatprep.subr.mxu0 0.0
    %3934 = vmatpush2.msra.mxu0 %v3837
    %3935 = vmatprep.subr.mxu0 0.0
    %3936 = vmatpush2.msra.mxu0 %v3836
    %3937 = vmatprep.subr.mxu0 0.0
    %3938 = vmatpush2.msra.mxu0 %v3835
    %3939 = vmatprep.subr.mxu0 0.0
    %3940 = vmatpush2.msra.mxu0 %v3834
    %3941 = vmatprep.subr.mxu0 0.0
    %3942 = vmatpush2.msra.mxu0 %v3833
    %3943 = vmatprep.subr.mxu0 0.0
    %3944 = vmatpush2.msra.mxu0 %v3832
    %3945 = vmatprep.subr.mxu0 0.0
    %3946 = vmatpush2.msra.mxu0 %v3831
    %3947 = vmatprep.subr.mxu0 0.0
    %3948 = vmatpush2.msra.mxu0 %v3830
    %3949 = vmatprep.mubr.f32.mxu0 %v3803
    %3950 = vmatmul.mubr.f32.gmra.mxu0 %v3802
    %v3951 = vpop.f32.mrf.mxu0
    %v3952 = vadd.f32 %v3883, %v3951
    %v3953 = vpop.f32.mrf.mxu0
    %3954 = vmatprep.mubr.f32.mxu0 %v3807
    %3955 = vmatmul.mubr.f32.gmra.mxu0 %v3806
    %v3956 = vpop.f32.mrf.mxu0
    %v3957 = vadd.f32 %v3883, %v3956
    %v3958 = vpop.f32.mrf.mxu0
    %3959 = vmatprep.mubr.f32.mxu0 %v3811
    %3960 = vmatmul.mubr.f32.gmra.mxu0 %v3810
    %v3961 = vpop.f32.mrf.mxu0
    %v3962 = vadd.f32 %v3883, %v3961
    %v3963 = vpop.f32.mrf.mxu0
    %3964 = vdwg.mxu0
    %3965 = vmatprep.subr.mxu0 0.0
    %3966 = vmatpush1.msra.mxu0 %v3861
    %3967 = vmatprep.subr.mxu0 0.0
    %3968 = vmatpush1.msra.mxu0 %v3860
    %3969 = vmatprep.subr.mxu0 0.0
    %3970 = vmatpush1.msra.mxu0 %v3859
    %3971 = vmatprep.subr.mxu0 0.0
    %3972 = vmatpush1.msra.mxu0 %v3858
    %3973 = vmatprep.subr.mxu0 0.0
    %3974 = vmatpush1.msra.mxu0 %v3857
    %3975 = vmatprep.subr.mxu0 0.0
    %3976 = vmatpush1.msra.mxu0 %v3856
    %3977 = vmatprep.subr.mxu0 0.0
    %3978 = vmatpush1.msra.mxu0 %v3855
    %3979 = vmatprep.subr.mxu0 0.0
    %3980 = vmatpush1.msra.mxu0 %v3854
    %3981 = vmatprep.subr.mxu0 0.0
    %3982 = vmatpush1.msra.mxu0 %v3853
    %3983 = vmatprep.subr.mxu0 0.0
    %3984 = vmatpush1.msra.mxu0 %v3852
    %3985 = vmatprep.subr.mxu0 0.0
    %3986 = vmatpush1.msra.mxu0 %v3851
    %3987 = vmatprep.subr.mxu0 0.0
    %3988 = vmatpush1.msra.mxu0 %v3850
    %3989 = vmatprep.subr.mxu0 0.0
    %3990 = vmatpush1.msra.mxu0 %v3849
    %3991 = vmatprep.subr.mxu0 0.0
    %3992 = vmatpush1.msra.mxu0 %v3848
    %3993 = vmatprep.subr.mxu0 0.0
    %3994 = vmatpush1.msra.mxu0 %v3847
    %3995 = vmatprep.subr.mxu0 0.0
    %3996 = vmatpush1.msra.mxu0 %v3846
    %3997 = vmatprep.subr.mxu0 0.0
    %3998 = vmatpush2.msra.mxu0 %v3877
    %3999 = vmatprep.subr.mxu0 0.0
    %4000 = vmatpush2.msra.mxu0 %v3876
    %4001 = vmatprep.subr.mxu0 0.0
    %4002 = vmatpush2.msra.mxu0 %v3875
    %4003 = vmatprep.subr.mxu0 0.0
    %4004 = vmatpush2.msra.mxu0 %v3874
    %4005 = vmatprep.subr.mxu0 0.0
    %4006 = vmatpush2.msra.mxu0 %v3873
    %4007 = vmatprep.subr.mxu0 0.0
    %4008 = vmatpush2.msra.mxu0 %v3872
    %4009 = vmatprep.subr.mxu0 0.0
    %4010 = vmatpush2.msra.mxu0 %v3871
    %4011 = vmatprep.subr.mxu0 0.0
    %4012 = vmatpush2.msra.mxu0 %v3870
    %4013 = vmatprep.subr.mxu0 0.0
    %4014 = vmatpush2.msra.mxu0 %v3869
    %4015 = vmatprep.subr.mxu0 0.0
    %4016 = vmatpush2.msra.mxu0 %v3868
    %4017 = vmatprep.subr.mxu0 0.0
    %4018 = vmatpush2.msra.mxu0 %v3867
    %4019 = vmatprep.subr.mxu0 0.0
    %4020 = vmatpush2.msra.mxu0 %v3866
    %4021 = vmatprep.subr.mxu0 0.0
    %4022 = vmatpush2.msra.mxu0 %v3865
    %4023 = vmatprep.subr.mxu0 0.0
    %4024 = vmatpush2.msra.mxu0 %v3864
    %4025 = vmatprep.subr.mxu0 0.0
    %4026 = vmatpush2.msra.mxu0 %v3863
    %4027 = vmatprep.subr.mxu0 0.0
    %4028 = vmatpush2.msra.mxu0 %v3862
    %4029 = vmatprep.mubr.f32.mxu0 %v3805
    %4030 = vmatmul.mubr.f32.gmra.mxu0 %v3804
    %v4031 = vpop.f32.mrf.mxu0
    %v4032 = vadd.f32 %v3952, %v4031
    %v4033 = vpop.f32.mrf.mxu0
    %4034 = vmatprep.mubr.f32.mxu0 %v3809
    %4035 = vmatmul.mubr.f32.gmra.mxu0 %v3808
    %v4036 = vpop.f32.mrf.mxu0
    %v4037 = vadd.f32 %v3957, %v4036
    %v4038 = vpop.f32.mrf.mxu0
    %4039 = vmatprep.mubr.f32.mxu0 %v3813
    %4040 = vmatmul.mubr.f32.gmra.mxu0 %v3812
    %v4041 = vpop.f32.mrf.mxu0
    %v4042 = vadd.f32 %v3962, %v4041
    %v4043 = vpop.f32.mrf.mxu0
    %4044 = vdwg.mxu0
    %v4045 = vadd.f32 %v3570, %v4032
    %v4046 = vadd.f32 %v3571, %v4037
    %v4047 = vadd.f32 %v3572, %v4042
    %v4048 = vld [vmem:[%s45] sm:$0x1]
    %v4049 = vld [vmem:[%s47] sm:$0x1]
    %v4050 = vsel %vm735, %v4045, 0.0
    %4051 = vadd.xlane.f32.xlu0 %v4050
    %v4052 = vpop.xlane.xlu0 %4051
    %v4053 = vsel %vm735, %v4046, 0.0
    %4054 = vadd.xlane.f32.xlu0 %v4053
    %v4055 = vpop.xlane.xlu0 %4054
    %v4056 = vsel %vm738, %v4047, 0.0
    %4057 = vadd.xlane.f32.xlu0 %v4056
    %v4058 = vpop.xlane.xlu0 %4057
    %v4059 = vmul.f32 %v4052, %v3524
    %v4060 = vmul.f32 %v4055, %v3524
    %v4061 = vmul.f32 %v4058, %v3524
    %v4062 = vsub.f32 %v4045, %v4059
    %v4063 = vsub.f32 %v4046, %v4060
    %v4064 = vsub.f32 %v4047, %v4061
    %v4065 = vmul.f32 %v4062, %v4062
    %v4066 = vmul.f32 %v4063, %v4063
    %v4067 = vmul.f32 %v4064, %v4064
    %v4068 = vsel %vm735, %v4065, 0.0
    %4069 = vadd.xlane.f32.xlu0 %v4068
    %v4070 = vpop.xlane.xlu0 %4069
    %v4071 = vsel %vm735, %v4066, 0.0
    %4072 = vadd.xlane.f32.xlu0 %v4071
    %v4073 = vpop.xlane.xlu0 %4072
    %v4074 = vsel %vm738, %v4067, 0.0
    %4075 = vadd.xlane.f32.xlu0 %v4074
    %v4076 = vpop.xlane.xlu0 %4075
    %v4077 = vmul.f32 %v4070, %v3524
    %v4078 = vmul.f32 %v4073, %v3524
    %v4079 = vmul.f32 %v4076, %v3524
    %v4080 = vadd.f32 %v4077, 1e-05
    %v4081 = vadd.f32 %v4078, 1e-05
    %v4082 = vadd.f32 %v4079, 1e-05
    %v4083 = vrsqrt.pop %v4080
    %v4084 = vrsqrt.pop %v4081
    %v4085 = vrsqrt.pop %v4082
    %v4086 = vmul.f32 %v4062, %v4083
    %v4087 = vmul.f32 %v4063, %v4084
    %v4088 = vmul.f32 %v4064, %v4085
    %v4090 = vlaneseq
    %v4091 = vshrl.u32 %v4090, 7
    %v4092 = vsub.s32 0, %v4091
    %v4093 = vrot.slane %v4048, %v4092
    %v4095 = vmul.f32 %v4086, %v4093
    %v4096 = vmul.f32 %v4087, %v4093
    %v4097 = vmul.f32 %v4088, %v4093
    %v4099 = vlaneseq
    %v4100 = vshrl.u32 %v4099, 7
    %v4101 = vsub.s32 0, %v4100
    %v4102 = vrot.slane %v4049, %v4101
    %v4104 = vadd.f32 %v4095, %v4102
    %v4105 = vadd.f32 %v4096, %v4102
    %v4106 = vadd.f32 %v4097, %v4102
    %v4107 = vld [vmem:[%s57] sm:$0xff]
    %v4108 = vld [vmem:[%s57 + $0x8] sm:$0xff]
    %v4109 = vld [vmem:[%s57 + $0x10] sm:$0xff]
    %v4110 = vld [vmem:[%s57 + $0x18] sm:$0xff]
    %v4111 = vld [vmem:[%s57 + $0x20] sm:$0xff]
    %v4112 = vld [vmem:[%s57 + $0x28] sm:$0xff]
    %v4113 = vld [vmem:[%s57 + $0x30] sm:$0xff]
    %v4114 = vld [vmem:[%s57 + $0x38] sm:$0xff]
    %v4115 = vld [vmem:[%s59] sm:$0x1]
    %v4117 = vlaneseq
    %v4118 = vshrl.u32 %v4117, 7
    %v4119 = vsub.s32 0, %v4118
    %v4120 = vrot.slane %v4115, %v4119
    %v4123 = vsel %vm735, %v4106, 0
    %4125 = vmatprep.subr.mxu0 0.0
    %4126 = vmatpush1.msra.mxu0 0.0
    %4127 = vmatprep.subr.mxu0 0.0
    %4128 = vmatpush1.msra.mxu0 0.0
    %4129 = vmatprep.subr.mxu0 0.0
    %4130 = vmatpush1.msra.mxu0 0.0
    %4131 = vmatprep.subr.mxu0 0.0
    %4132 = vmatpush1.msra.mxu0 0.0
    %4133 = vmatprep.subr.mxu0 0.0
    %4134 = vmatpush1.msra.mxu0 0.0
    %4135 = vmatprep.subr.mxu0 0.0
    %4136 = vmatpush1.msra.mxu0 0.0
    %4137 = vmatprep.subr.mxu0 0.0
    %4138 = vmatpush1.msra.mxu0 0.0
    %4139 = vmatprep.subr.mxu0 0.0
    %4140 = vmatpush1.msra.mxu0 0.0
    %4141 = vmatprep.subr.mxu0 0.0
    %4142 = vmatpush1.msra.mxu0 %v4114
    %4143 = vmatprep.subr.mxu0 0.0
    %4144 = vmatpush1.msra.mxu0 %v4113
    %4145 = vmatprep.subr.mxu0 0.0
    %4146 = vmatpush1.msra.mxu0 %v4112
    %4147 = vmatprep.subr.mxu0 0.0
    %4148 = vmatpush1.msra.mxu0 %v4111
    %4149 = vmatprep.subr.mxu0 0.0
    %4150 = vmatpush1.msra.mxu0 %v4110
    %4151 = vmatprep.subr.mxu0 0.0
    %4152 = vmatpush1.msra.mxu0 %v4109
    %4153 = vmatprep.subr.mxu0 0.0
    %4154 = vmatpush1.msra.mxu0 %v4108
    %4155 = vmatprep.subr.mxu0 0.0
    %4156 = vmatpush1.msra.mxu0 %v4107
    %4157 = vmatprep.subr.mxu0 0.0
    %4158 = vmatpush2.msra.mxu0 0.0
    %4159 = vmatprep.subr.mxu0 0.0
    %4160 = vmatpush2.msra.mxu0 0.0
    %4161 = vmatprep.subr.mxu0 0.0
    %4162 = vmatpush2.msra.mxu0 0.0
    %4163 = vmatprep.subr.mxu0 0.0
    %4164 = vmatpush2.msra.mxu0 0.0
    %4165 = vmatprep.subr.mxu0 0.0
    %4166 = vmatpush2.msra.mxu0 0.0
    %4167 = vmatprep.subr.mxu0 0.0
    %4168 = vmatpush2.msra.mxu0 0.0
    %4169 = vmatprep.subr.mxu0 0.0
    %4170 = vmatpush2.msra.mxu0 0.0
    %4171 = vmatprep.subr.mxu0 0.0
    %4172 = vmatpush2.msra.mxu0 0.0
    %4173 = vmatprep.subr.mxu0 0.0
    %4174 = vmatpush2.msra.mxu0 0.0
    %4175 = vmatprep.subr.mxu0 0.0
    %4176 = vmatpush2.msra.mxu0 0.0
    %4177 = vmatprep.subr.mxu0 0.0
    %4178 = vmatpush2.msra.mxu0 0.0
    %4179 = vmatprep.subr.mxu0 0.0
    %4180 = vmatpush2.msra.mxu0 0.0
    %4181 = vmatprep.subr.mxu0 0.0
    %4182 = vmatpush2.msra.mxu0 0.0
    %4183 = vmatprep.subr.mxu0 0.0
    %4184 = vmatpush2.msra.mxu0 0.0
    %4185 = vmatprep.subr.mxu0 0.0
    %4186 = vmatpush2.msra.mxu0 0.0
    %4187 = vmatprep.subr.mxu0 0.0
    %4188 = vmatpush2.msra.mxu0 0.0
    %4189 = vmatprep.mubr.f32.mxu0 0.0
    %4190 = vmatmul.mubr.f32.gmra.mxu0 %v4123
    %v4191 = vpop.f32.mrf.mxu0
    %v4192 = vadd.f32 %v4120, %v4191
    %v4193 = vpop.f32.mrf.mxu0
    %4194 = vdwg.mxu0
    %v4195 = vld [vmem:[%s61] sm:$0x1]
    %v4196 = vld [vmem:[%s63] sm:$0x1]
    %v4197 = vsel %vm738, %v4192, 0.0
    %4198 = vadd.xlane.f32.xlu0 %v4197
    %v4199 = vpop.xlane.xlu0 %4198
    %v4200 = vmul.f32 %v4199, %v3524
    %v4201 = vsub.f32 %v4192, %v4200
    %v4202 = vmul.f32 %v4201, %v4201
    %v4203 = vsel %vm738, %v4202, 0.0
    %4204 = vadd.xlane.f32.xlu0 %v4203
    %v4205 = vpop.xlane.xlu0 %4204
    %v4206 = vmul.f32 %v4205, %v3524
    %v4207 = vadd.f32 %v4206, 1e-05
    %v4208 = vrsqrt.pop %v4207
    %v4209 = vmul.f32 %v4201, %v4208
    %v4211 = vlaneseq
    %v4212 = vshrl.u32 %v4211, 7
    %v4213 = vsub.s32 0, %v4212
    %v4214 = vrot.slane %v4195, %v4213
    %v4216 = vmul.f32 %v4209, %v4214
    %v4218 = vlaneseq
    %v4219 = vshrl.u32 %v4218, 7
    %v4220 = vsub.s32 0, %v4219
    %v4221 = vrot.slane %v4196, %v4220
    %v4223 = vadd.f32 %v4216, %v4221
    %vm4224 = vcmp.ge.f32.partialorder %v4223, 0.0
    %v4225 = vmul.f32 %v4223, 0.01
    %v4226 = vsel %vm4224, %v4223, %v4225
    %v4227 = vld [vmem:[%s65] sm:$0xff]
    %v4228 = vld [vmem:[%s65 + $0x8] sm:$0xff]
    %v4229 = vld [vmem:[%s65 + $0x10] sm:$0xff]
    %v4230 = vld [vmem:[%s65 + $0x18] sm:$0xff]
    %v4231 = vld [vmem:[%s65 + $0x20] sm:$0xff]
    %v4232 = vld [vmem:[%s65 + $0x28] sm:$0xff]
    %v4233 = vld [vmem:[%s65 + $0x30] sm:$0xff]
    %v4234 = vld [vmem:[%s65 + $0x38] sm:$0xff]
    %v4236 = vsel %vm735, %v4226, 0
    %4238 = vmatprep.subr.mxu0 0.0
    %4239 = vmatpush1.msra.mxu0 0.0
    %4240 = vmatprep.subr.mxu0 0.0
    %4241 = vmatpush1.msra.mxu0 0.0
    %4242 = vmatprep.subr.mxu0 0.0
    %4243 = vmatpush1.msra.mxu0 0.0
    %4244 = vmatprep.subr.mxu0 0.0
    %4245 = vmatpush1.msra.mxu0 0.0
    %4246 = vmatprep.subr.mxu0 0.0
    %4247 = vmatpush1.msra.mxu0 0.0
    %4248 = vmatprep.subr.mxu0 0.0
    %4249 = vmatpush1.msra.mxu0 0.0
    %4250 = vmatprep.subr.mxu0 0.0
    %4251 = vmatpush1.msra.mxu0 0.0
    %4252 = vmatprep.subr.mxu0 0.0
    %4253 = vmatpush1.msra.mxu0 0.0
    %4254 = vmatprep.subr.mxu0 0.0
    %4255 = vmatpush1.msra.mxu0 %v4234
    %4256 = vmatprep.subr.mxu0 0.0
    %4257 = vmatpush1.msra.mxu0 %v4233
    %4258 = vmatprep.subr.mxu0 0.0
    %4259 = vmatpush1.msra.mxu0 %v4232
    %4260 = vmatprep.subr.mxu0 0.0
    %4261 = vmatpush1.msra.mxu0 %v4231
    %4262 = vmatprep.subr.mxu0 0.0
    %4263 = vmatpush1.msra.mxu0 %v4230
    %4264 = vmatprep.subr.mxu0 0.0
    %4265 = vmatpush1.msra.mxu0 %v4229
    %4266 = vmatprep.subr.mxu0 0.0
    %4267 = vmatpush1.msra.mxu0 %v4228
    %4268 = vmatprep.subr.mxu0 0.0
    %4269 = vmatpush1.msra.mxu0 %v4227
    %4270 = vmatprep.subr.mxu0 0.0
    %4271 = vmatpush2.msra.mxu0 0.0
    %4272 = vmatprep.subr.mxu0 0.0
    %4273 = vmatpush2.msra.mxu0 0.0
    %4274 = vmatprep.subr.mxu0 0.0
    %4275 = vmatpush2.msra.mxu0 0.0
    %4276 = vmatprep.subr.mxu0 0.0
    %4277 = vmatpush2.msra.mxu0 0.0
    %4278 = vmatprep.subr.mxu0 0.0
    %4279 = vmatpush2.msra.mxu0 0.0
    %4280 = vmatprep.subr.mxu0 0.0
    %4281 = vmatpush2.msra.mxu0 0.0
    %4282 = vmatprep.subr.mxu0 0.0
    %4283 = vmatpush2.msra.mxu0 0.0
    %4284 = vmatprep.subr.mxu0 0.0
    %4285 = vmatpush2.msra.mxu0 0.0
    %4286 = vmatprep.subr.mxu0 0.0
    %4287 = vmatpush2.msra.mxu0 0.0
    %4288 = vmatprep.subr.mxu0 0.0
    %4289 = vmatpush2.msra.mxu0 0.0
    %4290 = vmatprep.subr.mxu0 0.0
    %4291 = vmatpush2.msra.mxu0 0.0
    %4292 = vmatprep.subr.mxu0 0.0
    %4293 = vmatpush2.msra.mxu0 0.0
    %4294 = vmatprep.subr.mxu0 0.0
    %4295 = vmatpush2.msra.mxu0 0.0
    %4296 = vmatprep.subr.mxu0 0.0
    %4297 = vmatpush2.msra.mxu0 0.0
    %4298 = vmatprep.subr.mxu0 0.0
    %4299 = vmatpush2.msra.mxu0 0.0
    %4300 = vmatprep.subr.mxu0 0.0
    %4301 = vmatpush2.msra.mxu0 0.0
    %4302 = vmatprep.mubr.f32.mxu0 0.0
    %4303 = vmatmul.mubr.f32.gmra.mxu0 %v4236
    %v4304 = vpop.f32.mrf.mxu0
    %v4305 = vadd.f32 0.0, %v4304
    %v4306 = vpop.f32.mrf.mxu0
    %4307 = vdwg.mxu0
    %v4308 = vmax.f32 %v4305, 0.0
    %vm4309 = vcmask 254976
    %4310 = vst.msk [vmem:[#allocation3] sm:$0x3] %vm4309, %v4308
    %v4311 = vld [vmem:[%s49] sm:$0xff]
    %v4312 = vld [vmem:[%s49 + $0x8] sm:$0xff]
    %v4313 = vld [vmem:[%s49 + $0x10] sm:$0xff]
    %v4314 = vld [vmem:[%s49 + $0x18] sm:$0xff]
    %v4315 = vld [vmem:[%s49 + $0x20] sm:$0xff]
    %v4316 = vld [vmem:[%s49 + $0x28] sm:$0xff]
    %v4317 = vld [vmem:[%s49 + $0x30] sm:$0xff]
    %v4318 = vld [vmem:[%s49 + $0x38] sm:$0xff]
    %v4319 = vld [vmem:[%s49 + $0x40] sm:$0xff]
    %v4320 = vld [vmem:[%s49 + $0x48] sm:$0xff]
    %v4321 = vld [vmem:[%s49 + $0x50] sm:$0xff]
    %v4322 = vld [vmem:[%s49 + $0x58] sm:$0xff]
    %v4323 = vld [vmem:[%s49 + $0x60] sm:$0xff]
    %v4324 = vld [vmem:[%s49 + $0x68] sm:$0xff]
    %v4325 = vld [vmem:[%s49 + $0x70] sm:$0xff]
    %v4326 = vld [vmem:[%s49 + $0x78] sm:$0xff]
    %v4327 = vld [vmem:[%s51] sm:$0x3]
    %v4329 = vlaneseq
    %v4330 = vshrl.u32 %v4329, 7
    %v4331 = vsub.s32 0, %v4330
    %v4332 = vrot.slane %v4327, %v4331
    %v4333 = vlaneseq
    %v4334 = vshrl.u32 %v4333, 7
    %v4335 = vsub.s32 1, %v4334
    %v4336 = vrot.slane %v4327, %v4335
    %v4340 = vsel %vm735, %v4104, 0
    %v4343 = vsel %vm735, %v4105, 0
    %4345 = vmatprep.subr.mxu0 0.0
    %4346 = vmatpush1.msra.mxu0 0.0
    %4347 = vmatprep.subr.mxu0 0.0
    %4348 = vmatpush1.msra.mxu0 0.0
    %4349 = vmatprep.subr.mxu0 0.0
    %4350 = vmatpush1.msra.mxu0 0.0
    %4351 = vmatprep.subr.mxu0 0.0
    %4352 = vmatpush1.msra.mxu0 0.0
    %4353 = vmatprep.subr.mxu0 0.0
    %4354 = vmatpush1.msra.mxu0 0.0
    %4355 = vmatprep.subr.mxu0 0.0
    %4356 = vmatpush1.msra.mxu0 0.0
    %4357 = vmatprep.subr.mxu0 0.0
    %4358 = vmatpush1.msra.mxu0 0.0
    %4359 = vmatprep.subr.mxu0 0.0
    %4360 = vmatpush1.msra.mxu0 0.0
    %4361 = vmatprep.subr.mxu0 %v4326
    %4362 = vmatpush1.msra.mxu0 %v4325
    %4363 = vmatprep.subr.mxu0 %v4324
    %4364 = vmatpush1.msra.mxu0 %v4323
    %4365 = vmatprep.subr.mxu0 %v4322
    %4366 = vmatpush1.msra.mxu0 %v4321
    %4367 = vmatprep.subr.mxu0 %v4320
    %4368 = vmatpush1.msra.mxu0 %v4319
    %4369 = vmatprep.subr.mxu0 %v4318
    %4370 = vmatpush1.msra.mxu0 %v4317
    %4371 = vmatprep.subr.mxu0 %v4316
    %4372 = vmatpush1.msra.mxu0 %v4315
    %4373 = vmatprep.subr.mxu0 %v4314
    %4374 = vmatpush1.msra.mxu0 %v4313
    %4375 = vmatprep.subr.mxu0 %v4312
    %4376 = vmatpush1.msra.mxu0 %v4311
    %4377 = vmatprep.subr.mxu0 0.0
    %4378 = vmatpush2.msra.mxu0 0.0
    %4379 = vmatprep.subr.mxu0 0.0
    %4380 = vmatpush2.msra.mxu0 0.0
    %4381 = vmatprep.subr.mxu0 0.0
    %4382 = vmatpush2.msra.mxu0 0.0
    %4383 = vmatprep.subr.mxu0 0.0
    %4384 = vmatpush2.msra.mxu0 0.0
    %4385 = vmatprep.subr.mxu0 0.0
    %4386 = vmatpush2.msra.mxu0 0.0
    %4387 = vmatprep.subr.mxu0 0.0
    %4388 = vmatpush2.msra.mxu0 0.0
    %4389 = vmatprep.subr.mxu0 0.0
    %4390 = vmatpush2.msra.mxu0 0.0
    %4391 = vmatprep.subr.mxu0 0.0
    %4392 = vmatpush2.msra.mxu0 0.0
    %4393 = vmatprep.subr.mxu0 0.0
    %4394 = vmatpush2.msra.mxu0 0.0
    %4395 = vmatprep.subr.mxu0 0.0
    %4396 = vmatpush2.msra.mxu0 0.0
    %4397 = vmatprep.subr.mxu0 0.0
    %4398 = vmatpush2.msra.mxu0 0.0
    %4399 = vmatprep.subr.mxu0 0.0
    %4400 = vmatpush2.msra.mxu0 0.0
    %4401 = vmatprep.subr.mxu0 0.0
    %4402 = vmatpush2.msra.mxu0 0.0
    %4403 = vmatprep.subr.mxu0 0.0
    %4404 = vmatpush2.msra.mxu0 0.0
    %4405 = vmatprep.subr.mxu0 0.0
    %4406 = vmatpush2.msra.mxu0 0.0
    %4407 = vmatprep.subr.mxu0 0.0
    %4408 = vmatpush2.msra.mxu0 0.0
    %4409 = vmatprep.mubr.f32.mxu0 0.0
    %4410 = vmatmul.mubr.f32.gmra.mxu0 %v4340
    %v4411 = vpop.f32.mrf.mxu0
    %v4412 = vadd.f32 %v4332, %v4411
    %v4413 = vpop.f32.mrf.mxu0
    %v4414 = vadd.f32 %v4336, %v4413
    %4415 = vmatprep.mubr.f32.mxu0 0.0
    %4416 = vmatmul.mubr.f32.gmra.mxu0 %v4343
    %v4417 = vpop.f32.mrf.mxu0
    %v4418 = vadd.f32 %v4332, %v4417
    %v4419 = vpop.f32.mrf.mxu0
    %v4420 = vadd.f32 %v4336, %v4419
    %4421 = vdwg.mxu0
    %v4422 = vmul.f32 %v4412, 0.5
    %v4423 = vmul.f32 %v4414, 0.5
    %v4424 = vmul.f32 %v4418, 0.5
    %v4425 = vmul.f32 %v4420, 0.5
    %v4426 = vmul.f32 %v4412, 0.044715
    %v4427 = vmul.f32 %v4414, 0.044715
    %v4428 = vmul.f32 %v4418, 0.044715
    %v4429 = vmul.f32 %v4420, 0.044715
    %v4430 = vmul.f32 %v4426, %v4412
    %v4431 = vmul.f32 %v4427, %v4414
    %v4432 = vmul.f32 %v4428, %v4418
    %v4433 = vmul.f32 %v4429, %v4420
    %v4434 = vmul.f32 %v4430, %v4412
    %v4435 = vmul.f32 %v4431, %v4414
    %v4436 = vmul.f32 %v4432, %v4418
    %v4437 = vmul.f32 %v4433, %v4420
    %v4438 = vadd.f32 %v4412, %v4434
    %v4439 = vadd.f32 %v4414, %v4435
    %v4440 = vadd.f32 %v4418, %v4436
    %v4441 = vadd.f32 %v4420, %v4437
    %v4442 = vmul.f32 %v4438, 0.7978846
    %v4443 = vmul.f32 %v4439, 0.7978846
    %v4444 = vmul.f32 %v4440, 0.7978846
    %v4445 = vmul.f32 %v4441, 0.7978846
    %v4446 = vtanh.pop %v4442
    %v4447 = vtanh.pop %v4443
    %v4448 = vtanh.pop %v4444
    %v4449 = vtanh.pop %v4445
    %v4450 = vadd.f32 %v4446, 1.0
    %v4451 = vadd.f32 %v4447, 1.0
    %v4452 = vadd.f32 %v4448, 1.0
    %v4453 = vadd.f32 %v4449, 1.0
    %v4454 = vmul.f32 %v4422, %v4450
    %v4455 = vmul.f32 %v4423, %v4451
    %v4456 = vmul.f32 %v4424, %v4452
    %v4457 = vmul.f32 %v4425, %v4453
    %v4458 = vld [vmem:[%s53] sm:$0xff]
    %v4459 = vld [vmem:[%s53 + $0x8] sm:$0xff]
    %v4460 = vld [vmem:[%s53 + $0x10] sm:$0xff]
    %v4461 = vld [vmem:[%s53 + $0x18] sm:$0xff]
    %v4462 = vld [vmem:[%s53 + $0x20] sm:$0xff]
    %v4463 = vld [vmem:[%s53 + $0x28] sm:$0xff]
    %v4464 = vld [vmem:[%s53 + $0x30] sm:$0xff]
    %v4465 = vld [vmem:[%s53 + $0x38] sm:$0xff]
    %v4466 = vld [vmem:[%s53 + $0x40] sm:$0xff]
    %v4467 = vld [vmem:[%s53 + $0x48] sm:$0xff]
    %v4468 = vld [vmem:[%s53 + $0x50] sm:$0xff]
    %v4469 = vld [vmem:[%s53 + $0x58] sm:$0xff]
    %v4470 = vld [vmem:[%s53 + $0x60] sm:$0xff]
    %v4471 = vld [vmem:[%s53 + $0x68] sm:$0xff]
    %v4472 = vld [vmem:[%s53 + $0x70] sm:$0xff]
    %v4473 = vld [vmem:[%s53 + $0x78] sm:$0xff]
    %v4474 = vld [vmem:[%s53 + $0x80] sm:$0xff]
    %v4475 = vld [vmem:[%s53 + $0x88] sm:$0xff]
    %v4476 = vld [vmem:[%s53 + $0x90] sm:$0xff]
    %v4477 = vld [vmem:[%s53 + $0x98] sm:$0xff]
    %v4478 = vld [vmem:[%s53 + $0xa0] sm:$0xff]
    %v4479 = vld [vmem:[%s53 + $0xa8] sm:$0xff]
    %v4480 = vld [vmem:[%s53 + $0xb0] sm:$0xff]
    %v4481 = vld [vmem:[%s53 + $0xb8] sm:$0xff]
    %v4482 = vld [vmem:[%s53 + $0xc0] sm:$0xff]
    %v4483 = vld [vmem:[%s53 + $0xc8] sm:$0xff]
    %v4484 = vld [vmem:[%s53 + $0xd0] sm:$0xff]
    %v4485 = vld [vmem:[%s53 + $0xd8] sm:$0xff]
    %v4486 = vld [vmem:[%s53 + $0xe0] sm:$0xff]
    %v4487 = vld [vmem:[%s53 + $0xe8] sm:$0xff]
    %v4488 = vld [vmem:[%s53 + $0xf0] sm:$0xff]
    %v4489 = vld [vmem:[%s53 + $0xf8] sm:$0xff]
    %v4490 = vld [vmem:[%s55] sm:$0x1]
    %v4492 = vlaneseq
    %v4493 = vshrl.u32 %v4492, 7
    %v4494 = vsub.s32 0, %v4493
    %v4495 = vrot.slane %v4490, %v4494
    %4497 = vmatprep.subr.mxu0 0.0
    %4498 = vmatpush1.msra.mxu0 %v4473
    %4499 = vmatprep.subr.mxu0 0.0
    %4500 = vmatpush1.msra.mxu0 %v4472
    %4501 = vmatprep.subr.mxu0 0.0
    %4502 = vmatpush1.msra.mxu0 %v4471
    %4503 = vmatprep.subr.mxu0 0.0
    %4504 = vmatpush1.msra.mxu0 %v4470
    %4505 = vmatprep.subr.mxu0 0.0
    %4506 = vmatpush1.msra.mxu0 %v4469
    %4507 = vmatprep.subr.mxu0 0.0
    %4508 = vmatpush1.msra.mxu0 %v4468
    %4509 = vmatprep.subr.mxu0 0.0
    %4510 = vmatpush1.msra.mxu0 %v4467
    %4511 = vmatprep.subr.mxu0 0.0
    %4512 = vmatpush1.msra.mxu0 %v4466
    %4513 = vmatprep.subr.mxu0 0.0
    %4514 = vmatpush1.msra.mxu0 %v4465
    %4515 = vmatprep.subr.mxu0 0.0
    %4516 = vmatpush1.msra.mxu0 %v4464
    %4517 = vmatprep.subr.mxu0 0.0
    %4518 = vmatpush1.msra.mxu0 %v4463
    %4519 = vmatprep.subr.mxu0 0.0
    %4520 = vmatpush1.msra.mxu0 %v4462
    %4521 = vmatprep.subr.mxu0 0.0
    %4522 = vmatpush1.msra.mxu0 %v4461
    %4523 = vmatprep.subr.mxu0 0.0
    %4524 = vmatpush1.msra.mxu0 %v4460
    %4525 = vmatprep.subr.mxu0 0.0
    %4526 = vmatpush1.msra.mxu0 %v4459
    %4527 = vmatprep.subr.mxu0 0.0
    %4528 = vmatpush1.msra.mxu0 %v4458
    %4529 = vmatprep.subr.mxu0 0.0
    %4530 = vmatpush2.msra.mxu0 %v4489
    %4531 = vmatprep.subr.mxu0 0.0
    %4532 = vmatpush2.msra.mxu0 %v4488
    %4533 = vmatprep.subr.mxu0 0.0
    %4534 = vmatpush2.msra.mxu0 %v4487
    %4535 = vmatprep.subr.mxu0 0.0
    %4536 = vmatpush2.msra.mxu0 %v4486
    %4537 = vmatprep.subr.mxu0 0.0
    %4538 = vmatpush2.msra.mxu0 %v4485
    %4539 = vmatprep.subr.mxu0 0.0
    %4540 = vmatpush2.msra.mxu0 %v4484
    %4541 = vmatprep.subr.mxu0 0.0
    %4542 = vmatpush2.msra.mxu0 %v4483
    %4543 = vmatprep.subr.mxu0 0.0
    %4544 = vmatpush2.msra.mxu0 %v4482
    %4545 = vmatprep.subr.mxu0 0.0
    %4546 = vmatpush2.msra.mxu0 %v4481
    %4547 = vmatprep.subr.mxu0 0.0
    %4548 = vmatpush2.msra.mxu0 %v4480
    %4549 = vmatprep.subr.mxu0 0.0
    %4550 = vmatpush2.msra.mxu0 %v4479
    %4551 = vmatprep.subr.mxu0 0.0
    %4552 = vmatpush2.msra.mxu0 %v4478
    %4553 = vmatprep.subr.mxu0 0.0
    %4554 = vmatpush2.msra.mxu0 %v4477
    %4555 = vmatprep.subr.mxu0 0.0
    %4556 = vmatpush2.msra.mxu0 %v4476
    %4557 = vmatprep.subr.mxu0 0.0
    %4558 = vmatpush2.msra.mxu0 %v4475
    %4559 = vmatprep.subr.mxu0 0.0
    %4560 = vmatpush2.msra.mxu0 %v4474
    %4561 = vmatprep.mubr.f32.mxu0 %v4455
    %4562 = vmatmul.mubr.f32.gmra.mxu0 %v4454
    %v4563 = vpop.f32.mrf.mxu0
    %v4564 = vadd.f32 %v4495, %v4563
    %v4565 = vpop.f32.mrf.mxu0
    %4566 = vmatprep.mubr.f32.mxu0 %v4457
    %4567 = vmatmul.mubr.f32.gmra.mxu0 %v4456
    %v4568 = vpop.f32.mrf.mxu0
    %v4569 = vadd.f32 %v4495, %v4568
    %v4570 = vpop.f32.mrf.mxu0
    %4571 = vdwg.mxu0
    %4572 = vst.msk [vmem:[%s67] sm:$0xff] %vm735, %v4564
    %4573 = vst.msk [vmem:[%s67 + $0x8] sm:$0xff] %vm735, %v4569
    // Predicated region
    $region134: #{cross_stage_forward.1} parent=1 // pred_check
      _
    $region135: #{cross_stage_forward.1} parent=1 // pred_check_branch
      %4575 = sbr.rel (0) target = $region137
    $region136: #{cross_stage_forward.1} parent=1 // pred_region
      _
    $region137: #{cross_stage_forward.1} parent=1 // pred_fallthru
      _
    // Predicated region
    $region138: #{cross_stage_forward.1} parent=1 // pred_check
      _
    $region139: #{cross_stage_forward.1} parent=1 // pred_check_branch
      %4577 = sbr.rel (0) target = $region141
    $region140: #{cross_stage_forward.1} parent=1 // pred_region
      %s4579 = ssub.s32 32, 32
      %4580 = vsyncadd [#allocation4], %s4579
      %s4582 = sshll.u32 [#allocation3], 4
      %s4583 = int_to_ptr.vmem [resolvable:$true] %s4582
      %4585 = dma.vmem_to_hbm [thread:$0]  %s4583, 32, %s69, [#allocation4]
    $region141: #{cross_stage_forward.1} parent=1 // pred_fallthru
      _
    // Predicated region
    $region142: #{cross_stage_forward.1} parent=1 // pred_check
      _
    $region143: #{cross_stage_forward.1} parent=1 // pred_check_branch
      %4587 = sbr.rel (0) target = $region145
    $region144: #{cross_stage_forward.1} parent=1 // pred_region
      _
    $region145: #{cross_stage_forward.1} parent=1 // pred_fallthru
      _
    // Predicated region
    $region146: #{cross_stage_forward.1} parent=1 // pred_check
      _
    $region147: #{cross_stage_forward.1} parent=1 // pred_check_branch
      %4589 = sbr.rel (0) target = $region149
    $region148: #{cross_stage_forward.1} parent=1 // pred_region
      %4590 = dma.done [#allocation4], 32
    $region149: #{cross_stage_forward.1} parent=1 // pred_fallthru
      _
    %4591 = vsyncpa [#allocation4], 1

</llo_original>
